<compile_context>
chip_gen: v7x
topology: tpu7x:2x2x1
jax: 0.10.0
libtpu: 0.0.40
codegen_flags: <defaults>
</compile_context>

<pallas_src>
import math
from functools import partial

import jax
import jax.numpy as jnp
from jax.experimental import pallas as pl
from jax.experimental.pallas import tpu as pltpu  # noqa: F401  (not needed: no grid/scratch)


# -----------------------------------------------------------------------------
# The single fused kernel
# -----------------------------------------------------------------------------
def _sk_tcl_kernel(x5_ref, wec_ref, bec_ref, sel_e_ref, sel_o_ref, g_ref,
                   w2_ref, b2_ref, pa_ref, pb_ref, pe_ref, hmask_ref, bsum_ref,
                   *rest, num_heads, num_layers):
    o_ref = rest[-1]
    layer_refs = rest[:-1]          # 16 refs per encoder layer
    f32 = jnp.float32

    def dot(a, b):
        return jnp.dot(a, b, preferred_element_type=f32)

    def layer_norm(v, g, b):
        mu = jnp.mean(v, axis=-1, keepdims=True)
        var = jnp.mean((v - mu) ** 2, axis=-1, keepdims=True)
        return (v - mu) * jax.lax.rsqrt(var + 1e-5) * g + b

    # ---------------- frontend: embed + Conv/ReLU/MaxPool/Conv/ReLU/IN/MaxPool -------
    # Fused embed+conv1 on the im2col'd raw sequence, then ReLU.        -> (T-4, C)
    h1 = jnp.maximum(dot(x5_ref[...], wec_ref[...]) + bec_ref[...], 0.0)

    # MaxPool1d(2, 2) over the full sequence via even/odd row-selection matmuls.
    pool = jnp.maximum(dot(sel_e_ref[...], h1), dot(sel_o_ref[...], h1))    # (P, C)

    # Conv1d#2 evaluated only at the 2 temporal positions each window keeps.
    # g_ref[k] gathers pool row 4i+t+k into row 2i+t   (i = window, t in {0, 1}).
    ab = b2_ref[...]
    for k in range(5):
        ab = ab + dot(dot(g_ref[k], pool), w2_ref[k])
    ab = jnp.maximum(ab, 0.0)                                               # (2W, C)

    a = dot(pa_ref[...], ab)          # (W, C)  window temporal position 0
    b = dot(pb_ref[...], ab)          # (W, C)  window temporal position 1

    # InstanceNorm1d(affine=False, eps=1e-5, biased var) over the length-2 temporal
    # axis, then MaxPool1d(2, 2) -> one feature row per window, + positional encoding.
    mu = 0.5 * (a + b)
    var = 0.5 * ((a - mu) ** 2 + (b - mu) ** 2)
    inv = jax.lax.rsqrt(var + 1e-5)
    x = jnp.maximum((a - mu) * inv, (b - mu) * inv) + pe_ref[...]           # (W, C)

    # ---------------- transformer encoder (post-norm, ReLU FFN) ----------------------
    hmask = hmask_ref[...]            # (H*W, C)  1 where channel belongs to row's head
    bsum = bsum_ref[...]              # (W, H*W)  sums the H stacked head blocks
    C = x.shape[-1]
    scale = 1.0 / math.sqrt(C // num_heads)

    for li in range(num_layers):
        (wq, bq, wk, bk, wv, bv, wo, bo, g1, be1,
         fw1, fb1, fw2, fb2, g2, be2) = [layer_refs[li * 16 + j][...]
                                         for j in range(16)]

        q = dot(x, wq) + bq
        kmat = dot(x, wk) + bk
        v = dot(x, wv) + bv

        # Heads stacked on the sublane axis: row h*W+i = q_i masked to head h channels.
        qs = jnp.concatenate([q] * num_heads, axis=0) * hmask               # (H*W, C)
        s = jax.lax.dot_general(qs, kmat, (((1,), (1,)), ((), ())),
                                preferred_element_type=f32) * scale         # (H*W, W)
        s = s - jnp.max(s, axis=-1, keepdims=True)
        p = jnp.exp(s)
        p = p / jnp.sum(p, axis=-1, keepdims=True)                          # softmax
        ctx = dot(p, v)                                                     # (H*W, C)
        attn = dot(bsum, ctx * hmask)                                       # (W, C)
        attn = dot(attn, wo) + bo                                           # out_proj

        x = layer_norm(x + attn, g1, be1)
        ff = jnp.maximum(dot(x, fw1) + fb1, 0.0)
        ff = dot(ff, fw2) + fb2
        x = layer_norm(x + ff, g2, be2)

    o_ref[...] = x


# -----------------------------------------------------------------------------
# Wrapper: layout prep (im2col, weight fusion, constant gather matrices) + call
# -----------------------------------------------------------------------------
def sinusoidal_pe(n_tokens, d_model):
    # TODO(synk): PositionalEncoding1D source is not in the snippet; the standard
    # sinusoidal encoding (sin on even / cos on odd channels) is assumed.
    pos = jnp.arange(n_tokens, dtype=jnp.float32)[:, None]
    div = jnp.exp(jnp.arange(0, d_model, 2, dtype=jnp.float32)
                  * (-math.log(10000.0) / d_model))
    pe = jnp.zeros((n_tokens, d_model), jnp.float32)
    pe = pe.at[:, 0::2].set(jnp.sin(pos * div))
    pe = pe.at[:, 1::2].set(jnp.cos(pos * div))
    return pe


def sk_tcl_forward(x, params, num_heads=8):
    K, window_size, stride = 5, 16, 8
    _, T, n_kp, n_ax = x.shape
    feat = n_kp * n_ax                                     # 33 * 3 = 99
    W = (T - window_size) // stride + 1                    # windows == tokens
    C = params["embed_w"].shape[1]
    assert C % num_heads == 0

    # ---- pure data-layout prep (no model FLOPs happen here) ------------------------
    xf = x.reshape(T, feat).astype(jnp.float32)            # (T, 99)
    Hc = T - (K - 1)                                       # full-sequence conv1 length
    # im2col of the raw input: row s = [x[s], x[s+1], ..., x[s+4]]
    x5 = jnp.concatenate([xf[k:k + Hc] for k in range(K)], axis=1)      # (Hc, 5*99)

    # Fuse the embed Linear into conv1's taps: conv1(embed(x))[s] == x5[s] @ w_ec + b_ec
    we, be = params["embed_w"], params["embed_b"]
    w1, b1 = params["conv1_w"], params["conv1_b"]          # (5, Cin, Cout), tap k = torch W[:, :, k].T
    w_ec = jnp.concatenate([we @ w1[k] for k in range(K)], axis=0)      # (5*99, C)
    b_ec = be @ jnp.sum(w1, axis=0) + b1                                # (1, C)

    # Constant 0/1 row-gather matrices (selections expressed as MXU matmuls).
    P = Hc // 2
    sel_e = jax.nn.one_hot(2 * jnp.arange(P), Hc, dtype=jnp.float32)        # (P, Hc)
    sel_o = jax.nn.one_hot(2 * jnp.arange(P) + 1, Hc, dtype=jnp.float32)
    rows = jnp.arange(2 * W)
    g = jnp.stack([jax.nn.one_hot(4 * (rows // 2) + (rows % 2) + k, P,
                                  dtype=jnp.float32) for k in range(K)])    # (5, 2W, P)
    p_even = jax.nn.one_hot(2 * jnp.arange(W), 2 * W, dtype=jnp.float32)    # (W, 2W)
    p_odd = jax.nn.one_hot(2 * jnp.arange(W) + 1, 2 * W, dtype=jnp.float32)

    pe = sinusoidal_pe(W, C)

    # Attention constants: head mask for sublane-stacked heads + head block-sum.
    dh = C // num_heads
    ch_head = jnp.arange(C) // dh
    row_head = jnp.repeat(jnp.arange(num_heads), W)
    hmask = (row_head[:, None] == ch_head[None, :]).astype(jnp.float32)     # (H*W, C)
    bsum = jnp.tile(jnp.eye(W, dtype=jnp.float32), (1, num_heads))          # (W, H*W)

    layer_flat = [t for lp in params["layers"] for t in lp]

    # One grid-less pallas_call: all operands are whole-array VMEM blocks (< ~1 MB).
    out = pl.pallas_call(
        partial(_sk_tcl_kernel, num_heads=num_heads,
                num_layers=len(params["layers"])),
        out_shape=jax.ShapeDtypeStruct((W, C), jnp.float32),
    )(x5, w_ec, b_ec, sel_e, sel_o, g, params["conv2_w"], params["conv2_b"],
      p_even, p_odd, pe, hmask, bsum, *layer_flat)

    # fc head intentionally omitted: only the loss branch (y != None) consumes it,
    # so it is dead code on this inference path (and was DCE'd by XLA before).
    return out.reshape(W, 1, C), jnp.array(0, dtype=jnp.int32)


# -----------------------------------------------------------------------------
# Random parameters in the layouts the kernel expects
# -----------------------------------------------------------------------------
def init_params(key, channels=32, n_classes=16, num_layers=2):
    C = channels
    ks = jax.random.split(key, 8 + num_layers)

    def nrm(k, shape, scale):
        return jax.random.normal(k, shape, jnp.float32) * scale

    params = {
        "embed_w": nrm(ks[0], (99, C), 1.0 / math.sqrt(99)),
        "embed_b": nrm(ks[1], (1, C), 0.01),
        # conv weights stored as (5, C_in, C_out): tap k == torch_weight[:, :, k].T
        "conv1_w": nrm(ks[2], (5, C, C), 1.0 / math.sqrt(5 * C)),
        "conv1_b": nrm(ks[3], (1, C), 0.01),
        "conv2_w": nrm(ks[4], (5, C, C), 1.0 / math.sqrt(5 * C)),
        "conv2_b": nrm(ks[5], (1, C), 0.01),
        # fc params kept for structural parity with the module; unused when y is None.
        "fc_w": nrm(ks[6], (C, n_classes), 1.0 / math.sqrt(C)),
        "fc_b": nrm(ks[7], (1, n_classes), 0.01),
    }
    layers = []
    for li in range(num_layers):
        lk = jax.random.split(ks[8 + li], 10)
        layers.append((
            nrm(lk[0], (C, C), 1.0 / math.sqrt(C)), nrm(lk[1], (1, C), 0.01),   # wq, bq
            nrm(lk[2], (C, C), 1.0 / math.sqrt(C)), nrm(lk[3], (1, C), 0.01),   # wk, bk
            nrm(lk[4], (C, C), 1.0 / math.sqrt(C)), nrm(lk[5], (1, C), 0.01),   # wv, bv
            nrm(lk[6], (C, C), 1.0 / math.sqrt(C)), nrm(lk[7], (1, C), 0.01),   # wo, bo
            jnp.ones((1, C), jnp.float32), jnp.zeros((1, C), jnp.float32),      # ln1
            nrm(lk[8], (C, 2 * C), 1.0 / math.sqrt(C)),
            jnp.zeros((1, 2 * C), jnp.float32),                                 # ffn w1,b1
            nrm(lk[9], (2 * C, C), 1.0 / math.sqrt(2 * C)),
            jnp.zeros((1, C), jnp.float32),                                     # ffn w2,b2
            jnp.ones((1, C), jnp.float32), jnp.zeros((1, C), jnp.float32),      # ln2
        ))
    params["layers"] = layers
    return params


if __name__ == "__main__":
    key = jax.random.PRNGKey(0)
    k_in, k_par = jax.random.split(key)

    T = 72                                    # 72 frames -> 8 windows of 16 (stride 8)
    x = jax.random.normal(k_in, (1, T, 33, 3), jnp.float32)
    params = init_params(k_par, channels=32, n_classes=16)

    fwd = jax.jit(sk_tcl_forward)
    out, aux = fwd(x, params)
    out = jax.block_until_ready(out)

    assert out.shape == (8, 1, 32), out.shape
    assert bool(jnp.all(jnp.isfinite(out)))
    print("KERNEL_OK")
</pallas_src>

<mosaic_0001>
module attributes {stable_mosaic.version = 11 : i64} {
  func.func @_sk_tcl_kernel(%arg0: memref<68x495xf32, #tpu.memory_space<vmem>>, %arg1: memref<495x32xf32, #tpu.memory_space<vmem>>, %arg2: memref<1x32xf32, #tpu.memory_space<vmem>>, %arg3: memref<34x68xf32, #tpu.memory_space<vmem>>, %arg4: memref<34x68xf32, #tpu.memory_space<vmem>>, %arg5: memref<5x16x34xf32, #tpu.memory_space<vmem>>, %arg6: memref<5x32x32xf32, #tpu.memory_space<vmem>>, %arg7: memref<1x32xf32, #tpu.memory_space<vmem>>, %arg8: memref<8x16xf32, #tpu.memory_space<vmem>>, %arg9: memref<8x16xf32, #tpu.memory_space<vmem>>, %arg10: memref<8x32xf32, #tpu.memory_space<vmem>>, %arg11: memref<64x32xf32, #tpu.memory_space<vmem>>, %arg12: memref<8x64xf32, #tpu.memory_space<vmem>>, %arg13: memref<32x32xf32, #tpu.memory_space<vmem>>, %arg14: memref<1x32xf32, #tpu.memory_space<vmem>>, %arg15: memref<32x32xf32, #tpu.memory_space<vmem>>, %arg16: memref<1x32xf32, #tpu.memory_space<vmem>>, %arg17: memref<32x32xf32, #tpu.memory_space<vmem>>, %arg18: memref<1x32xf32, #tpu.memory_space<vmem>>, %arg19: memref<32x32xf32, #tpu.memory_space<vmem>>, %arg20: memref<1x32xf32, #tpu.memory_space<vmem>>, %arg21: memref<1x32xf32, #tpu.memory_space<vmem>>, %arg22: memref<1x32xf32, #tpu.memory_space<vmem>>, %arg23: memref<32x64xf32, #tpu.memory_space<vmem>>, %arg24: memref<1x64xf32, #tpu.memory_space<vmem>>, %arg25: memref<64x32xf32, #tpu.memory_space<vmem>>, %arg26: memref<1x32xf32, #tpu.memory_space<vmem>>, %arg27: memref<1x32xf32, #tpu.memory_space<vmem>>, %arg28: memref<1x32xf32, #tpu.memory_space<vmem>>, %arg29: memref<32x32xf32, #tpu.memory_space<vmem>>, %arg30: memref<1x32xf32, #tpu.memory_space<vmem>>, %arg31: memref<32x32xf32, #tpu.memory_space<vmem>>, %arg32: memref<1x32xf32, #tpu.memory_space<vmem>>, %arg33: memref<32x32xf32, #tpu.memory_space<vmem>>, %arg34: memref<1x32xf32, #tpu.memory_space<vmem>>, %arg35: memref<32x32xf32, #tpu.memory_space<vmem>>, %arg36: memref<1x32xf32, #tpu.memory_space<vmem>>, %arg37: memref<1x32xf32, #tpu.memory_space<vmem>>, %arg38: memref<1x32xf32, #tpu.memory_space<vmem>>, %arg39: memref<32x64xf32, #tpu.memory_space<vmem>>, %arg40: memref<1x64xf32, #tpu.memory_space<vmem>>, %arg41: memref<64x32xf32, #tpu.memory_space<vmem>>, %arg42: memref<1x32xf32, #tpu.memory_space<vmem>>, %arg43: memref<1x32xf32, #tpu.memory_space<vmem>>, %arg44: memref<1x32xf32, #tpu.memory_space<vmem>>, %arg45: memref<8x32xf32, #tpu.memory_space<vmem>>) attributes {dimension_semantics = [], scalar_prefetch = 0 : i64, scratch_operands = 0 : i64, tpu.core_type = #tpu.core_type<tc>} {
    %c0 = arith.constant 0 : index
    %c0_0 = arith.constant 0 : index
    %0 = vector.load %arg0[%c0, %c0_0] : memref<68x495xf32, #tpu.memory_space<vmem>>, vector<68x495xf32>
    %c0_1 = arith.constant 0 : index
    %c0_2 = arith.constant 0 : index
    %1 = vector.load %arg1[%c0_1, %c0_2] : memref<495x32xf32, #tpu.memory_space<vmem>>, vector<495x32xf32>
    %cst = arith.constant dense<0.000000e+00> : vector<68x32xf32>
    %2 = tpu.matmul %0, %1, %cst {dimension_numbers = #tpu.dot_dimension_numbers<[1], [0], [0], [1], [0, 0, 1, 1], [], []>} : vector<68x495xf32>, vector<495x32xf32>, vector<68x32xf32> -> vector<68x32xf32>
    %c0_3 = arith.constant 0 : index
    %c0_4 = arith.constant 0 : index
    %3 = vector.load %arg2[%c0_3, %c0_4] : memref<1x32xf32, #tpu.memory_space<vmem>>, vector<1x32xf32>
    %4 = vector.broadcast %3 : vector<1x32xf32> to vector<68x32xf32>
    %5 = arith.addf %2, %4 : vector<68x32xf32>
    %cst_5 = arith.constant 0.000000e+00 : f32
    %6 = vector.broadcast %cst_5 : f32 to vector<68x32xf32>
    %7 = arith.maximumf %5, %6 : vector<68x32xf32>
    %c0_6 = arith.constant 0 : index
    %c0_7 = arith.constant 0 : index
    %8 = vector.load %arg3[%c0_6, %c0_7] : memref<34x68xf32, #tpu.memory_space<vmem>>, vector<34x68xf32>
    %cst_8 = arith.constant dense<0.000000e+00> : vector<34x32xf32>
    %9 = tpu.matmul %8, %7, %cst_8 {dimension_numbers = #tpu.dot_dimension_numbers<[1], [0], [0], [1], [0, 0, 1, 1], [], []>} : vector<34x68xf32>, vector<68x32xf32>, vector<34x32xf32> -> vector<34x32xf32>
    %c0_9 = arith.constant 0 : index
    %c0_10 = arith.constant 0 : index
    %10 = vector.load %arg4[%c0_9, %c0_10] : memref<34x68xf32, #tpu.memory_space<vmem>>, vector<34x68xf32>
    %cst_11 = arith.constant dense<0.000000e+00> : vector<34x32xf32>
    %11 = tpu.matmul %10, %7, %cst_11 {dimension_numbers = #tpu.dot_dimension_numbers<[1], [0], [0], [1], [0, 0, 1, 1], [], []>} : vector<34x68xf32>, vector<68x32xf32>, vector<34x32xf32> -> vector<34x32xf32>
    %12 = arith.maximumf %9, %11 : vector<34x32xf32>
    %c0_12 = arith.constant 0 : index
    %c0_13 = arith.constant 0 : index
    %13 = vector.load %arg7[%c0_12, %c0_13] : memref<1x32xf32, #tpu.memory_space<vmem>>, vector<1x32xf32>
    %c0_14 = arith.constant 0 : index
    %c0_15 = arith.constant 0 : index
    %c0_16 = arith.constant 0 : index
    %14 = vector.load %arg5[%c0_14, %c0_15, %c0_16] : memref<5x16x34xf32, #tpu.memory_space<vmem>>, vector<1x16x34xf32>
    %15 = vector.shape_cast %14 : vector<1x16x34xf32> to vector<16x34xf32>
    %cst_17 = arith.constant dense<0.000000e+00> : vector<16x32xf32>
    %16 = tpu.matmul %15, %12, %cst_17 {dimension_numbers = #tpu.dot_dimension_numbers<[1], [0], [0], [1], [0, 0, 1, 1], [], []>} : vector<16x34xf32>, vector<34x32xf32>, vector<16x32xf32> -> vector<16x32xf32>
    %c0_18 = arith.constant 0 : index
    %c0_19 = arith.constant 0 : index
    %c0_20 = arith.constant 0 : index
    %17 = vector.load %arg6[%c0_18, %c0_19, %c0_20] : memref<5x32x32xf32, #tpu.memory_space<vmem>>, vector<1x32x32xf32>
    %18 = vector.shape_cast %17 : vector<1x32x32xf32> to vector<32x32xf32>
    %cst_21 = arith.constant dense<0.000000e+00> : vector<16x32xf32>
    %19 = tpu.matmul %16, %18, %cst_21 {dimension_numbers = #tpu.dot_dimension_numbers<[1], [0], [0], [1], [0, 0, 1, 1], [], []>} : vector<16x32xf32>, vector<32x32xf32>, vector<16x32xf32> -> vector<16x32xf32>
    %20 = vector.broadcast %13 : vector<1x32xf32> to vector<16x32xf32>
    %21 = arith.addf %20, %19 : vector<16x32xf32>
    %c1 = arith.constant 1 : index
    %c0_22 = arith.constant 0 : index
    %c0_23 = arith.constant 0 : index
    %22 = vector.load %arg5[%c1, %c0_22, %c0_23] : memref<5x16x34xf32, #tpu.memory_space<vmem>>, vector<1x16x34xf32>
    %23 = vector.shape_cast %22 : vector<1x16x34xf32> to vector<16x34xf32>
    %cst_24 = arith.constant dense<0.000000e+00> : vector<16x32xf32>
    %24 = tpu.matmul %23, %12, %cst_24 {dimension_numbers = #tpu.dot_dimension_numbers<[1], [0], [0], [1], [0, 0, 1, 1], [], []>} : vector<16x34xf32>, vector<34x32xf32>, vector<16x32xf32> -> vector<16x32xf32>
    %c1_25 = arith.constant 1 : index
    %c0_26 = arith.constant 0 : index
    %c0_27 = arith.constant 0 : index
    %25 = vector.load %arg6[%c1_25, %c0_26, %c0_27] : memref<5x32x32xf32, #tpu.memory_space<vmem>>, vector<1x32x32xf32>
    %26 = vector.shape_cast %25 : vector<1x32x32xf32> to vector<32x32xf32>
    %cst_28 = arith.constant dense<0.000000e+00> : vector<16x32xf32>
    %27 = tpu.matmul %24, %26, %cst_28 {dimension_numbers = #tpu.dot_dimension_numbers<[1], [0], [0], [1], [0, 0, 1, 1], [], []>} : vector<16x32xf32>, vector<32x32xf32>, vector<16x32xf32> -> vector<16x32xf32>
    %28 = arith.addf %21, %27 : vector<16x32xf32>
    %c2 = arith.constant 2 : index
    %c0_29 = arith.constant 0 : index
    %c0_30 = arith.constant 0 : index
    %29 = vector.load %arg5[%c2, %c0_29, %c0_30] : memref<5x16x34xf32, #tpu.memory_space<vmem>>, vector<1x16x34xf32>
    %30 = vector.shape_cast %29 : vector<1x16x34xf32> to vector<16x34xf32>
    %cst_31 = arith.constant dense<0.000000e+00> : vector<16x32xf32>
    %31 = tpu.matmul %30, %12, %cst_31 {dimension_numbers = #tpu.dot_dimension_numbers<[1], [0], [0], [1], [0, 0, 1, 1], [], []>} : vector<16x34xf32>, vector<34x32xf32>, vector<16x32xf32> -> vector<16x32xf32>
    %c2_32 = arith.constant 2 : index
    %c0_33 = arith.constant 0 : index
    %c0_34 = arith.constant 0 : index
    %32 = vector.load %arg6[%c2_32, %c0_33, %c0_34] : memref<5x32x32xf32, #tpu.memory_space<vmem>>, vector<1x32x32xf32>
    %33 = vector.shape_cast %32 : vector<1x32x32xf32> to vector<32x32xf32>
    %cst_35 = arith.constant dense<0.000000e+00> : vector<16x32xf32>
    %34 = tpu.matmul %31, %33, %cst_35 {dimension_numbers = #tpu.dot_dimension_numbers<[1], [0], [0], [1], [0, 0, 1, 1], [], []>} : vector<16x32xf32>, vector<32x32xf32>, vector<16x32xf32> -> vector<16x32xf32>
    %35 = arith.addf %28, %34 : vector<16x32xf32>
    %c3 = arith.constant 3 : index
    %c0_36 = arith.constant 0 : index
    %c0_37 = arith.constant 0 : index
    %36 = vector.load %arg5[%c3, %c0_36, %c0_37] : memref<5x16x34xf32, #tpu.memory_space<vmem>>, vector<1x16x34xf32>
    %37 = vector.shape_cast %36 : vector<1x16x34xf32> to vector<16x34xf32>
    %cst_38 = arith.constant dense<0.000000e+00> : vector<16x32xf32>
    %38 = tpu.matmul %37, %12, %cst_38 {dimension_numbers = #tpu.dot_dimension_numbers<[1], [0], [0], [1], [0, 0, 1, 1], [], []>} : vector<16x34xf32>, vector<34x32xf32>, vector<16x32xf32> -> vector<16x32xf32>
    %c3_39 = arith.constant 3 : index
    %c0_40 = arith.constant 0 : index
    %c0_41 = arith.constant 0 : index
    %39 = vector.load %arg6[%c3_39, %c0_40, %c0_41] : memref<5x32x32xf32, #tpu.memory_space<vmem>>, vector<1x32x32xf32>
    %40 = vector.shape_cast %39 : vector<1x32x32xf32> to vector<32x32xf32>
    %cst_42 = arith.constant dense<0.000000e+00> : vector<16x32xf32>
    %41 = tpu.matmul %38, %40, %cst_42 {dimension_numbers = #tpu.dot_dimension_numbers<[1], [0], [0], [1], [0, 0, 1, 1], [], []>} : vector<16x32xf32>, vector<32x32xf32>, vector<16x32xf32> -> vector<16x32xf32>
    %42 = arith.addf %35, %41 : vector<16x32xf32>
    %c4 = arith.constant 4 : index
    %c0_43 = arith.constant 0 : index
    %c0_44 = arith.constant 0 : index
    %43 = vector.load %arg5[%c4, %c0_43, %c0_44] : memref<5x16x34xf32, #tpu.memory_space<vmem>>, vector<1x16x34xf32>
    %44 = vector.shape_cast %43 : vector<1x16x34xf32> to vector<16x34xf32>
    %cst_45 = arith.constant dense<0.000000e+00> : vector<16x32xf32>
    %45 = tpu.matmul %44, %12, %cst_45 {dimension_numbers = #tpu.dot_dimension_numbers<[1], [0], [0], [1], [0, 0, 1, 1], [], []>} : vector<16x34xf32>, vector<34x32xf32>, vector<16x32xf32> -> vector<16x32xf32>
    %c4_46 = arith.constant 4 : index
    %c0_47 = arith.constant 0 : index
    %c0_48 = arith.constant 0 : index
    %46 = vector.load %arg6[%c4_46, %c0_47, %c0_48] : memref<5x32x32xf32, #tpu.memory_space<vmem>>, vector<1x32x32xf32>
    %47 = vector.shape_cast %46 : vector<1x32x32xf32> to vector<32x32xf32>
    %cst_49 = arith.constant dense<0.000000e+00> : vector<16x32xf32>
    %48 = tpu.matmul %45, %47, %cst_49 {dimension_numbers = #tpu.dot_dimension_numbers<[1], [0], [0], [1], [0, 0, 1, 1], [], []>} : vector<16x32xf32>, vector<32x32xf32>, vector<16x32xf32> -> vector<16x32xf32>
    %49 = arith.addf %42, %48 : vector<16x32xf32>
    %cst_50 = arith.constant 0.000000e+00 : f32
    %50 = vector.broadcast %cst_50 : f32 to vector<16x32xf32>
    %51 = arith.maximumf %49, %50 : vector<16x32xf32>
    %c0_51 = arith.constant 0 : index
    %c0_52 = arith.constant 0 : index
    %52 = vector.load %arg8[%c0_51, %c0_52] : memref<8x16xf32, #tpu.memory_space<vmem>>, vector<8x16xf32>
    %cst_53 = arith.constant dense<0.000000e+00> : vector<8x32xf32>
    %53 = tpu.matmul %52, %51, %cst_53 {dimension_numbers = #tpu.dot_dimension_numbers<[1], [0], [0], [1], [0, 0, 1, 1], [], []>} : vector<8x16xf32>, vector<16x32xf32>, vector<8x32xf32> -> vector<8x32xf32>
    %c0_54 = arith.constant 0 : index
    %c0_55 = arith.constant 0 : index
    %54 = vector.load %arg9[%c0_54, %c0_55] : memref<8x16xf32, #tpu.memory_space<vmem>>, vector<8x16xf32>
    %cst_56 = arith.constant dense<0.000000e+00> : vector<8x32xf32>
    %55 = tpu.matmul %54, %51, %cst_56 {dimension_numbers = #tpu.dot_dimension_numbers<[1], [0], [0], [1], [0, 0, 1, 1], [], []>} : vector<8x16xf32>, vector<16x32xf32>, vector<8x32xf32> -> vector<8x32xf32>
    %56 = arith.addf %53, %55 : vector<8x32xf32>
    %cst_57 = arith.constant 5.000000e-01 : f32
    %57 = vector.broadcast %cst_57 : f32 to vector<8x32xf32>
    %58 = arith.mulf %57, %56 : vector<8x32xf32>
    %59 = arith.subf %53, %58 : vector<8x32xf32>
    %60 = arith.mulf %59, %59 : vector<8x32xf32>
    %61 = arith.subf %55, %58 : vector<8x32xf32>
    %62 = arith.mulf %61, %61 : vector<8x32xf32>
    %63 = arith.addf %60, %62 : vector<8x32xf32>
    %cst_58 = arith.constant 5.000000e-01 : f32
    %64 = vector.broadcast %cst_58 : f32 to vector<8x32xf32>
    %65 = arith.mulf %64, %63 : vector<8x32xf32>
    %cst_59 = arith.constant 9.99999974E-6 : f32
    %66 = vector.broadcast %cst_59 : f32 to vector<8x32xf32>
    %67 = arith.addf %65, %66 : vector<8x32xf32>
    %68 = math.rsqrt %67 : vector<8x32xf32>
    %69 = arith.subf %53, %58 : vector<8x32xf32>
    %70 = arith.mulf %69, %68 : vector<8x32xf32>
    %71 = arith.subf %55, %58 : vector<8x32xf32>
    %72 = arith.mulf %71, %68 : vector<8x32xf32>
    %73 = arith.maximumf %70, %72 : vector<8x32xf32>
    %c0_60 = arith.constant 0 : index
    %c0_61 = arith.constant 0 : index
    %74 = vector.load %arg10[%c0_60, %c0_61] : memref<8x32xf32, #tpu.memory_space<vmem>>, vector<8x32xf32>
    %75 = arith.addf %73, %74 : vector<8x32xf32>
    %c0_62 = arith.constant 0 : index
    %c0_63 = arith.constant 0 : index
    %76 = vector.load %arg11[%c0_62, %c0_63] : memref<64x32xf32, #tpu.memory_space<vmem>>, vector<64x32xf32>
    %c0_64 = arith.constant 0 : index
    %c0_65 = arith.constant 0 : index
    %77 = vector.load %arg12[%c0_64, %c0_65] : memref<8x64xf32, #tpu.memory_space<vmem>>, vector<8x64xf32>
    %c0_66 = arith.constant 0 : index
    %c0_67 = arith.constant 0 : index
    %78 = vector.load %arg13[%c0_66, %c0_67] : memref<32x32xf32, #tpu.memory_space<vmem>>, vector<32x32xf32>
    %c0_68 = arith.constant 0 : index
    %c0_69 = arith.constant 0 : index
    %79 = vector.load %arg14[%c0_68, %c0_69] : memref<1x32xf32, #tpu.memory_space<vmem>>, vector<1x32xf32>
    %c0_70 = arith.constant 0 : index
    %c0_71 = arith.constant 0 : index
    %80 = vector.load %arg15[%c0_70, %c0_71] : memref<32x32xf32, #tpu.memory_space<vmem>>, vector<32x32xf32>
    %c0_72 = arith.constant 0 : index
    %c0_73 = arith.constant 0 : index
    %81 = vector.load %arg16[%c0_72, %c0_73] : memref<1x32xf32, #tpu.memory_space<vmem>>, vector<1x32xf32>
    %c0_74 = arith.constant 0 : index
    %c0_75 = arith.constant 0 : index
    %82 = vector.load %arg17[%c0_74, %c0_75] : memref<32x32xf32, #tpu.memory_space<vmem>>, vector<32x32xf32>
    %c0_76 = arith.constant 0 : index
    %c0_77 = arith.constant 0 : index
    %83 = vector.load %arg18[%c0_76, %c0_77] : memref<1x32xf32, #tpu.memory_space<vmem>>, vector<1x32xf32>
    %c0_78 = arith.constant 0 : index
    %c0_79 = arith.constant 0 : index
    %84 = vector.load %arg19[%c0_78, %c0_79] : memref<32x32xf32, #tpu.memory_space<vmem>>, vector<32x32xf32>
    %c0_80 = arith.constant 0 : index
    %c0_81 = arith.constant 0 : index
    %85 = vector.load %arg20[%c0_80, %c0_81] : memref<1x32xf32, #tpu.memory_space<vmem>>, vector<1x32xf32>
    %c0_82 = arith.constant 0 : index
    %c0_83 = arith.constant 0 : index
    %86 = vector.load %arg21[%c0_82, %c0_83] : memref<1x32xf32, #tpu.memory_space<vmem>>, vector<1x32xf32>
    %c0_84 = arith.constant 0 : index
    %c0_85 = arith.constant 0 : index
    %87 = vector.load %arg22[%c0_84, %c0_85] : memref<1x32xf32, #tpu.memory_space<vmem>>, vector<1x32xf32>
    %c0_86 = arith.constant 0 : index
    %c0_87 = arith.constant 0 : index
    %88 = vector.load %arg23[%c0_86, %c0_87] : memref<32x64xf32, #tpu.memory_space<vmem>>, vector<32x64xf32>
    %c0_88 = arith.constant 0 : index
    %c0_89 = arith.constant 0 : index
    %89 = vector.load %arg24[%c0_88, %c0_89] : memref<1x64xf32, #tpu.memory_space<vmem>>, vector<1x64xf32>
    %c0_90 = arith.constant 0 : index
    %c0_91 = arith.constant 0 : index
    %90 = vector.load %arg25[%c0_90, %c0_91] : memref<64x32xf32, #tpu.memory_space<vmem>>, vector<64x32xf32>
    %c0_92 = arith.constant 0 : index
    %c0_93 = arith.constant 0 : index
    %91 = vector.load %arg26[%c0_92, %c0_93] : memref<1x32xf32, #tpu.memory_space<vmem>>, vector<1x32xf32>
    %c0_94 = arith.constant 0 : index
    %c0_95 = arith.constant 0 : index
    %92 = vector.load %arg27[%c0_94, %c0_95] : memref<1x32xf32, #tpu.memory_space<vmem>>, vector<1x32xf32>
    %c0_96 = arith.constant 0 : index
    %c0_97 = arith.constant 0 : index
    %93 = vector.load %arg28[%c0_96, %c0_97] : memref<1x32xf32, #tpu.memory_space<vmem>>, vector<1x32xf32>
    %cst_98 = arith.constant dense<0.000000e+00> : vector<8x32xf32>
    %94 = tpu.matmul %75, %78, %cst_98 {dimension_numbers = #tpu.dot_dimension_numbers<[1], [0], [0], [1], [0, 0, 1, 1], [], []>} : vector<8x32xf32>, vector<32x32xf32>, vector<8x32xf32> -> vector<8x32xf32>
    %95 = vector.broadcast %79 : vector<1x32xf32> to vector<8x32xf32>
    %96 = arith.addf %94, %95 : vector<8x32xf32>
    %cst_99 = arith.constant dense<0.000000e+00> : vector<8x32xf32>
    %97 = tpu.matmul %75, %80, %cst_99 {dimension_numbers = #tpu.dot_dimension_numbers<[1], [0], [0], [1], [0, 0, 1, 1], [], []>} : vector<8x32xf32>, vector<32x32xf32>, vector<8x32xf32> -> vector<8x32xf32>
    %98 = vector.broadcast %81 : vector<1x32xf32> to vector<8x32xf32>
    %99 = arith.addf %97, %98 : vector<8x32xf32>
    %cst_100 = arith.constant dense<0.000000e+00> : vector<8x32xf32>
    %100 = tpu.matmul %75, %82, %cst_100 {dimension_numbers = #tpu.dot_dimension_numbers<[1], [0], [0], [1], [0, 0, 1, 1], [], []>} : vector<8x32xf32>, vector<32x32xf32>, vector<8x32xf32> -> vector<8x32xf32>
    %101 = vector.broadcast %83 : vector<1x32xf32> to vector<8x32xf32>
    %102 = arith.addf %100, %101 : vector<8x32xf32>
    %103 = tpu.concatenate %96, %96, %96, %96, %96, %96, %96, %96 in 0 : vector<8x32xf32>, vector<8x32xf32>, vector<8x32xf32>, vector<8x32xf32>, vector<8x32xf32>, vector<8x32xf32>, vector<8x32xf32>, vector<8x32xf32> -> vector<64x32xf32>
    %104 = arith.mulf %103, %76 : vector<64x32xf32>
    %cst_101 = arith.constant dense<0.000000e+00> : vector<64x8xf32>
    %105 = tpu.matmul %104, %99, %cst_101 {dimension_numbers = #tpu.dot_dimension_numbers<[1], [1], [0], [0], [0, 0, 1, 0], [], []>} : vector<64x32xf32>, vector<8x32xf32>, vector<64x8xf32> -> vector<64x8xf32>
    %cst_102 = arith.constant 5.000000e-01 : f32
    %106 = vector.broadcast %cst_102 : f32 to vector<64x8xf32>
    %107 = arith.mulf %105, %106 : vector<64x8xf32>
    %cst_103 = arith.constant dense<0xFF800000> : vector<64xf32>
    %108 = vector.multi_reduction <maximumf>, %107, %cst_103 [1] : vector<64x8xf32> to vector<64xf32>
    %109 = vector.shape_cast %108 : vector<64xf32> to vector<64x1xf32>
    %110 = vector.broadcast %109 : vector<64x1xf32> to vector<64x8xf32>
    %111 = arith.subf %107, %110 : vector<64x8xf32>
    %112 = math.exp %111 : vector<64x8xf32>
    %cst_104 = arith.constant dense<0.000000e+00> : vector<64xf32>
    %113 = vector.multi_reduction <add>, %112, %cst_104 [1] : vector<64x8xf32> to vector<64xf32>
    %114 = vector.shape_cast %113 : vector<64xf32> to vector<64x1xf32>
    %115 = vector.broadcast %114 : vector<64x1xf32> to vector<64x8xf32>
    %116 = arith.divf %112, %115 : vector<64x8xf32>
    %cst_105 = arith.constant dense<0.000000e+00> : vector<64x32xf32>
    %117 = tpu.matmul %116, %102, %cst_105 {dimension_numbers = #tpu.dot_dimension_numbers<[1], [0], [0], [1], [0, 0, 1, 1], [], []>} : vector<64x8xf32>, vector<8x32xf32>, vector<64x32xf32> -> vector<64x32xf32>
    %118 = arith.mulf %117, %76 : vector<64x32xf32>
    %cst_106 = arith.constant dense<0.000000e+00> : vector<8x32xf32>
    %119 = tpu.matmul %77, %118, %cst_106 {dimension_numbers = #tpu.dot_dimension_numbers<[1], [0], [0], [1], [0, 0, 1, 1], [], []>} : vector<8x64xf32>, vector<64x32xf32>, vector<8x32xf32> -> vector<8x32xf32>
    %cst_107 = arith.constant dense<0.000000e+00> : vector<8x32xf32>
    %120 = tpu.matmul %119, %84, %cst_107 {dimension_numbers = #tpu.dot_dimension_numbers<[1], [0], [0], [1], [0, 0, 1, 1], [], []>} : vector<8x32xf32>, vector<32x32xf32>, vector<8x32xf32> -> vector<8x32xf32>
    %121 = vector.broadcast %85 : vector<1x32xf32> to vector<8x32xf32>
    %122 = arith.addf %120, %121 : vector<8x32xf32>
    %123 = arith.addf %75, %122 : vector<8x32xf32>
    %cst_108 = arith.constant dense<0.000000e+00> : vector<8xf32>
    %124 = vector.multi_reduction <add>, %123, %cst_108 [1] : vector<8x32xf32> to vector<8xf32>
    %125 = vector.shape_cast %124 : vector<8xf32> to vector<8x1xf32>
    %cst_109 = arith.constant 3.200000e+01 : f32
    %126 = vector.broadcast %cst_109 : f32 to vector<8x1xf32>
    %127 = arith.divf %125, %126 : vector<8x1xf32>
    %128 = vector.broadcast %127 : vector<8x1xf32> to vector<8x32xf32>
    %129 = arith.subf %123, %128 : vector<8x32xf32>
    %130 = arith.mulf %129, %129 : vector<8x32xf32>
    %cst_110 = arith.constant dense<0.000000e+00> : vector<8xf32>
    %131 = vector.multi_reduction <add>, %130, %cst_110 [1] : vector<8x32xf32> to vector<8xf32>
    %132 = vector.shape_cast %131 : vector<8xf32> to vector<8x1xf32>
    %cst_111 = arith.constant 3.200000e+01 : f32
    %133 = vector.broadcast %cst_111 : f32 to vector<8x1xf32>
    %134 = arith.divf %132, %133 : vector<8x1xf32>
    %135 = vector.broadcast %127 : vector<8x1xf32> to vector<8x32xf32>
    %136 = arith.subf %123, %135 : vector<8x32xf32>
    %cst_112 = arith.constant 9.99999974E-6 : f32
    %137 = vector.broadcast %cst_112 : f32 to vector<8x1xf32>
    %138 = arith.addf %134, %137 : vector<8x1xf32>
    %139 = math.rsqrt %138 : vector<8x1xf32>
    %140 = vector.broadcast %139 : vector<8x1xf32> to vector<8x32xf32>
    %141 = arith.mulf %136, %140 : vector<8x32xf32>
    %142 = vector.broadcast %86 : vector<1x32xf32> to vector<8x32xf32>
    %143 = arith.mulf %141, %142 : vector<8x32xf32>
    %144 = vector.broadcast %87 : vector<1x32xf32> to vector<8x32xf32>
    %145 = arith.addf %143, %144 : vector<8x32xf32>
    %cst_113 = arith.constant dense<0.000000e+00> : vector<8x64xf32>
    %146 = tpu.matmul %145, %88, %cst_113 {dimension_numbers = #tpu.dot_dimension_numbers<[1], [0], [0], [1], [0, 0, 1, 1], [], []>} : vector<8x32xf32>, vector<32x64xf32>, vector<8x64xf32> -> vector<8x64xf32>
    %147 = vector.broadcast %89 : vector<1x64xf32> to vector<8x64xf32>
    %148 = arith.addf %146, %147 : vector<8x64xf32>
    %cst_114 = arith.constant 0.000000e+00 : f32
    %149 = vector.broadcast %cst_114 : f32 to vector<8x64xf32>
    %150 = arith.maximumf %148, %149 : vector<8x64xf32>
    %cst_115 = arith.constant dense<0.000000e+00> : vector<8x32xf32>
    %151 = tpu.matmul %150, %90, %cst_115 {dimension_numbers = #tpu.dot_dimension_numbers<[1], [0], [0], [1], [0, 0, 1, 1], [], []>} : vector<8x64xf32>, vector<64x32xf32>, vector<8x32xf32> -> vector<8x32xf32>
    %152 = vector.broadcast %91 : vector<1x32xf32> to vector<8x32xf32>
    %153 = arith.addf %151, %152 : vector<8x32xf32>
    %154 = arith.addf %145, %153 : vector<8x32xf32>
    %cst_116 = arith.constant dense<0.000000e+00> : vector<8xf32>
    %155 = vector.multi_reduction <add>, %154, %cst_116 [1] : vector<8x32xf32> to vector<8xf32>
    %156 = vector.shape_cast %155 : vector<8xf32> to vector<8x1xf32>
    %cst_117 = arith.constant 3.200000e+01 : f32
    %157 = vector.broadcast %cst_117 : f32 to vector<8x1xf32>
    %158 = arith.divf %156, %157 : vector<8x1xf32>
    %159 = vector.broadcast %158 : vector<8x1xf32> to vector<8x32xf32>
    %160 = arith.subf %154, %159 : vector<8x32xf32>
    %161 = arith.mulf %160, %160 : vector<8x32xf32>
    %cst_118 = arith.constant dense<0.000000e+00> : vector<8xf32>
    %162 = vector.multi_reduction <add>, %161, %cst_118 [1] : vector<8x32xf32> to vector<8xf32>
    %163 = vector.shape_cast %162 : vector<8xf32> to vector<8x1xf32>
    %cst_119 = arith.constant 3.200000e+01 : f32
    %164 = vector.broadcast %cst_119 : f32 to vector<8x1xf32>
    %165 = arith.divf %163, %164 : vector<8x1xf32>
    %166 = vector.broadcast %158 : vector<8x1xf32> to vector<8x32xf32>
    %167 = arith.subf %154, %166 : vector<8x32xf32>
    %cst_120 = arith.constant 9.99999974E-6 : f32
    %168 = vector.broadcast %cst_120 : f32 to vector<8x1xf32>
    %169 = arith.addf %165, %168 : vector<8x1xf32>
    %170 = math.rsqrt %169 : vector<8x1xf32>
    %171 = vector.broadcast %170 : vector<8x1xf32> to vector<8x32xf32>
    %172 = arith.mulf %167, %171 : vector<8x32xf32>
    %173 = vector.broadcast %92 : vector<1x32xf32> to vector<8x32xf32>
    %174 = arith.mulf %172, %173 : vector<8x32xf32>
    %175 = vector.broadcast %93 : vector<1x32xf32> to vector<8x32xf32>
    %176 = arith.addf %174, %175 : vector<8x32xf32>
    %c0_121 = arith.constant 0 : index
    %c0_122 = arith.constant 0 : index
    %177 = vector.load %arg29[%c0_121, %c0_122] : memref<32x32xf32, #tpu.memory_space<vmem>>, vector<32x32xf32>
    %c0_123 = arith.constant 0 : index
    %c0_124 = arith.constant 0 : index
    %178 = vector.load %arg30[%c0_123, %c0_124] : memref<1x32xf32, #tpu.memory_space<vmem>>, vector<1x32xf32>
    %c0_125 = arith.constant 0 : index
    %c0_126 = arith.constant 0 : index
    %179 = vector.load %arg31[%c0_125, %c0_126] : memref<32x32xf32, #tpu.memory_space<vmem>>, vector<32x32xf32>
    %c0_127 = arith.constant 0 : index
    %c0_128 = arith.constant 0 : index
    %180 = vector.load %arg32[%c0_127, %c0_128] : memref<1x32xf32, #tpu.memory_space<vmem>>, vector<1x32xf32>
    %c0_129 = arith.constant 0 : index
    %c0_130 = arith.constant 0 : index
    %181 = vector.load %arg33[%c0_129, %c0_130] : memref<32x32xf32, #tpu.memory_space<vmem>>, vector<32x32xf32>
    %c0_131 = arith.constant 0 : index
    %c0_132 = arith.constant 0 : index
    %182 = vector.load %arg34[%c0_131, %c0_132] : memref<1x32xf32, #tpu.memory_space<vmem>>, vector<1x32xf32>
    %c0_133 = arith.constant 0 : index
    %c0_134 = arith.constant 0 : index
    %183 = vector.load %arg35[%c0_133, %c0_134] : memref<32x32xf32, #tpu.memory_space<vmem>>, vector<32x32xf32>
    %c0_135 = arith.constant 0 : index
    %c0_136 = arith.constant 0 : index
    %184 = vector.load %arg36[%c0_135, %c0_136] : memref<1x32xf32, #tpu.memory_space<vmem>>, vector<1x32xf32>
    %c0_137 = arith.constant 0 : index
    %c0_138 = arith.constant 0 : index
    %185 = vector.load %arg37[%c0_137, %c0_138] : memref<1x32xf32, #tpu.memory_space<vmem>>, vector<1x32xf32>
    %c0_139 = arith.constant 0 : index
    %c0_140 = arith.constant 0 : index
    %186 = vector.load %arg38[%c0_139, %c0_140] : memref<1x32xf32, #tpu.memory_space<vmem>>, vector<1x32xf32>
    %c0_141 = arith.constant 0 : index
    %c0_142 = arith.constant 0 : index
    %187 = vector.load %arg39[%c0_141, %c0_142] : memref<32x64xf32, #tpu.memory_space<vmem>>, vector<32x64xf32>
    %c0_143 = arith.constant 0 : index
    %c0_144 = arith.constant 0 : index
    %188 = vector.load %arg40[%c0_143, %c0_144] : memref<1x64xf32, #tpu.memory_space<vmem>>, vector<1x64xf32>
    %c0_145 = arith.constant 0 : index
    %c0_146 = arith.constant 0 : index
    %189 = vector.load %arg41[%c0_145, %c0_146] : memref<64x32xf32, #tpu.memory_space<vmem>>, vector<64x32xf32>
    %c0_147 = arith.constant 0 : index
    %c0_148 = arith.constant 0 : index
    %190 = vector.load %arg42[%c0_147, %c0_148] : memref<1x32xf32, #tpu.memory_space<vmem>>, vector<1x32xf32>
    %c0_149 = arith.constant 0 : index
    %c0_150 = arith.constant 0 : index
    %191 = vector.load %arg43[%c0_149, %c0_150] : memref<1x32xf32, #tpu.memory_space<vmem>>, vector<1x32xf32>
    %c0_151 = arith.constant 0 : index
    %c0_152 = arith.constant 0 : index
    %192 = vector.load %arg44[%c0_151, %c0_152] : memref<1x32xf32, #tpu.memory_space<vmem>>, vector<1x32xf32>
    %cst_153 = arith.constant dense<0.000000e+00> : vector<8x32xf32>
    %193 = tpu.matmul %176, %177, %cst_153 {dimension_numbers = #tpu.dot_dimension_numbers<[1], [0], [0], [1], [0, 0, 1, 1], [], []>} : vector<8x32xf32>, vector<32x32xf32>, vector<8x32xf32> -> vector<8x32xf32>
    %194 = vector.broadcast %178 : vector<1x32xf32> to vector<8x32xf32>
    %195 = arith.addf %193, %194 : vector<8x32xf32>
    %cst_154 = arith.constant dense<0.000000e+00> : vector<8x32xf32>
    %196 = tpu.matmul %176, %179, %cst_154 {dimension_numbers = #tpu.dot_dimension_numbers<[1], [0], [0], [1], [0, 0, 1, 1], [], []>} : vector<8x32xf32>, vector<32x32xf32>, vector<8x32xf32> -> vector<8x32xf32>
    %197 = vector.broadcast %180 : vector<1x32xf32> to vector<8x32xf32>
    %198 = arith.addf %196, %197 : vector<8x32xf32>
    %cst_155 = arith.constant dense<0.000000e+00> : vector<8x32xf32>
    %199 = tpu.matmul %176, %181, %cst_155 {dimension_numbers = #tpu.dot_dimension_numbers<[1], [0], [0], [1], [0, 0, 1, 1], [], []>} : vector<8x32xf32>, vector<32x32xf32>, vector<8x32xf32> -> vector<8x32xf32>
    %200 = vector.broadcast %182 : vector<1x32xf32> to vector<8x32xf32>
    %201 = arith.addf %199, %200 : vector<8x32xf32>
    %202 = tpu.concatenate %195, %195, %195, %195, %195, %195, %195, %195 in 0 : vector<8x32xf32>, vector<8x32xf32>, vector<8x32xf32>, vector<8x32xf32>, vector<8x32xf32>, vector<8x32xf32>, vector<8x32xf32>, vector<8x32xf32> -> vector<64x32xf32>
    %203 = arith.mulf %202, %76 : vector<64x32xf32>
    %cst_156 = arith.constant dense<0.000000e+00> : vector<64x8xf32>
    %204 = tpu.matmul %203, %198, %cst_156 {dimension_numbers = #tpu.dot_dimension_numbers<[1], [1], [0], [0], [0, 0, 1, 0], [], []>} : vector<64x32xf32>, vector<8x32xf32>, vector<64x8xf32> -> vector<64x8xf32>
    %cst_157 = arith.constant 5.000000e-01 : f32
    %205 = vector.broadcast %cst_157 : f32 to vector<64x8xf32>
    %206 = arith.mulf %204, %205 : vector<64x8xf32>
    %cst_158 = arith.constant dense<0xFF800000> : vector<64xf32>
    %207 = vector.multi_reduction <maximumf>, %206, %cst_158 [1] : vector<64x8xf32> to vector<64xf32>
    %208 = vector.shape_cast %207 : vector<64xf32> to vector<64x1xf32>
    %209 = vector.broadcast %208 : vector<64x1xf32> to vector<64x8xf32>
    %210 = arith.subf %206, %209 : vector<64x8xf32>
    %211 = math.exp %210 : vector<64x8xf32>
    %cst_159 = arith.constant dense<0.000000e+00> : vector<64xf32>
    %212 = vector.multi_reduction <add>, %211, %cst_159 [1] : vector<64x8xf32> to vector<64xf32>
    %213 = vector.shape_cast %212 : vector<64xf32> to vector<64x1xf32>
    %214 = vector.broadcast %213 : vector<64x1xf32> to vector<64x8xf32>
    %215 = arith.divf %211, %214 : vector<64x8xf32>
    %cst_160 = arith.constant dense<0.000000e+00> : vector<64x32xf32>
    %216 = tpu.matmul %215, %201, %cst_160 {dimension_numbers = #tpu.dot_dimension_numbers<[1], [0], [0], [1], [0, 0, 1, 1], [], []>} : vector<64x8xf32>, vector<8x32xf32>, vector<64x32xf32> -> vector<64x32xf32>
    %217 = arith.mulf %216, %76 : vector<64x32xf32>
    %cst_161 = arith.constant dense<0.000000e+00> : vector<8x32xf32>
    %218 = tpu.matmul %77, %217, %cst_161 {dimension_numbers = #tpu.dot_dimension_numbers<[1], [0], [0], [1], [0, 0, 1, 1], [], []>} : vector<8x64xf32>, vector<64x32xf32>, vector<8x32xf32> -> vector<8x32xf32>
    %cst_162 = arith.constant dense<0.000000e+00> : vector<8x32xf32>
    %219 = tpu.matmul %218, %183, %cst_162 {dimension_numbers = #tpu.dot_dimension_numbers<[1], [0], [0], [1], [0, 0, 1, 1], [], []>} : vector<8x32xf32>, vector<32x32xf32>, vector<8x32xf32> -> vector<8x32xf32>
    %220 = vector.broadcast %184 : vector<1x32xf32> to vector<8x32xf32>
    %221 = arith.addf %219, %220 : vector<8x32xf32>
    %222 = arith.addf %176, %221 : vector<8x32xf32>
    %cst_163 = arith.constant dense<0.000000e+00> : vector<8xf32>
    %223 = vector.multi_reduction <add>, %222, %cst_163 [1] : vector<8x32xf32> to vector<8xf32>
    %224 = vector.shape_cast %223 : vector<8xf32> to vector<8x1xf32>
    %cst_164 = arith.constant 3.200000e+01 : f32
    %225 = vector.broadcast %cst_164 : f32 to vector<8x1xf32>
    %226 = arith.divf %224, %225 : vector<8x1xf32>
    %227 = vector.broadcast %226 : vector<8x1xf32> to vector<8x32xf32>
    %228 = arith.subf %222, %227 : vector<8x32xf32>
    %229 = arith.mulf %228, %228 : vector<8x32xf32>
    %cst_165 = arith.constant dense<0.000000e+00> : vector<8xf32>
    %230 = vector.multi_reduction <add>, %229, %cst_165 [1] : vector<8x32xf32> to vector<8xf32>
    %231 = vector.shape_cast %230 : vector<8xf32> to vector<8x1xf32>
    %cst_166 = arith.constant 3.200000e+01 : f32
    %232 = vector.broadcast %cst_166 : f32 to vector<8x1xf32>
    %233 = arith.divf %231, %232 : vector<8x1xf32>
    %234 = vector.broadcast %226 : vector<8x1xf32> to vector<8x32xf32>
    %235 = arith.subf %222, %234 : vector<8x32xf32>
    %cst_167 = arith.constant 9.99999974E-6 : f32
    %236 = vector.broadcast %cst_167 : f32 to vector<8x1xf32>
    %237 = arith.addf %233, %236 : vector<8x1xf32>
    %238 = math.rsqrt %237 : vector<8x1xf32>
    %239 = vector.broadcast %238 : vector<8x1xf32> to vector<8x32xf32>
    %240 = arith.mulf %235, %239 : vector<8x32xf32>
    %241 = vector.broadcast %185 : vector<1x32xf32> to vector<8x32xf32>
    %242 = arith.mulf %240, %241 : vector<8x32xf32>
    %243 = vector.broadcast %186 : vector<1x32xf32> to vector<8x32xf32>
    %244 = arith.addf %242, %243 : vector<8x32xf32>
    %cst_168 = arith.constant dense<0.000000e+00> : vector<8x64xf32>
    %245 = tpu.matmul %244, %187, %cst_168 {dimension_numbers = #tpu.dot_dimension_numbers<[1], [0], [0], [1], [0, 0, 1, 1], [], []>} : vector<8x32xf32>, vector<32x64xf32>, vector<8x64xf32> -> vector<8x64xf32>
    %246 = vector.broadcast %188 : vector<1x64xf32> to vector<8x64xf32>
    %247 = arith.addf %245, %246 : vector<8x64xf32>
    %cst_169 = arith.constant 0.000000e+00 : f32
    %248 = vector.broadcast %cst_169 : f32 to vector<8x64xf32>
    %249 = arith.maximumf %247, %248 : vector<8x64xf32>
    %cst_170 = arith.constant dense<0.000000e+00> : vector<8x32xf32>
    %250 = tpu.matmul %249, %189, %cst_170 {dimension_numbers = #tpu.dot_dimension_numbers<[1], [0], [0], [1], [0, 0, 1, 1], [], []>} : vector<8x64xf32>, vector<64x32xf32>, vector<8x32xf32> -> vector<8x32xf32>
    %251 = vector.broadcast %190 : vector<1x32xf32> to vector<8x32xf32>
    %252 = arith.addf %250, %251 : vector<8x32xf32>
    %253 = arith.addf %244, %252 : vector<8x32xf32>
    %cst_171 = arith.constant dense<0.000000e+00> : vector<8xf32>
    %254 = vector.multi_reduction <add>, %253, %cst_171 [1] : vector<8x32xf32> to vector<8xf32>
    %255 = vector.shape_cast %254 : vector<8xf32> to vector<8x1xf32>
    %cst_172 = arith.constant 3.200000e+01 : f32
    %256 = vector.broadcast %cst_172 : f32 to vector<8x1xf32>
    %257 = arith.divf %255, %256 : vector<8x1xf32>
    %258 = vector.broadcast %257 : vector<8x1xf32> to vector<8x32xf32>
    %259 = arith.subf %253, %258 : vector<8x32xf32>
    %260 = arith.mulf %259, %259 : vector<8x32xf32>
    %cst_173 = arith.constant dense<0.000000e+00> : vector<8xf32>
    %261 = vector.multi_reduction <add>, %260, %cst_173 [1] : vector<8x32xf32> to vector<8xf32>
    %262 = vector.shape_cast %261 : vector<8xf32> to vector<8x1xf32>
    %cst_174 = arith.constant 3.200000e+01 : f32
    %263 = vector.broadcast %cst_174 : f32 to vector<8x1xf32>
    %264 = arith.divf %262, %263 : vector<8x1xf32>
    %265 = vector.broadcast %257 : vector<8x1xf32> to vector<8x32xf32>
    %266 = arith.subf %253, %265 : vector<8x32xf32>
    %cst_175 = arith.constant 9.99999974E-6 : f32
    %267 = vector.broadcast %cst_175 : f32 to vector<8x1xf32>
    %268 = arith.addf %264, %267 : vector<8x1xf32>
    %269 = math.rsqrt %268 : vector<8x1xf32>
    %270 = vector.broadcast %269 : vector<8x1xf32> to vector<8x32xf32>
    %271 = arith.mulf %266, %270 : vector<8x32xf32>
    %272 = vector.broadcast %191 : vector<1x32xf32> to vector<8x32xf32>
    %273 = arith.mulf %271, %272 : vector<8x32xf32>
    %274 = vector.broadcast %192 : vector<1x32xf32> to vector<8x32xf32>
    %275 = arith.addf %273, %274 : vector<8x32xf32>
    %c0_176 = arith.constant 0 : index
    %c0_177 = arith.constant 0 : index
    %276 = vector.load %arg45[%c0_176, %c0_177] : memref<8x32xf32, #tpu.memory_space<vmem>>, vector<8x32xf32>
    tpu.vector_store %arg45[%c0_176, %c0_177], %275 {strides = array<i32>} : memref<8x32xf32, #tpu.memory_space<vmem>>, vector<8x32xf32>,
    return
  }
}

</mosaic_0001>

<llo_original>
// kernel: eq.53
$region0: #{eq.53}
  %s0 = inlined_call_operand.vmem [shape: s32[8,8], index: 0, kind: input, shape index: {}]
  %s1 = inlined_call_operand.vmem [shape: s32[64], index: 1, kind: output, shape index: {}]
  $region1: #{eq.53} parent=0
    #allocation0 [shape = 'u8[4096]{0}', space=vmem, size = 0x1000, scoped, tag = 'scoped mem for output reshape']
    %v2 = vld [vmem:[%s0] sm:$0x1]
    %vm3 = vcmask 64512
    %4 = vst.msk [vmem:[#allocation0] sm:$0x1] %vm3, %v2
    %s5 = scalar_lea.vmem %s0, 7
    %v6 = vld [vmem:[%s5] sm:$0x1]
    %7 = vrot.lane.b32.xlu0 %v6, 56
    %v8 = vpop.permute.xlu0 %7
    %vm9 = vcmask 523712
    %10 = vst.msk [vmem:[#allocation0] sm:$0x1] %vm9, %v8
    %s11 = scalar_lea.vmem %s0, 6
    %v12 = vld [vmem:[%s11] sm:$0x1]
    %13 = vrot.lane.b32.xlu0 %v12, 48
    %v14 = vpop.permute.xlu0 %13
    %vm15 = vcmask 458112
    %16 = vst.msk [vmem:[#allocation0] sm:$0x1] %vm15, %v14
    %s17 = scalar_lea.vmem %s0, 5
    %v18 = vld [vmem:[%s17] sm:$0x1]
    %19 = vrot.lane.b32.xlu0 %v18, 40
    %v20 = vpop.permute.xlu0 %19
    %vm21 = vcmask 392512
    %22 = vst.msk [vmem:[#allocation0] sm:$0x1] %vm21, %v20
    %s23 = scalar_lea.vmem %s0, 4
    %v24 = vld [vmem:[%s23] sm:$0x1]
    %25 = vrot.lane.b32.xlu0 %v24, 32
    %v26 = vpop.permute.xlu0 %25
    %vm27 = vcmask 326912
    %28 = vst.msk [vmem:[#allocation0] sm:$0x1] %vm27, %v26
    %s29 = scalar_lea.vmem %s0, 3
    %v30 = vld [vmem:[%s29] sm:$0x1]
    %31 = vrot.lane.b32.xlu0 %v30, 24
    %v32 = vpop.permute.xlu0 %31
    %vm33 = vcmask 261312
    %34 = vst.msk [vmem:[#allocation0] sm:$0x1] %vm33, %v32
    %s35 = scalar_lea.vmem %s0, 2
    %v36 = vld [vmem:[%s35] sm:$0x1]
    %37 = vrot.lane.b32.xlu0 %v36, 16
    %v38 = vpop.permute.xlu0 %37
    %vm39 = vcmask 195712
    %40 = vst.msk [vmem:[#allocation0] sm:$0x1] %vm39, %v38
    %s41 = scalar_lea.vmem %s0, 1
    %v42 = vld [vmem:[%s41] sm:$0x1]
    %43 = vrot.lane.b32.xlu0 %v42, 8
    %v44 = vpop.permute.xlu0 %43
    %vm45 = vcmask 130112
    %46 = vst.msk [vmem:[#allocation0] sm:$0x1] %vm45, %v44
    %s48 = sshllo.u32 0, 1
    %v50 = vld [vmem:[#allocation0] sm:%s48]
    %s51 = sshllo.u32 0, 1
    %52 = vst [vmem:[%s1] sm:%s51] %v50

// kernel: tile.9
$region0: #{tile.9}
  %s0 = inlined_call_operand.vmem [shape: f32[8,8,8], index: 0, kind: input, shape index: {}]
  %s1 = inlined_call_operand.vmem [shape: f32[8,64], index: 1, kind: output, shape index: {}]
  %v2 = vld [vmem:[%s0] ss:$8 sm:$0xf]
  %v3 = vld [vmem:[%s0] ss:$8 sm:$0xf0]
  %vm4 = vcmask 1047556
  %v5 = vsel %vm4, %v3, %v2
  %vm6 = vcmask 64512
  %7 = vst.msk [vmem:[%s1] sm:$0xff] %vm6, %v5
  %s8 = scalar_lea.vmem %s0, 7
  %v9 = vld [vmem:[%s8] ss:$8 sm:$0xf]
  %s10 = scalar_lea.vmem %s0, 7
  %v11 = vld [vmem:[%s10] ss:$8 sm:$0xf0]
  %vm12 = vcmask 1047556
  %v13 = vsel %vm12, %v11, %v9
  %14 = vrot.lane.b32.xlu0 %v13, 56
  %v15 = vpop.permute.xlu0 %14
  %vm16 = vcmask 523712
  %17 = vst.msk [vmem:[%s1] sm:$0xff] %vm16, %v15
  %s18 = scalar_lea.vmem %s0, 6
  %v19 = vld [vmem:[%s18] ss:$8 sm:$0xf]
  %s20 = scalar_lea.vmem %s0, 6
  %v21 = vld [vmem:[%s20] ss:$8 sm:$0xf0]
  %vm22 = vcmask 1047556
  %v23 = vsel %vm22, %v21, %v19
  %24 = vrot.lane.b32.xlu0 %v23, 48
  %v25 = vpop.permute.xlu0 %24
  %vm26 = vcmask 458112
  %27 = vst.msk [vmem:[%s1] sm:$0xff] %vm26, %v25
  %s28 = scalar_lea.vmem %s0, 5
  %v29 = vld [vmem:[%s28] ss:$8 sm:$0xf]
  %s30 = scalar_lea.vmem %s0, 5
  %v31 = vld [vmem:[%s30] ss:$8 sm:$0xf0]
  %vm32 = vcmask 1047556
  %v33 = vsel %vm32, %v31, %v29
  %34 = vrot.lane.b32.xlu0 %v33, 40
  %v35 = vpop.permute.xlu0 %34
  %vm36 = vcmask 392512
  %37 = vst.msk [vmem:[%s1] sm:$0xff] %vm36, %v35
  %s38 = scalar_lea.vmem %s0, 4
  %v39 = vld [vmem:[%s38] ss:$8 sm:$0xf]
  %s40 = scalar_lea.vmem %s0, 4
  %v41 = vld [vmem:[%s40] ss:$8 sm:$0xf0]
  %vm42 = vcmask 1047556
  %v43 = vsel %vm42, %v41, %v39
  %44 = vrot.lane.b32.xlu0 %v43, 32
  %v45 = vpop.permute.xlu0 %44
  %vm46 = vcmask 326912
  %47 = vst.msk [vmem:[%s1] sm:$0xff] %vm46, %v45
  %s48 = scalar_lea.vmem %s0, 3
  %v49 = vld [vmem:[%s48] ss:$8 sm:$0xf]
  %s50 = scalar_lea.vmem %s0, 3
  %v51 = vld [vmem:[%s50] ss:$8 sm:$0xf0]
  %vm52 = vcmask 1047556
  %v53 = vsel %vm52, %v51, %v49
  %54 = vrot.lane.b32.xlu0 %v53, 24
  %v55 = vpop.permute.xlu0 %54
  %vm56 = vcmask 261312
  %57 = vst.msk [vmem:[%s1] sm:$0xff] %vm56, %v55
  %s58 = scalar_lea.vmem %s0, 2
  %v59 = vld [vmem:[%s58] ss:$8 sm:$0xf]
  %s60 = scalar_lea.vmem %s0, 2
  %v61 = vld [vmem:[%s60] ss:$8 sm:$0xf0]
  %vm62 = vcmask 1047556
  %v63 = vsel %vm62, %v61, %v59
  %64 = vrot.lane.b32.xlu0 %v63, 16
  %v65 = vpop.permute.xlu0 %64
  %vm66 = vcmask 195712
  %67 = vst.msk [vmem:[%s1] sm:$0xff] %vm66, %v65
  %s68 = scalar_lea.vmem %s0, 1
  %v69 = vld [vmem:[%s68] ss:$8 sm:$0xf]
  %s70 = scalar_lea.vmem %s0, 1
  %v71 = vld [vmem:[%s70] ss:$8 sm:$0xf0]
  %vm72 = vcmask 1047556
  %v73 = vsel %vm72, %v71, %v69
  %74 = vrot.lane.b32.xlu0 %v73, 8
  %v75 = vpop.permute.xlu0 %74
  %vm76 = vcmask 130112
  %77 = vst.msk [vmem:[%s1] sm:$0xff] %vm76, %v75

// kernel: sk_tcl_forward.1
$region0: #{sk_tcl_forward.1}
  #allocation0 [shape = 'u32[]', space=smem, size = 0x4, offset = 0x4, fixed_abs, tag = 'smem constant byte address 0x4 - core index']
  #allocation1 [shape = 'u32[144,128]{1,0:T(1,128)}', space=vmem, size = 0x12000, scoped, tag = 'internal scratch']
  %s0 = inlined_call_operand.smem [shape: u32[46], index: -1, kind: input, shape index: {}]
  %s1 = sld [smem:[%s0]]
  %s2 = scalar_lea.smem %s0, 1
  %s3 = sld [smem:[%s2]]
  %s4 = scalar_lea.smem %s0, 2
  %s5 = sld [smem:[%s4]]
  %s6 = scalar_lea.smem %s0, 3
  %s7 = sld [smem:[%s6]]
  %s8 = scalar_lea.smem %s0, 4
  %s9 = sld [smem:[%s8]]
  %s10 = scalar_lea.smem %s0, 5
  %s11 = sld [smem:[%s10]]
  %s12 = scalar_lea.smem %s0, 6
  %s13 = sld [smem:[%s12]]
  %s14 = scalar_lea.smem %s0, 7
  %s15 = sld [smem:[%s14]]
  %s16 = scalar_lea.smem %s0, 8
  %s17 = sld [smem:[%s16]]
  %s18 = scalar_lea.smem %s0, 9
  %s19 = sld [smem:[%s18]]
  %s20 = scalar_lea.smem %s0, 10
  %s21 = sld [smem:[%s20]]
  %s22 = scalar_lea.smem %s0, 11
  %s23 = sld [smem:[%s22]]
  %s24 = scalar_lea.smem %s0, 12
  %s25 = sld [smem:[%s24]]
  %s26 = scalar_lea.smem %s0, 13
  %s27 = sld [smem:[%s26]]
  %s28 = scalar_lea.smem %s0, 14
  %s29 = sld [smem:[%s28]]
  %s30 = scalar_lea.smem %s0, 15
  %s31 = sld [smem:[%s30]]
  %s32 = scalar_lea.smem %s0, 16
  %s33 = sld [smem:[%s32]]
  %s34 = scalar_lea.smem %s0, 17
  %s35 = sld [smem:[%s34]]
  %s36 = scalar_lea.smem %s0, 18
  %s37 = sld [smem:[%s36]]
  %s38 = scalar_lea.smem %s0, 19
  %s39 = sld [smem:[%s38]]
  %s40 = scalar_lea.smem %s0, 20
  %s41 = sld [smem:[%s40]]
  %s42 = scalar_lea.smem %s0, 21
  %s43 = sld [smem:[%s42]]
  %s44 = scalar_lea.smem %s0, 22
  %s45 = sld [smem:[%s44]]
  %s46 = scalar_lea.smem %s0, 23
  %s47 = sld [smem:[%s46]]
  %s48 = scalar_lea.smem %s0, 24
  %s49 = sld [smem:[%s48]]
  %s50 = scalar_lea.smem %s0, 25
  %s51 = sld [smem:[%s50]]
  %s52 = scalar_lea.smem %s0, 26
  %s53 = sld [smem:[%s52]]
  %s54 = scalar_lea.smem %s0, 27
  %s55 = sld [smem:[%s54]]
  %s56 = scalar_lea.smem %s0, 28
  %s57 = sld [smem:[%s56]]
  %s58 = scalar_lea.smem %s0, 29
  %s59 = sld [smem:[%s58]]
  %s60 = scalar_lea.smem %s0, 30
  %s61 = sld [smem:[%s60]]
  %s62 = scalar_lea.smem %s0, 31
  %s63 = sld [smem:[%s62]]
  %s64 = scalar_lea.smem %s0, 32
  %s65 = sld [smem:[%s64]]
  %s66 = scalar_lea.smem %s0, 33
  %s67 = sld [smem:[%s66]]
  %s68 = scalar_lea.smem %s0, 34
  %s69 = sld [smem:[%s68]]
  %s70 = scalar_lea.smem %s0, 35
  %s71 = sld [smem:[%s70]]
  %s72 = scalar_lea.smem %s0, 36
  %s73 = sld [smem:[%s72]]
  %s74 = scalar_lea.smem %s0, 37
  %s75 = sld [smem:[%s74]]
  %s76 = scalar_lea.smem %s0, 38
  %s77 = sld [smem:[%s76]]
  %s78 = scalar_lea.smem %s0, 39
  %s79 = sld [smem:[%s78]]
  %s80 = scalar_lea.smem %s0, 40
  %s81 = sld [smem:[%s80]]
  %s82 = scalar_lea.smem %s0, 41
  %s83 = sld [smem:[%s82]]
  %s84 = scalar_lea.smem %s0, 42
  %s85 = sld [smem:[%s84]]
  %s86 = scalar_lea.smem %s0, 43
  %s87 = sld [smem:[%s86]]
  %s88 = scalar_lea.smem %s0, 44
  %s89 = sld [smem:[%s88]]
  %s90 = scalar_lea.smem %s0, 45
  %s91 = sld [smem:[%s90]]
  %s92 = sld [smem:[#allocation0]]
  $region190: #{sk_tcl_forward.1} parent=0
    _
  %s94 = ssub.s32 1, %s92
  %s95 = scalar_select 0, %s94, %s92
  $region1: #{sk_tcl_forward.1} parent=0
    #allocation2 [shape = 'u8[4096]{0}', space=vmem, size = 0x1000, scoped, tag = 'output window, operand 0, single buffered']
    #allocation3 [shape = 's32[1]{0}', space=sflag, size = 0x4, scoped, tag = 'scoped memory for sk_tcl_forward.1']
    %96 = vsyncpa [#allocation3], 0
    // Predicated region
    $region2: #{sk_tcl_forward.1} parent=1 // pred_check
      _
    $region3: #{sk_tcl_forward.1} parent=1 // pred_check_branch
      %98 = sbr.rel (0) target = $region5
    $region4: #{sk_tcl_forward.1} parent=1 // pred_region
      _
    $region5: #{sk_tcl_forward.1} parent=1 // pred_fallthru
      _
    // Predicated region
    $region6: #{sk_tcl_forward.1} parent=1 // pred_check
      _
    $region7: #{sk_tcl_forward.1} parent=1 // pred_check_branch
      %100 = sbr.rel (0) target = $region9
    $region8: #{sk_tcl_forward.1} parent=1 // pred_region
      _
    $region9: #{sk_tcl_forward.1} parent=1 // pred_fallthru
      _
    // Predicated region
    $region10: #{sk_tcl_forward.1} parent=1 // pred_check
      _
    $region11: #{sk_tcl_forward.1} parent=1 // pred_check_branch
      %102 = sbr.rel (0) target = $region13
    $region12: #{sk_tcl_forward.1} parent=1 // pred_region
      _
    $region13: #{sk_tcl_forward.1} parent=1 // pred_fallthru
      _
    // Predicated region
    $region14: #{sk_tcl_forward.1} parent=1 // pred_check
      _
    $region15: #{sk_tcl_forward.1} parent=1 // pred_check_branch
      %104 = sbr.rel (0) target = $region17
    $region16: #{sk_tcl_forward.1} parent=1 // pred_region
      _
    $region17: #{sk_tcl_forward.1} parent=1 // pred_fallthru
      _
    // Predicated region
    $region18: #{sk_tcl_forward.1} parent=1 // pred_check
      _
    $region19: #{sk_tcl_forward.1} parent=1 // pred_check_branch
      %106 = sbr.rel (0) target = $region21
    $region20: #{sk_tcl_forward.1} parent=1 // pred_region
      _
    $region21: #{sk_tcl_forward.1} parent=1 // pred_fallthru
      _
    // Predicated region
    $region22: #{sk_tcl_forward.1} parent=1 // pred_check
      _
    $region23: #{sk_tcl_forward.1} parent=1 // pred_check_branch
      %108 = sbr.rel (0) target = $region25
    $region24: #{sk_tcl_forward.1} parent=1 // pred_region
      _
    $region25: #{sk_tcl_forward.1} parent=1 // pred_fallthru
      _
    // Predicated region
    $region26: #{sk_tcl_forward.1} parent=1 // pred_check
      _
    $region27: #{sk_tcl_forward.1} parent=1 // pred_check_branch
      %110 = sbr.rel (0) target = $region29
    $region28: #{sk_tcl_forward.1} parent=1 // pred_region
      _
    $region29: #{sk_tcl_forward.1} parent=1 // pred_fallthru
      _
    // Predicated region
    $region30: #{sk_tcl_forward.1} parent=1 // pred_check
      _
    $region31: #{sk_tcl_forward.1} parent=1 // pred_check_branch
      %112 = sbr.rel (0) target = $region33
    $region32: #{sk_tcl_forward.1} parent=1 // pred_region
      _
    $region33: #{sk_tcl_forward.1} parent=1 // pred_fallthru
      _
    // Predicated region
    $region34: #{sk_tcl_forward.1} parent=1 // pred_check
      _
    $region35: #{sk_tcl_forward.1} parent=1 // pred_check_branch
      %114 = sbr.rel (0) target = $region37
    $region36: #{sk_tcl_forward.1} parent=1 // pred_region
      _
    $region37: #{sk_tcl_forward.1} parent=1 // pred_fallthru
      _
    // Predicated region
    $region38: #{sk_tcl_forward.1} parent=1 // pred_check
      _
    $region39: #{sk_tcl_forward.1} parent=1 // pred_check_branch
      %116 = sbr.rel (0) target = $region41
    $region40: #{sk_tcl_forward.1} parent=1 // pred_region
      _
    $region41: #{sk_tcl_forward.1} parent=1 // pred_fallthru
      _
    // Predicated region
    $region42: #{sk_tcl_forward.1} parent=1 // pred_check
      _
    $region43: #{sk_tcl_forward.1} parent=1 // pred_check_branch
      %118 = sbr.rel (0) target = $region45
    $region44: #{sk_tcl_forward.1} parent=1 // pred_region
      _
    $region45: #{sk_tcl_forward.1} parent=1 // pred_fallthru
      _
    // Predicated region
    $region46: #{sk_tcl_forward.1} parent=1 // pred_check
      _
    $region47: #{sk_tcl_forward.1} parent=1 // pred_check_branch
      %120 = sbr.rel (0) target = $region49
    $region48: #{sk_tcl_forward.1} parent=1 // pred_region
      _
    $region49: #{sk_tcl_forward.1} parent=1 // pred_fallthru
      _
    // Predicated region
    $region50: #{sk_tcl_forward.1} parent=1 // pred_check
      _
    $region51: #{sk_tcl_forward.1} parent=1 // pred_check_branch
      %122 = sbr.rel (0) target = $region53
    $region52: #{sk_tcl_forward.1} parent=1 // pred_region
      _
    $region53: #{sk_tcl_forward.1} parent=1 // pred_fallthru
      _
    // Predicated region
    $region54: #{sk_tcl_forward.1} parent=1 // pred_check
      _
    $region55: #{sk_tcl_forward.1} parent=1 // pred_check_branch
      %124 = sbr.rel (0) target = $region57
    $region56: #{sk_tcl_forward.1} parent=1 // pred_region
      _
    $region57: #{sk_tcl_forward.1} parent=1 // pred_fallthru
      _
    // Predicated region
    $region58: #{sk_tcl_forward.1} parent=1 // pred_check
      _
    $region59: #{sk_tcl_forward.1} parent=1 // pred_check_branch
      %126 = sbr.rel (0) target = $region61
    $region60: #{sk_tcl_forward.1} parent=1 // pred_region
      _
    $region61: #{sk_tcl_forward.1} parent=1 // pred_fallthru
      _
    // Predicated region
    $region62: #{sk_tcl_forward.1} parent=1 // pred_check
      _
    $region63: #{sk_tcl_forward.1} parent=1 // pred_check_branch
      %128 = sbr.rel (0) target = $region65
    $region64: #{sk_tcl_forward.1} parent=1 // pred_region
      _
    $region65: #{sk_tcl_forward.1} parent=1 // pred_fallthru
      _
    // Predicated region
    $region66: #{sk_tcl_forward.1} parent=1 // pred_check
      _
    $region67: #{sk_tcl_forward.1} parent=1 // pred_check_branch
      %130 = sbr.rel (0) target = $region69
    $region68: #{sk_tcl_forward.1} parent=1 // pred_region
      _
    $region69: #{sk_tcl_forward.1} parent=1 // pred_fallthru
      _
    // Predicated region
    $region70: #{sk_tcl_forward.1} parent=1 // pred_check
      _
    $region71: #{sk_tcl_forward.1} parent=1 // pred_check_branch
      %132 = sbr.rel (0) target = $region73
    $region72: #{sk_tcl_forward.1} parent=1 // pred_region
      _
    $region73: #{sk_tcl_forward.1} parent=1 // pred_fallthru
      _
    // Predicated region
    $region74: #{sk_tcl_forward.1} parent=1 // pred_check
      _
    $region75: #{sk_tcl_forward.1} parent=1 // pred_check_branch
      %134 = sbr.rel (0) target = $region77
    $region76: #{sk_tcl_forward.1} parent=1 // pred_region
      _
    $region77: #{sk_tcl_forward.1} parent=1 // pred_fallthru
      _
    // Predicated region
    $region78: #{sk_tcl_forward.1} parent=1 // pred_check
      _
    $region79: #{sk_tcl_forward.1} parent=1 // pred_check_branch
      %136 = sbr.rel (0) target = $region81
    $region80: #{sk_tcl_forward.1} parent=1 // pred_region
      _
    $region81: #{sk_tcl_forward.1} parent=1 // pred_fallthru
      _
    // Predicated region
    $region82: #{sk_tcl_forward.1} parent=1 // pred_check
      _
    $region83: #{sk_tcl_forward.1} parent=1 // pred_check_branch
      %138 = sbr.rel (0) target = $region85
    $region84: #{sk_tcl_forward.1} parent=1 // pred_region
      _
    $region85: #{sk_tcl_forward.1} parent=1 // pred_fallthru
      _
    // Predicated region
    $region86: #{sk_tcl_forward.1} parent=1 // pred_check
      _
    $region87: #{sk_tcl_forward.1} parent=1 // pred_check_branch
      %140 = sbr.rel (0) target = $region89
    $region88: #{sk_tcl_forward.1} parent=1 // pred_region
      _
    $region89: #{sk_tcl_forward.1} parent=1 // pred_fallthru
      _
    // Predicated region
    $region90: #{sk_tcl_forward.1} parent=1 // pred_check
      _
    $region91: #{sk_tcl_forward.1} parent=1 // pred_check_branch
      %142 = sbr.rel (0) target = $region93
    $region92: #{sk_tcl_forward.1} parent=1 // pred_region
      _
    $region93: #{sk_tcl_forward.1} parent=1 // pred_fallthru
      _
    // Predicated region
    $region94: #{sk_tcl_forward.1} parent=1 // pred_check
      _
    $region95: #{sk_tcl_forward.1} parent=1 // pred_check_branch
      %144 = sbr.rel (0) target = $region97
    $region96: #{sk_tcl_forward.1} parent=1 // pred_region
      _
    $region97: #{sk_tcl_forward.1} parent=1 // pred_fallthru
      _
    // Predicated region
    $region98: #{sk_tcl_forward.1} parent=1 // pred_check
      _
    $region99: #{sk_tcl_forward.1} parent=1 // pred_check_branch
      %146 = sbr.rel (0) target = $region101
    $region100: #{sk_tcl_forward.1} parent=1 // pred_region
      _
    $region101: #{sk_tcl_forward.1} parent=1 // pred_fallthru
      _
    // Predicated region
    $region102: #{sk_tcl_forward.1} parent=1 // pred_check
      _
    $region103: #{sk_tcl_forward.1} parent=1 // pred_check_branch
      %148 = sbr.rel (0) target = $region105
    $region104: #{sk_tcl_forward.1} parent=1 // pred_region
      _
    $region105: #{sk_tcl_forward.1} parent=1 // pred_fallthru
      _
    // Predicated region
    $region106: #{sk_tcl_forward.1} parent=1 // pred_check
      _
    $region107: #{sk_tcl_forward.1} parent=1 // pred_check_branch
      %150 = sbr.rel (0) target = $region109
    $region108: #{sk_tcl_forward.1} parent=1 // pred_region
      _
    $region109: #{sk_tcl_forward.1} parent=1 // pred_fallthru
      _
    // Predicated region
    $region110: #{sk_tcl_forward.1} parent=1 // pred_check
      _
    $region111: #{sk_tcl_forward.1} parent=1 // pred_check_branch
      %152 = sbr.rel (0) target = $region113
    $region112: #{sk_tcl_forward.1} parent=1 // pred_region
      _
    $region113: #{sk_tcl_forward.1} parent=1 // pred_fallthru
      _
    // Predicated region
    $region114: #{sk_tcl_forward.1} parent=1 // pred_check
      _
    $region115: #{sk_tcl_forward.1} parent=1 // pred_check_branch
      %154 = sbr.rel (0) target = $region117
    $region116: #{sk_tcl_forward.1} parent=1 // pred_region
      _
    $region117: #{sk_tcl_forward.1} parent=1 // pred_fallthru
      _
    // Predicated region
    $region118: #{sk_tcl_forward.1} parent=1 // pred_check
      _
    $region119: #{sk_tcl_forward.1} parent=1 // pred_check_branch
      %156 = sbr.rel (0) target = $region121
    $region120: #{sk_tcl_forward.1} parent=1 // pred_region
      _
    $region121: #{sk_tcl_forward.1} parent=1 // pred_fallthru
      _
    // Predicated region
    $region122: #{sk_tcl_forward.1} parent=1 // pred_check
      _
    $region123: #{sk_tcl_forward.1} parent=1 // pred_check_branch
      %158 = sbr.rel (0) target = $region125
    $region124: #{sk_tcl_forward.1} parent=1 // pred_region
      _
    $region125: #{sk_tcl_forward.1} parent=1 // pred_fallthru
      _
    // Predicated region
    $region126: #{sk_tcl_forward.1} parent=1 // pred_check
      _
    $region127: #{sk_tcl_forward.1} parent=1 // pred_check_branch
      %160 = sbr.rel (0) target = $region129
    $region128: #{sk_tcl_forward.1} parent=1 // pred_region
      _
    $region129: #{sk_tcl_forward.1} parent=1 // pred_fallthru
      _
    // Predicated region
    $region130: #{sk_tcl_forward.1} parent=1 // pred_check
      _
    $region131: #{sk_tcl_forward.1} parent=1 // pred_check_branch
      %162 = sbr.rel (0) target = $region133
    $region132: #{sk_tcl_forward.1} parent=1 // pred_region
      _
    $region133: #{sk_tcl_forward.1} parent=1 // pred_fallthru
      _
    // Predicated region
    $region134: #{sk_tcl_forward.1} parent=1 // pred_check
      _
    $region135: #{sk_tcl_forward.1} parent=1 // pred_check_branch
      %164 = sbr.rel (0) target = $region137
    $region136: #{sk_tcl_forward.1} parent=1 // pred_region
      _
    $region137: #{sk_tcl_forward.1} parent=1 // pred_fallthru
      _
    // Predicated region
    $region138: #{sk_tcl_forward.1} parent=1 // pred_check
      _
    $region139: #{sk_tcl_forward.1} parent=1 // pred_check_branch
      %166 = sbr.rel (0) target = $region141
    $region140: #{sk_tcl_forward.1} parent=1 // pred_region
      _
    $region141: #{sk_tcl_forward.1} parent=1 // pred_fallthru
      _
    // Predicated region
    $region142: #{sk_tcl_forward.1} parent=1 // pred_check
      _
    $region143: #{sk_tcl_forward.1} parent=1 // pred_check_branch
      %168 = sbr.rel (0) target = $region145
    $region144: #{sk_tcl_forward.1} parent=1 // pred_region
      _
    $region145: #{sk_tcl_forward.1} parent=1 // pred_fallthru
      _
    // Predicated region
    $region146: #{sk_tcl_forward.1} parent=1 // pred_check
      _
    $region147: #{sk_tcl_forward.1} parent=1 // pred_check_branch
      %170 = sbr.rel (0) target = $region149
    $region148: #{sk_tcl_forward.1} parent=1 // pred_region
      _
    $region149: #{sk_tcl_forward.1} parent=1 // pred_fallthru
      _
    // Predicated region
    $region150: #{sk_tcl_forward.1} parent=1 // pred_check
      _
    $region151: #{sk_tcl_forward.1} parent=1 // pred_check_branch
      %172 = sbr.rel (0) target = $region153
    $region152: #{sk_tcl_forward.1} parent=1 // pred_region
      _
    $region153: #{sk_tcl_forward.1} parent=1 // pred_fallthru
      _
    // Predicated region
    $region154: #{sk_tcl_forward.1} parent=1 // pred_check
      _
    $region155: #{sk_tcl_forward.1} parent=1 // pred_check_branch
      %174 = sbr.rel (0) target = $region157
    $region156: #{sk_tcl_forward.1} parent=1 // pred_region
      _
    $region157: #{sk_tcl_forward.1} parent=1 // pred_fallthru
      _
    // Predicated region
    $region158: #{sk_tcl_forward.1} parent=1 // pred_check
      _
    $region159: #{sk_tcl_forward.1} parent=1 // pred_check_branch
      %176 = sbr.rel (0) target = $region161
    $region160: #{sk_tcl_forward.1} parent=1 // pred_region
      _
    $region161: #{sk_tcl_forward.1} parent=1 // pred_fallthru
      _
    // Predicated region
    $region162: #{sk_tcl_forward.1} parent=1 // pred_check
      _
    $region163: #{sk_tcl_forward.1} parent=1 // pred_check_branch
      %178 = sbr.rel (0) target = $region165
    $region164: #{sk_tcl_forward.1} parent=1 // pred_region
      _
    $region165: #{sk_tcl_forward.1} parent=1 // pred_fallthru
      _
    // Predicated region
    $region166: #{sk_tcl_forward.1} parent=1 // pred_check
      _
    $region167: #{sk_tcl_forward.1} parent=1 // pred_check_branch
      %180 = sbr.rel (0) target = $region169
    $region168: #{sk_tcl_forward.1} parent=1 // pred_region
      _
    $region169: #{sk_tcl_forward.1} parent=1 // pred_fallthru
      _
    // Predicated region
    $region170: #{sk_tcl_forward.1} parent=1 // pred_check
      _
    $region171: #{sk_tcl_forward.1} parent=1 // pred_check_branch
      %182 = sbr.rel (0) target = $region173
    $region172: #{sk_tcl_forward.1} parent=1 // pred_region
      _
    $region173: #{sk_tcl_forward.1} parent=1 // pred_fallthru
      _
    // Predicated region
    $region174: #{sk_tcl_forward.1} parent=1 // pred_check
      _
    $region175: #{sk_tcl_forward.1} parent=1 // pred_check_branch
      %184 = sbr.rel (0) target = $region177
    $region176: #{sk_tcl_forward.1} parent=1 // pred_region
      _
    $region177: #{sk_tcl_forward.1} parent=1 // pred_fallthru
      _
    // Predicated region
    $region178: #{sk_tcl_forward.1} parent=1 // pred_check
      _
    $region179: #{sk_tcl_forward.1} parent=1 // pred_check_branch
      %186 = sbr.rel (0) target = $region181
    $region180: #{sk_tcl_forward.1} parent=1 // pred_region
      _
    $region181: #{sk_tcl_forward.1} parent=1 // pred_fallthru
      _
    %v187 = vld [vmem:[%s1] sm:$0xff]
    %v188 = vld [vmem:[%s1 + $0x8] sm:$0xff]
    %v189 = vld [vmem:[%s1 + $0x10] sm:$0xff]
    %v190 = vld [vmem:[%s1 + $0x18] sm:$0xff]
    %v191 = vld [vmem:[%s1 + $0x20] sm:$0xff]
    %v192 = vld [vmem:[%s1 + $0x28] sm:$0xff]
    %v193 = vld [vmem:[%s1 + $0x30] sm:$0xff]
    %v194 = vld [vmem:[%s1 + $0x38] sm:$0xff]
    %v195 = vld [vmem:[%s1 + $0x40] sm:$0xff]
    %v196 = vld [vmem:[%s1 + $0x48] sm:$0xff]
    %v197 = vld [vmem:[%s1 + $0x50] sm:$0xff]
    %v198 = vld [vmem:[%s1 + $0x58] sm:$0xff]
    %v199 = vld [vmem:[%s1 + $0x60] sm:$0xff]
    %v200 = vld [vmem:[%s1 + $0x68] sm:$0xff]
    %v201 = vld [vmem:[%s1 + $0x70] sm:$0xff]
    %v202 = vld [vmem:[%s1 + $0x78] sm:$0xff]
    %v203 = vld [vmem:[%s1 + $0x80] sm:$0xff]
    %v204 = vld [vmem:[%s1 + $0x88] sm:$0xff]
    %v205 = vld [vmem:[%s1 + $0x90] sm:$0xff]
    %v206 = vld [vmem:[%s1 + $0x98] sm:$0xff]
    %v207 = vld [vmem:[%s1 + $0xa0] sm:$0xff]
    %v208 = vld [vmem:[%s1 + $0xa8] sm:$0xff]
    %v209 = vld [vmem:[%s1 + $0xb0] sm:$0xff]
    %v210 = vld [vmem:[%s1 + $0xb8] sm:$0xff]
    %v211 = vld [vmem:[%s1 + $0xc0] sm:$0xff]
    %v212 = vld [vmem:[%s1 + $0xc8] sm:$0xff]
    %v213 = vld [vmem:[%s1 + $0xd0] sm:$0xff]
    %v214 = vld [vmem:[%s1 + $0xd8] sm:$0xff]
    %v215 = vld [vmem:[%s1 + $0xe0] sm:$0xff]
    %v216 = vld [vmem:[%s1 + $0xe8] sm:$0xff]
    %v217 = vld [vmem:[%s1 + $0xf0] sm:$0xff]
    %v218 = vld [vmem:[%s1 + $0xf8] sm:$0xff]
    %v219 = vld [vmem:[%s1 + $0x100] sm:$0xf]
    %v220 = vld [vmem:[%s1 + $0x108] sm:$0xf]
    %v221 = vld [vmem:[%s1 + $0x110] sm:$0xf]
    %v222 = vld [vmem:[%s1 + $0x118] sm:$0xf]
    %v223 = vld [vmem:[%s3] sm:$0xff]
    %v224 = vld [vmem:[%s3 + $0x8] sm:$0xff]
    %v225 = vld [vmem:[%s3 + $0x10] sm:$0xff]
    %v226 = vld [vmem:[%s3 + $0x18] sm:$0xff]
    %v227 = vld [vmem:[%s3 + $0x20] sm:$0xff]
    %v228 = vld [vmem:[%s3 + $0x28] sm:$0xff]
    %v229 = vld [vmem:[%s3 + $0x30] sm:$0xff]
    %v230 = vld [vmem:[%s3 + $0x38] sm:$0xff]
    %v231 = vld [vmem:[%s3 + $0x40] sm:$0xff]
    %v232 = vld [vmem:[%s3 + $0x48] sm:$0xff]
    %v233 = vld [vmem:[%s3 + $0x50] sm:$0xff]
    %v234 = vld [vmem:[%s3 + $0x58] sm:$0xff]
    %v235 = vld [vmem:[%s3 + $0x60] sm:$0xff]
    %v236 = vld [vmem:[%s3 + $0x68] sm:$0xff]
    %v237 = vld [vmem:[%s3 + $0x70] sm:$0xff]
    %v238 = vld [vmem:[%s3 + $0x78] sm:$0xff]
    %v239 = vld [vmem:[%s3 + $0x80] sm:$0xff]
    %v240 = vld [vmem:[%s3 + $0x88] sm:$0xff]
    %v241 = vld [vmem:[%s3 + $0x90] sm:$0xff]
    %v242 = vld [vmem:[%s3 + $0x98] sm:$0xff]
    %v243 = vld [vmem:[%s3 + $0xa0] sm:$0xff]
    %v244 = vld [vmem:[%s3 + $0xa8] sm:$0xff]
    %v245 = vld [vmem:[%s3 + $0xb0] sm:$0xff]
    %v246 = vld [vmem:[%s3 + $0xb8] sm:$0xff]
    %v247 = vld [vmem:[%s3 + $0xc0] sm:$0xff]
    %v248 = vld [vmem:[%s3 + $0xc8] sm:$0xff]
    %v249 = vld [vmem:[%s3 + $0xd0] sm:$0xff]
    %v250 = vld [vmem:[%s3 + $0xd8] sm:$0xff]
    %v251 = vld [vmem:[%s3 + $0xe0] sm:$0xff]
    %v252 = vld [vmem:[%s3 + $0xe8] sm:$0xff]
    %v253 = vld [vmem:[%s3 + $0xf0] sm:$0xff]
    %v254 = vld [vmem:[%s3 + $0xf8] sm:$0xff]
    %v255 = vld [vmem:[%s3 + $0x100] sm:$0xff]
    %v256 = vld [vmem:[%s3 + $0x108] sm:$0xff]
    %v257 = vld [vmem:[%s3 + $0x110] sm:$0xff]
    %v258 = vld [vmem:[%s3 + $0x118] sm:$0xff]
    %v259 = vld [vmem:[%s3 + $0x120] sm:$0xff]
    %v260 = vld [vmem:[%s3 + $0x128] sm:$0xff]
    %v261 = vld [vmem:[%s3 + $0x130] sm:$0xff]
    %v262 = vld [vmem:[%s3 + $0x138] sm:$0xff]
    %v263 = vld [vmem:[%s3 + $0x140] sm:$0xff]
    %v264 = vld [vmem:[%s3 + $0x148] sm:$0xff]
    %v265 = vld [vmem:[%s3 + $0x150] sm:$0xff]
    %v266 = vld [vmem:[%s3 + $0x158] sm:$0xff]
    %v267 = vld [vmem:[%s3 + $0x160] sm:$0xff]
    %v268 = vld [vmem:[%s3 + $0x168] sm:$0xff]
    %v269 = vld [vmem:[%s3 + $0x170] sm:$0xff]
    %v270 = vld [vmem:[%s3 + $0x178] sm:$0xff]
    %v271 = vld [vmem:[%s3 + $0x180] sm:$0xff]
    %v272 = vld [vmem:[%s3 + $0x188] sm:$0xff]
    %v273 = vld [vmem:[%s3 + $0x190] sm:$0xff]
    %v274 = vld [vmem:[%s3 + $0x198] sm:$0xff]
    %v275 = vld [vmem:[%s3 + $0x1a0] sm:$0xff]
    %v276 = vld [vmem:[%s3 + $0x1a8] sm:$0xff]
    %v277 = vld [vmem:[%s3 + $0x1b0] sm:$0xff]
    %v278 = vld [vmem:[%s3 + $0x1b8] sm:$0xff]
    %v279 = vld [vmem:[%s3 + $0x1c0] sm:$0xff]
    %v280 = vld [vmem:[%s3 + $0x1c8] sm:$0xff]
    %v281 = vld [vmem:[%s3 + $0x1d0] sm:$0xff]
    %v282 = vld [vmem:[%s3 + $0x1d8] sm:$0xff]
    %v283 = vld [vmem:[%s3 + $0x1e0] sm:$0xff]
    %v284 = vld [vmem:[%s3 + $0x1e8] sm:$0x7f]
    %v285 = vld [vmem:[%s5] sm:$0x1]
    %v287 = vlaneseq
    %v288 = vshrl.u32 %v287, 7
    %v289 = vsub.s32 0, %v288
    %v290 = vrot.slane %v285, %v289
    %vm292 = vcmask 908288
    %v294 = vsel %vm292, %v190, 0
    %v297 = vsel %vm292, %v194, 0
    %v300 = vsel %vm292, %v198, 0
    %v303 = vsel %vm292, %v202, 0
    %v306 = vsel %vm292, %v206, 0
    %v309 = vsel %vm292, %v210, 0
    %v312 = vsel %vm292, %v214, 0
    %v315 = vsel %vm292, %v218, 0
    %v318 = vsel %vm292, %v222, 0
    %vm320 = vcmask 1046528
    %v322 = vsel %vm320, %v284, 0
    %324 = vmatprep.subr.mxu0 0.0
    %325 = vmatpush1.msra.mxu0 %v223
    %326 = vmatprep.subr.mxu0 0.0
    %327 = vmatpush1.msra.mxu0 %v224
    %328 = vmatprep.subr.mxu0 0.0
    %329 = vmatpush1.msra.mxu0 %v225
    %330 = vmatprep.subr.mxu0 0.0
    %331 = vmatpush1.msra.mxu0 %v226
    %332 = vmatprep.subr.mxu0 0.0
    %333 = vmatpush1.msra.mxu0 %v227
    %334 = vmatprep.subr.mxu0 0.0
    %335 = vmatpush1.msra.mxu0 %v228
    %336 = vmatprep.subr.mxu0 0.0
    %337 = vmatpush1.msra.mxu0 %v229
    %338 = vmatprep.subr.mxu0 0.0
    %339 = vmatpush1.msra.mxu0 %v230
    %340 = vmatprep.subr.mxu0 0.0
    %341 = vmatpush1.msra.mxu0 %v231
    %342 = vmatprep.subr.mxu0 0.0
    %343 = vmatpush1.msra.mxu0 %v232
    %344 = vmatprep.subr.mxu0 0.0
    %345 = vmatpush1.msra.mxu0 %v233
    %346 = vmatprep.subr.mxu0 0.0
    %347 = vmatpush1.msra.mxu0 %v234
    %348 = vmatprep.subr.mxu0 0.0
    %349 = vmatpush1.msra.mxu0 %v235
    %350 = vmatprep.subr.mxu0 0.0
    %351 = vmatpush1.msra.mxu0 %v236
    %352 = vmatprep.subr.mxu0 0.0
    %353 = vmatpush1.msra.mxu0 %v237
    %354 = vmatprep.subr.mxu0 0.0
    %355 = vmatpush1.msra.mxu0 %v238
    %356 = vmatprep.subr.mxu0 0.0
    %357 = vmatpush1.msra.mxu0 %v239
    %358 = vmatprep.subr.mxu0 0.0
    %359 = vmatpush1.msra.mxu0 %v240
    %360 = vmatprep.subr.mxu0 0.0
    %361 = vmatpush1.msra.mxu0 %v241
    %362 = vmatprep.subr.mxu0 0.0
    %363 = vmatpush1.msra.mxu0 %v242
    %364 = vmatprep.subr.mxu0 0.0
    %365 = vmatpush1.msra.mxu0 %v243
    %366 = vmatprep.subr.mxu0 0.0
    %367 = vmatpush1.msra.mxu0 %v244
    %368 = vmatprep.subr.mxu0 0.0
    %369 = vmatpush1.msra.mxu0 %v245
    %370 = vmatprep.subr.mxu0 0.0
    %371 = vmatpush1.msra.mxu0 %v246
    %372 = vmatprep.subr.mxu0 0.0
    %373 = vmatpush1.msra.mxu0 %v247
    %374 = vmatprep.subr.mxu0 0.0
    %375 = vmatpush1.msra.mxu0 %v248
    %376 = vmatprep.subr.mxu0 0.0
    %377 = vmatpush1.msra.mxu0 %v249
    %378 = vmatprep.subr.mxu0 0.0
    %379 = vmatpush1.msra.mxu0 %v250
    %380 = vmatprep.subr.mxu0 0.0
    %381 = vmatpush1.msra.mxu0 %v251
    %382 = vmatprep.subr.mxu0 0.0
    %383 = vmatpush1.msra.mxu0 %v252
    %384 = vmatprep.subr.mxu0 0.0
    %385 = vmatpush1.msra.mxu0 %v253
    %386 = vmatprep.subr.mxu0 0.0
    %387 = vmatpush1.msra.mxu0 %v254
    %388 = vmatprep.mubr.f32.mxu0 %v188
    %389 = vmatmul.mubr.f32.gmra.mrb[0].mxu0 %v187
    %v390 = vpop.f32.mrb[0].mxu0
    %v391 = vadd.f32 %v290, %v390
    %v392 = vpop.f32.mrb[0].mxu0
    %393 = vmatprep.mubr.f32.mxu0 %v192
    %394 = vmatmul.mubr.f32.gmra.mrb[0].mxu0 %v191
    %v395 = vpop.f32.mrb[0].mxu0
    %v396 = vadd.f32 %v290, %v395
    %v397 = vpop.f32.mrb[0].mxu0
    %398 = vmatprep.mubr.f32.mxu0 %v196
    %399 = vmatmul.mubr.f32.gmra.mrb[0].mxu0 %v195
    %v400 = vpop.f32.mrb[0].mxu0
    %v401 = vadd.f32 %v290, %v400
    %v402 = vpop.f32.mrb[0].mxu0
    %403 = vmatprep.mubr.f32.mxu0 %v200
    %404 = vmatmul.mubr.f32.gmra.mrb[0].mxu0 %v199
    %v405 = vpop.f32.mrb[0].mxu0
    %v406 = vadd.f32 %v290, %v405
    %v407 = vpop.f32.mrb[0].mxu0
    %408 = vmatprep.mubr.f32.mxu0 %v204
    %409 = vmatmul.mubr.f32.gmra.mrb[0].mxu0 %v203
    %v410 = vpop.f32.mrb[0].mxu0
    %v411 = vadd.f32 %v290, %v410
    %v412 = vpop.f32.mrb[0].mxu0
    %413 = vmatprep.mubr.f32.mxu0 %v208
    %414 = vmatmul.mubr.f32.gmra.mrb[0].mxu0 %v207
    %v415 = vpop.f32.mrb[0].mxu0
    %v416 = vadd.f32 %v290, %v415
    %v417 = vpop.f32.mrb[0].mxu0
    %418 = vmatprep.mubr.f32.mxu0 %v212
    %419 = vmatmul.mubr.f32.gmra.mrb[0].mxu0 %v211
    %v420 = vpop.f32.mrb[0].mxu0
    %v421 = vadd.f32 %v290, %v420
    %v422 = vpop.f32.mrb[0].mxu0
    %423 = vmatprep.mubr.f32.mxu0 %v216
    %424 = vmatmul.mubr.f32.gmra.mrb[0].mxu0 %v215
    %v425 = vpop.f32.mrb[0].mxu0
    %v426 = vadd.f32 %v290, %v425
    %v427 = vpop.f32.mrb[0].mxu0
    %428 = vmatprep.mubr.f32.mxu0 %v220
    %429 = vmatmul.mubr.f32.gmra.mrb[0].mxu0 %v219
    %v430 = vpop.f32.mrb[0].mxu0
    %v431 = vadd.f32 %v290, %v430
    %v432 = vpop.f32.mrb[0].mxu0
    %433 = vdwg.mxu0
    %434 = vmatprep.subr.mxu0 0.0
    %435 = vmatpush1.msra.mxu0 %v255
    %436 = vmatprep.subr.mxu0 0.0
    %437 = vmatpush1.msra.mxu0 %v256
    %438 = vmatprep.subr.mxu0 0.0
    %439 = vmatpush1.msra.mxu0 %v257
    %440 = vmatprep.subr.mxu0 0.0
    %441 = vmatpush1.msra.mxu0 %v258
    %442 = vmatprep.subr.mxu0 0.0
    %443 = vmatpush1.msra.mxu0 %v259
    %444 = vmatprep.subr.mxu0 0.0
    %445 = vmatpush1.msra.mxu0 %v260
    %446 = vmatprep.subr.mxu0 0.0
    %447 = vmatpush1.msra.mxu0 %v261
    %448 = vmatprep.subr.mxu0 0.0
    %449 = vmatpush1.msra.mxu0 %v262
    %450 = vmatprep.subr.mxu0 0.0
    %451 = vmatpush1.msra.mxu0 %v263
    %452 = vmatprep.subr.mxu0 0.0
    %453 = vmatpush1.msra.mxu0 %v264
    %454 = vmatprep.subr.mxu0 0.0
    %455 = vmatpush1.msra.mxu0 %v265
    %456 = vmatprep.subr.mxu0 0.0
    %457 = vmatpush1.msra.mxu0 %v266
    %458 = vmatprep.subr.mxu0 0.0
    %459 = vmatpush1.msra.mxu0 %v267
    %460 = vmatprep.subr.mxu0 0.0
    %461 = vmatpush1.msra.mxu0 %v268
    %462 = vmatprep.subr.mxu0 0.0
    %463 = vmatpush1.msra.mxu0 %v269
    %464 = vmatprep.subr.mxu0 0.0
    %465 = vmatpush1.msra.mxu0 %v270
    %466 = vmatprep.subr.mxu0 0.0
    %467 = vmatpush1.msra.mxu0 %v271
    %468 = vmatprep.subr.mxu0 0.0
    %469 = vmatpush1.msra.mxu0 %v272
    %470 = vmatprep.subr.mxu0 0.0
    %471 = vmatpush1.msra.mxu0 %v273
    %472 = vmatprep.subr.mxu0 0.0
    %473 = vmatpush1.msra.mxu0 %v274
    %474 = vmatprep.subr.mxu0 0.0
    %475 = vmatpush1.msra.mxu0 %v275
    %476 = vmatprep.subr.mxu0 0.0
    %477 = vmatpush1.msra.mxu0 %v276
    %478 = vmatprep.subr.mxu0 0.0
    %479 = vmatpush1.msra.mxu0 %v277
    %480 = vmatprep.subr.mxu0 0.0
    %481 = vmatpush1.msra.mxu0 %v278
    %482 = vmatprep.subr.mxu0 0.0
    %483 = vmatpush1.msra.mxu0 %v279
    %484 = vmatprep.subr.mxu0 0.0
    %485 = vmatpush1.msra.mxu0 %v280
    %486 = vmatprep.subr.mxu0 0.0
    %487 = vmatpush1.msra.mxu0 %v281
    %488 = vmatprep.subr.mxu0 0.0
    %489 = vmatpush1.msra.mxu0 %v282
    %490 = vmatprep.subr.mxu0 0.0
    %491 = vmatpush1.msra.mxu0 %v283
    %492 = vmatprep.subr.mxu0 0.0
    %493 = vmatpush1.msra.mxu0 %v322
    %494 = vmatprep.subr.mxu0 0.0
    %495 = vmatpush1.msra.mxu0 0.0
    %496 = vmatprep.subr.mxu0 0.0
    %497 = vmatpush1.msra.mxu0 0.0
    %498 = vmatprep.mubr.f32.mxu0 %v294
    %499 = vmatmul.mubr.f32.gmra.mrb[0].mxu0 %v189
    %v500 = vpop.f32.mrb[0].mxu0
    %v501 = vadd.f32 %v391, %v500
    %v502 = vpop.f32.mrb[0].mxu0
    %503 = vmatprep.mubr.f32.mxu0 %v297
    %504 = vmatmul.mubr.f32.gmra.mrb[0].mxu0 %v193
    %v505 = vpop.f32.mrb[0].mxu0
    %v506 = vadd.f32 %v396, %v505
    %v507 = vpop.f32.mrb[0].mxu0
    %508 = vmatprep.mubr.f32.mxu0 %v300
    %509 = vmatmul.mubr.f32.gmra.mrb[0].mxu0 %v197
    %v510 = vpop.f32.mrb[0].mxu0
    %v511 = vadd.f32 %v401, %v510
    %v512 = vpop.f32.mrb[0].mxu0
    %513 = vmatprep.mubr.f32.mxu0 %v303
    %514 = vmatmul.mubr.f32.gmra.mrb[0].mxu0 %v201
    %v515 = vpop.f32.mrb[0].mxu0
    %v516 = vadd.f32 %v406, %v515
    %v517 = vpop.f32.mrb[0].mxu0
    %518 = vmatprep.mubr.f32.mxu0 %v306
    %519 = vmatmul.mubr.f32.gmra.mrb[0].mxu0 %v205
    %v520 = vpop.f32.mrb[0].mxu0
    %v521 = vadd.f32 %v411, %v520
    %v522 = vpop.f32.mrb[0].mxu0
    %523 = vmatprep.mubr.f32.mxu0 %v309
    %524 = vmatmul.mubr.f32.gmra.mrb[0].mxu0 %v209
    %v525 = vpop.f32.mrb[0].mxu0
    %v526 = vadd.f32 %v416, %v525
    %v527 = vpop.f32.mrb[0].mxu0
    %528 = vmatprep.mubr.f32.mxu0 %v312
    %529 = vmatmul.mubr.f32.gmra.mrb[0].mxu0 %v213
    %v530 = vpop.f32.mrb[0].mxu0
    %v531 = vadd.f32 %v421, %v530
    %v532 = vpop.f32.mrb[0].mxu0
    %533 = vmatprep.mubr.f32.mxu0 %v315
    %534 = vmatmul.mubr.f32.gmra.mrb[0].mxu0 %v217
    %v535 = vpop.f32.mrb[0].mxu0
    %v536 = vadd.f32 %v426, %v535
    %v537 = vpop.f32.mrb[0].mxu0
    %538 = vmatprep.mubr.f32.mxu0 %v318
    %539 = vmatmul.mubr.f32.gmra.mrb[0].mxu0 %v221
    %v540 = vpop.f32.mrb[0].mxu0
    %v541 = vadd.f32 %v431, %v540
    %v542 = vpop.f32.mrb[0].mxu0
    %543 = vdwg.mxu0
    %v544 = vmax.f32 %v501, 0.0
    %v545 = vmax.f32 %v506, 0.0
    %v546 = vmax.f32 %v511, 0.0
    %v547 = vmax.f32 %v516, 0.0
    %v548 = vmax.f32 %v521, 0.0
    %v549 = vmax.f32 %v526, 0.0
    %v550 = vmax.f32 %v531, 0.0
    %v551 = vmax.f32 %v536, 0.0
    %v552 = vmax.f32 %v541, 0.0
    %v553 = vld [vmem:[%s7] sm:$0xff]
    %v554 = vld [vmem:[%s7 + $0x8] sm:$0xff]
    %v555 = vld [vmem:[%s7 + $0x10] sm:$0xff]
    %v556 = vld [vmem:[%s7 + $0x18] sm:$0xff]
    %v557 = vld [vmem:[%s7 + $0x20] sm:$0x3]
    %vm558 = vcmask 556032
    %v560 = vsel %vm558, %v553, 0
    %v563 = vsel %vm558, %v554, 0
    %v566 = vsel %vm558, %v555, 0
    %v569 = vsel %vm558, %v556, 0
    %v572 = vsel %vm558, %v557, 0
    %vm574 = vcmask 1043456
    %v576 = vsel %vm574, %v552, 0
    %578 = vmatprep.subr.mxu0 0.0
    %579 = vmatpush1.msra.mxu0 %v544
    %580 = vmatprep.subr.mxu0 0.0
    %581 = vmatpush1.msra.mxu0 %v545
    %582 = vmatprep.subr.mxu0 0.0
    %583 = vmatpush1.msra.mxu0 %v546
    %584 = vmatprep.subr.mxu0 0.0
    %585 = vmatpush1.msra.mxu0 %v547
    %586 = vmatprep.subr.mxu0 0.0
    %587 = vmatpush1.msra.mxu0 %v548
    %588 = vmatprep.subr.mxu0 0.0
    %589 = vmatpush1.msra.mxu0 %v549
    %590 = vmatprep.subr.mxu0 0.0
    %591 = vmatpush1.msra.mxu0 %v550
    %592 = vmatprep.subr.mxu0 0.0
    %593 = vmatpush1.msra.mxu0 %v551
    %594 = vmatprep.subr.mxu0 0.0
    %595 = vmatpush1.msra.mxu0 %v576
    %596 = vmatprep.subr.mxu0 0.0
    %597 = vmatpush1.msra.mxu0 0.0
    %598 = vmatprep.subr.mxu0 0.0
    %599 = vmatpush1.msra.mxu0 0.0
    %600 = vmatprep.subr.mxu0 0.0
    %601 = vmatpush1.msra.mxu0 0.0
    %602 = vmatprep.subr.mxu0 0.0
    %603 = vmatpush1.msra.mxu0 0.0
    %604 = vmatprep.subr.mxu0 0.0
    %605 = vmatpush1.msra.mxu0 0.0
    %606 = vmatprep.subr.mxu0 0.0
    %607 = vmatpush1.msra.mxu0 0.0
    %608 = vmatprep.subr.mxu0 0.0
    %609 = vmatpush1.msra.mxu0 0.0
    %610 = vmatprep.subr.mxu0 0.0
    %611 = vmatpush1.msra.mxu0 0.0
    %612 = vmatprep.subr.mxu0 0.0
    %613 = vmatpush1.msra.mxu0 0.0
    %614 = vmatprep.subr.mxu0 0.0
    %615 = vmatpush1.msra.mxu0 0.0
    %616 = vmatprep.subr.mxu0 0.0
    %617 = vmatpush1.msra.mxu0 0.0
    %618 = vmatprep.subr.mxu0 0.0
    %619 = vmatpush1.msra.mxu0 0.0
    %620 = vmatprep.subr.mxu0 0.0
    %621 = vmatpush1.msra.mxu0 0.0
    %622 = vmatprep.subr.mxu0 0.0
    %623 = vmatpush1.msra.mxu0 0.0
    %624 = vmatprep.subr.mxu0 0.0
    %625 = vmatpush1.msra.mxu0 0.0
    %626 = vmatprep.subr.mxu0 0.0
    %627 = vmatpush1.msra.mxu0 0.0
    %628 = vmatprep.subr.mxu0 0.0
    %629 = vmatpush1.msra.mxu0 0.0
    %630 = vmatprep.subr.mxu0 0.0
    %631 = vmatpush1.msra.mxu0 0.0
    %632 = vmatprep.subr.mxu0 0.0
    %633 = vmatpush1.msra.mxu0 0.0
    %634 = vmatprep.subr.mxu0 0.0
    %635 = vmatpush1.msra.mxu0 0.0
    %636 = vmatprep.subr.mxu0 0.0
    %637 = vmatpush1.msra.mxu0 0.0
    %638 = vmatprep.subr.mxu0 0.0
    %639 = vmatpush1.msra.mxu0 0.0
    %640 = vmatprep.subr.mxu0 0.0
    %641 = vmatpush1.msra.mxu0 0.0
    %642 = vmatprep.mubr.f32.mxu0 0.0
    %643 = vmatmul.mubr.f32.gmra.mrb[0].mxu0 %v560
    %v644 = vpop.f32.mrb[0].mxu0
    %v645 = vadd.f32 0.0, %v644
    %v646 = vpop.f32.mrb[0].mxu0
    %647 = vmatprep.mubr.f32.mxu0 0.0
    %648 = vmatmul.mubr.f32.gmra.mrb[0].mxu0 %v563
    %v649 = vpop.f32.mrb[0].mxu0
    %v650 = vadd.f32 0.0, %v649
    %v651 = vpop.f32.mrb[0].mxu0
    %652 = vmatprep.mubr.f32.mxu0 0.0
    %653 = vmatmul.mubr.f32.gmra.mrb[0].mxu0 %v566
    %v654 = vpop.f32.mrb[0].mxu0
    %v655 = vadd.f32 0.0, %v654
    %v656 = vpop.f32.mrb[0].mxu0
    %657 = vmatprep.mubr.f32.mxu0 0.0
    %658 = vmatmul.mubr.f32.gmra.mrb[0].mxu0 %v569
    %v659 = vpop.f32.mrb[0].mxu0
    %v660 = vadd.f32 0.0, %v659
    %v661 = vpop.f32.mrb[0].mxu0
    %662 = vmatprep.mubr.f32.mxu0 0.0
    %663 = vmatmul.mubr.f32.gmra.mrb[0].mxu0 %v572
    %v664 = vpop.f32.mrb[0].mxu0
    %v665 = vadd.f32 0.0, %v664
    %v666 = vpop.f32.mrb[0].mxu0
    %667 = vdwg.mxu0
    %v668 = vld [vmem:[%s9] sm:$0xff]
    %v669 = vld [vmem:[%s9 + $0x8] sm:$0xff]
    %v670 = vld [vmem:[%s9 + $0x10] sm:$0xff]
    %v671 = vld [vmem:[%s9 + $0x18] sm:$0xff]
    %v672 = vld [vmem:[%s9 + $0x20] sm:$0x3]
    %v674 = vsel %vm558, %v668, 0
    %v677 = vsel %vm558, %v669, 0
    %v680 = vsel %vm558, %v670, 0
    %v683 = vsel %vm558, %v671, 0
    %v686 = vsel %vm558, %v672, 0
    %688 = vmatprep.subr.mxu0 0.0
    %689 = vmatpush1.msra.mxu0 %v544
    %690 = vmatprep.subr.mxu0 0.0
    %691 = vmatpush1.msra.mxu0 %v545
    %692 = vmatprep.subr.mxu0 0.0
    %693 = vmatpush1.msra.mxu0 %v546
    %694 = vmatprep.subr.mxu0 0.0
    %695 = vmatpush1.msra.mxu0 %v547
    %696 = vmatprep.subr.mxu0 0.0
    %697 = vmatpush1.msra.mxu0 %v548
    %698 = vmatprep.subr.mxu0 0.0
    %699 = vmatpush1.msra.mxu0 %v549
    %700 = vmatprep.subr.mxu0 0.0
    %701 = vmatpush1.msra.mxu0 %v550
    %702 = vmatprep.subr.mxu0 0.0
    %703 = vmatpush1.msra.mxu0 %v551
    %704 = vmatprep.subr.mxu0 0.0
    %705 = vmatpush1.msra.mxu0 %v576
    %706 = vmatprep.subr.mxu0 0.0
    %707 = vmatpush1.msra.mxu0 0.0
    %708 = vmatprep.subr.mxu0 0.0
    %709 = vmatpush1.msra.mxu0 0.0
    %710 = vmatprep.subr.mxu0 0.0
    %711 = vmatpush1.msra.mxu0 0.0
    %712 = vmatprep.subr.mxu0 0.0
    %713 = vmatpush1.msra.mxu0 0.0
    %714 = vmatprep.subr.mxu0 0.0
    %715 = vmatpush1.msra.mxu0 0.0
    %716 = vmatprep.subr.mxu0 0.0
    %717 = vmatpush1.msra.mxu0 0.0
    %718 = vmatprep.subr.mxu0 0.0
    %719 = vmatpush1.msra.mxu0 0.0
    %720 = vmatprep.subr.mxu0 0.0
    %721 = vmatpush1.msra.mxu0 0.0
    %722 = vmatprep.subr.mxu0 0.0
    %723 = vmatpush1.msra.mxu0 0.0
    %724 = vmatprep.subr.mxu0 0.0
    %725 = vmatpush1.msra.mxu0 0.0
    %726 = vmatprep.subr.mxu0 0.0
    %727 = vmatpush1.msra.mxu0 0.0
    %728 = vmatprep.subr.mxu0 0.0
    %729 = vmatpush1.msra.mxu0 0.0
    %730 = vmatprep.subr.mxu0 0.0
    %731 = vmatpush1.msra.mxu0 0.0
    %732 = vmatprep.subr.mxu0 0.0
    %733 = vmatpush1.msra.mxu0 0.0
    %734 = vmatprep.subr.mxu0 0.0
    %735 = vmatpush1.msra.mxu0 0.0
    %736 = vmatprep.subr.mxu0 0.0
    %737 = vmatpush1.msra.mxu0 0.0
    %738 = vmatprep.subr.mxu0 0.0
    %739 = vmatpush1.msra.mxu0 0.0
    %740 = vmatprep.subr.mxu0 0.0
    %741 = vmatpush1.msra.mxu0 0.0
    %742 = vmatprep.subr.mxu0 0.0
    %743 = vmatpush1.msra.mxu0 0.0
    %744 = vmatprep.subr.mxu0 0.0
    %745 = vmatpush1.msra.mxu0 0.0
    %746 = vmatprep.subr.mxu0 0.0
    %747 = vmatpush1.msra.mxu0 0.0
    %748 = vmatprep.subr.mxu0 0.0
    %749 = vmatpush1.msra.mxu0 0.0
    %750 = vmatprep.subr.mxu0 0.0
    %751 = vmatpush1.msra.mxu0 0.0
    %752 = vmatprep.mubr.f32.mxu0 0.0
    %753 = vmatmul.mubr.f32.gmra.mrb[0].mxu0 %v674
    %v754 = vpop.f32.mrb[0].mxu0
    %v755 = vadd.f32 0.0, %v754
    %v756 = vpop.f32.mrb[0].mxu0
    %757 = vmatprep.mubr.f32.mxu0 0.0
    %758 = vmatmul.mubr.f32.gmra.mrb[0].mxu0 %v677
    %v759 = vpop.f32.mrb[0].mxu0
    %v760 = vadd.f32 0.0, %v759
    %v761 = vpop.f32.mrb[0].mxu0
    %762 = vmatprep.mubr.f32.mxu0 0.0
    %763 = vmatmul.mubr.f32.gmra.mrb[0].mxu0 %v680
    %v764 = vpop.f32.mrb[0].mxu0
    %v765 = vadd.f32 0.0, %v764
    %v766 = vpop.f32.mrb[0].mxu0
    %767 = vmatprep.mubr.f32.mxu0 0.0
    %768 = vmatmul.mubr.f32.gmra.mrb[0].mxu0 %v683
    %v769 = vpop.f32.mrb[0].mxu0
    %v770 = vadd.f32 0.0, %v769
    %v771 = vpop.f32.mrb[0].mxu0
    %772 = vmatprep.mubr.f32.mxu0 0.0
    %773 = vmatmul.mubr.f32.gmra.mrb[0].mxu0 %v686
    %v774 = vpop.f32.mrb[0].mxu0
    %v775 = vadd.f32 0.0, %v774
    %v776 = vpop.f32.mrb[0].mxu0
    %777 = vdwg.mxu0
    %v778 = vmax.f32 %v645, %v755
    %v779 = vmax.f32 %v650, %v760
    %v780 = vmax.f32 %v655, %v765
    %v781 = vmax.f32 %v660, %v770
    %v782 = vmax.f32 %v665, %v775
    %v783 = vld [vmem:[%s15] sm:$0x1]
    %v784 = vld [vmem:[%s11] sm:$0xff]
    %v785 = vld [vmem:[%s11 + $0x8] sm:$0xff]
    %vm786 = vcmask 277504
    %v788 = vsel %vm786, %v784, 0
    %v791 = vsel %vm786, %v785, 0
    %vm793 = vcmask 1041408
    %v795 = vsel %vm793, %v782, 0
    %797 = vmatprep.subr.mxu0 0.0
    %798 = vmatpush1.msra.mxu0 %v778
    %799 = vmatprep.subr.mxu0 0.0
    %800 = vmatpush1.msra.mxu0 %v779
    %801 = vmatprep.subr.mxu0 0.0
    %802 = vmatpush1.msra.mxu0 %v780
    %803 = vmatprep.subr.mxu0 0.0
    %804 = vmatpush1.msra.mxu0 %v781
    %805 = vmatprep.subr.mxu0 0.0
    %806 = vmatpush1.msra.mxu0 %v795
    %807 = vmatprep.subr.mxu0 0.0
    %808 = vmatpush1.msra.mxu0 0.0
    %809 = vmatprep.subr.mxu0 0.0
    %810 = vmatpush1.msra.mxu0 0.0
    %811 = vmatprep.subr.mxu0 0.0
    %812 = vmatpush1.msra.mxu0 0.0
    %813 = vmatprep.subr.mxu0 0.0
    %814 = vmatpush1.msra.mxu0 0.0
    %815 = vmatprep.subr.mxu0 0.0
    %816 = vmatpush1.msra.mxu0 0.0
    %817 = vmatprep.subr.mxu0 0.0
    %818 = vmatpush1.msra.mxu0 0.0
    %819 = vmatprep.subr.mxu0 0.0
    %820 = vmatpush1.msra.mxu0 0.0
    %821 = vmatprep.subr.mxu0 0.0
    %822 = vmatpush1.msra.mxu0 0.0
    %823 = vmatprep.subr.mxu0 0.0
    %824 = vmatpush1.msra.mxu0 0.0
    %825 = vmatprep.subr.mxu0 0.0
    %826 = vmatpush1.msra.mxu0 0.0
    %827 = vmatprep.subr.mxu0 0.0
    %828 = vmatpush1.msra.mxu0 0.0
    %829 = vmatprep.subr.mxu0 0.0
    %830 = vmatpush1.msra.mxu0 0.0
    %831 = vmatprep.subr.mxu0 0.0
    %832 = vmatpush1.msra.mxu0 0.0
    %833 = vmatprep.subr.mxu0 0.0
    %834 = vmatpush1.msra.mxu0 0.0
    %835 = vmatprep.subr.mxu0 0.0
    %836 = vmatpush1.msra.mxu0 0.0
    %837 = vmatprep.subr.mxu0 0.0
    %838 = vmatpush1.msra.mxu0 0.0
    %839 = vmatprep.subr.mxu0 0.0
    %840 = vmatpush1.msra.mxu0 0.0
    %841 = vmatprep.subr.mxu0 0.0
    %842 = vmatpush1.msra.mxu0 0.0
    %843 = vmatprep.subr.mxu0 0.0
    %844 = vmatpush1.msra.mxu0 0.0
    %845 = vmatprep.subr.mxu0 0.0
    %846 = vmatpush1.msra.mxu0 0.0
    %847 = vmatprep.subr.mxu0 0.0
    %848 = vmatpush1.msra.mxu0 0.0
    %849 = vmatprep.subr.mxu0 0.0
    %850 = vmatpush1.msra.mxu0 0.0
    %851 = vmatprep.subr.mxu0 0.0
    %852 = vmatpush1.msra.mxu0 0.0
    %853 = vmatprep.subr.mxu0 0.0
    %854 = vmatpush1.msra.mxu0 0.0
    %855 = vmatprep.subr.mxu0 0.0
    %856 = vmatpush1.msra.mxu0 0.0
    %857 = vmatprep.subr.mxu0 0.0
    %858 = vmatpush1.msra.mxu0 0.0
    %859 = vmatprep.subr.mxu0 0.0
    %860 = vmatpush1.msra.mxu0 0.0
    %861 = vmatprep.mubr.f32.mxu0 0.0
    %862 = vmatmul.mubr.f32.gmra.mrb[0].mxu0 %v788
    %v863 = vpop.f32.mrb[0].mxu0
    %v864 = vadd.f32 0.0, %v863
    %v865 = vpop.f32.mrb[0].mxu0
    %866 = vmatprep.mubr.f32.mxu0 0.0
    %867 = vmatmul.mubr.f32.gmra.mrb[0].mxu0 %v791
    %v868 = vpop.f32.mrb[0].mxu0
    %v869 = vadd.f32 0.0, %v868
    %v870 = vpop.f32.mrb[0].mxu0
    %871 = vdwg.mxu0
    %v872 = vld [vmem:[%s13] sm:$0xff]
    %v873 = vld [vmem:[%s13 + $0x8] sm:$0xff]
    %v874 = vld [vmem:[%s13 + $0x10] sm:$0xff]
    %v875 = vld [vmem:[%s13 + $0x18] sm:$0xff]
    %vm876 = vcmask 261120
    %v878 = vsel %vm876, %v864, 0
    %v881 = vsel %vm876, %v869, 0
    %883 = vmatprep.subr.mxu0 0.0
    %884 = vmatpush1.msra.mxu0 %v872
    %885 = vmatprep.subr.mxu0 0.0
    %886 = vmatpush1.msra.mxu0 %v873
    %887 = vmatprep.subr.mxu0 0.0
    %888 = vmatpush1.msra.mxu0 %v874
    %889 = vmatprep.subr.mxu0 0.0
    %890 = vmatpush1.msra.mxu0 %v875
    %891 = vmatprep.subr.mxu0 0.0
    %892 = vmatpush1.msra.mxu0 0.0
    %893 = vmatprep.subr.mxu0 0.0
    %894 = vmatpush1.msra.mxu0 0.0
    %895 = vmatprep.subr.mxu0 0.0
    %896 = vmatpush1.msra.mxu0 0.0
    %897 = vmatprep.subr.mxu0 0.0
    %898 = vmatpush1.msra.mxu0 0.0
    %899 = vmatprep.subr.mxu0 0.0
    %900 = vmatpush1.msra.mxu0 0.0
    %901 = vmatprep.subr.mxu0 0.0
    %902 = vmatpush1.msra.mxu0 0.0
    %903 = vmatprep.subr.mxu0 0.0
    %904 = vmatpush1.msra.mxu0 0.0
    %905 = vmatprep.subr.mxu0 0.0
    %906 = vmatpush1.msra.mxu0 0.0
    %907 = vmatprep.subr.mxu0 0.0
    %908 = vmatpush1.msra.mxu0 0.0
    %909 = vmatprep.subr.mxu0 0.0
    %910 = vmatpush1.msra.mxu0 0.0
    %911 = vmatprep.subr.mxu0 0.0
    %912 = vmatpush1.msra.mxu0 0.0
    %913 = vmatprep.subr.mxu0 0.0
    %914 = vmatpush1.msra.mxu0 0.0
    %915 = vmatprep.subr.mxu0 0.0
    %916 = vmatpush1.msra.mxu0 0.0
    %917 = vmatprep.subr.mxu0 0.0
    %918 = vmatpush1.msra.mxu0 0.0
    %919 = vmatprep.subr.mxu0 0.0
    %920 = vmatpush1.msra.mxu0 0.0
    %921 = vmatprep.subr.mxu0 0.0
    %922 = vmatpush1.msra.mxu0 0.0
    %923 = vmatprep.subr.mxu0 0.0
    %924 = vmatpush1.msra.mxu0 0.0
    %925 = vmatprep.subr.mxu0 0.0
    %926 = vmatpush1.msra.mxu0 0.0
    %927 = vmatprep.subr.mxu0 0.0
    %928 = vmatpush1.msra.mxu0 0.0
    %929 = vmatprep.subr.mxu0 0.0
    %930 = vmatpush1.msra.mxu0 0.0
    %931 = vmatprep.subr.mxu0 0.0
    %932 = vmatpush1.msra.mxu0 0.0
    %933 = vmatprep.subr.mxu0 0.0
    %934 = vmatpush1.msra.mxu0 0.0
    %935 = vmatprep.subr.mxu0 0.0
    %936 = vmatpush1.msra.mxu0 0.0
    %937 = vmatprep.subr.mxu0 0.0
    %938 = vmatpush1.msra.mxu0 0.0
    %939 = vmatprep.subr.mxu0 0.0
    %940 = vmatpush1.msra.mxu0 0.0
    %941 = vmatprep.subr.mxu0 0.0
    %942 = vmatpush1.msra.mxu0 0.0
    %943 = vmatprep.subr.mxu0 0.0
    %944 = vmatpush1.msra.mxu0 0.0
    %945 = vmatprep.subr.mxu0 0.0
    %946 = vmatpush1.msra.mxu0 0.0
    %947 = vmatprep.mubr.f32.mxu0 0.0
    %948 = vmatmul.mubr.f32.gmra.mrb[0].mxu0 %v878
    %v949 = vpop.f32.mrb[0].mxu0
    %v950 = vadd.f32 0.0, %v949
    %v951 = vpop.f32.mrb[0].mxu0
    %952 = vmatprep.mubr.f32.mxu0 0.0
    %953 = vmatmul.mubr.f32.gmra.mrb[0].mxu0 %v881
    %v954 = vpop.f32.mrb[0].mxu0
    %v955 = vadd.f32 0.0, %v954
    %v956 = vpop.f32.mrb[0].mxu0
    %957 = vdwg.mxu0
    %v959 = vlaneseq
    %v960 = vshrl.u32 %v959, 7
    %v961 = vsub.s32 0, %v960
    %v962 = vrot.slane %v783, %v961
    %v964 = vadd.f32 %v962, %v950
    %v965 = vadd.f32 %v962, %v955
    %s966 = scalar_lea.vmem %s11, 16
    %v967 = vld [vmem:[%s966] sm:$0xff]
    %v968 = vld [vmem:[%s966 + $0x8] sm:$0xff]
    %v970 = vsel %vm786, %v967, 0
    %v973 = vsel %vm786, %v968, 0
    %975 = vmatprep.subr.mxu0 0.0
    %976 = vmatpush1.msra.mxu0 %v778
    %977 = vmatprep.subr.mxu0 0.0
    %978 = vmatpush1.msra.mxu0 %v779
    %979 = vmatprep.subr.mxu0 0.0
    %980 = vmatpush1.msra.mxu0 %v780
    %981 = vmatprep.subr.mxu0 0.0
    %982 = vmatpush1.msra.mxu0 %v781
    %983 = vmatprep.subr.mxu0 0.0
    %984 = vmatpush1.msra.mxu0 %v795
    %985 = vmatprep.subr.mxu0 0.0
    %986 = vmatpush1.msra.mxu0 0.0
    %987 = vmatprep.subr.mxu0 0.0
    %988 = vmatpush1.msra.mxu0 0.0
    %989 = vmatprep.subr.mxu0 0.0
    %990 = vmatpush1.msra.mxu0 0.0
    %991 = vmatprep.subr.mxu0 0.0
    %992 = vmatpush1.msra.mxu0 0.0
    %993 = vmatprep.subr.mxu0 0.0
    %994 = vmatpush1.msra.mxu0 0.0
    %995 = vmatprep.subr.mxu0 0.0
    %996 = vmatpush1.msra.mxu0 0.0
    %997 = vmatprep.subr.mxu0 0.0
    %998 = vmatpush1.msra.mxu0 0.0
    %999 = vmatprep.subr.mxu0 0.0
    %1000 = vmatpush1.msra.mxu0 0.0
    %1001 = vmatprep.subr.mxu0 0.0
    %1002 = vmatpush1.msra.mxu0 0.0
    %1003 = vmatprep.subr.mxu0 0.0
    %1004 = vmatpush1.msra.mxu0 0.0
    %1005 = vmatprep.subr.mxu0 0.0
    %1006 = vmatpush1.msra.mxu0 0.0
    %1007 = vmatprep.subr.mxu0 0.0
    %1008 = vmatpush1.msra.mxu0 0.0
    %1009 = vmatprep.subr.mxu0 0.0
    %1010 = vmatpush1.msra.mxu0 0.0
    %1011 = vmatprep.subr.mxu0 0.0
    %1012 = vmatpush1.msra.mxu0 0.0
    %1013 = vmatprep.subr.mxu0 0.0
    %1014 = vmatpush1.msra.mxu0 0.0
    %1015 = vmatprep.subr.mxu0 0.0
    %1016 = vmatpush1.msra.mxu0 0.0
    %1017 = vmatprep.subr.mxu0 0.0
    %1018 = vmatpush1.msra.mxu0 0.0
    %1019 = vmatprep.subr.mxu0 0.0
    %1020 = vmatpush1.msra.mxu0 0.0
    %1021 = vmatprep.subr.mxu0 0.0
    %1022 = vmatpush1.msra.mxu0 0.0
    %1023 = vmatprep.subr.mxu0 0.0
    %1024 = vmatpush1.msra.mxu0 0.0
    %1025 = vmatprep.subr.mxu0 0.0
    %1026 = vmatpush1.msra.mxu0 0.0
    %1027 = vmatprep.subr.mxu0 0.0
    %1028 = vmatpush1.msra.mxu0 0.0
    %1029 = vmatprep.subr.mxu0 0.0
    %1030 = vmatpush1.msra.mxu0 0.0
    %1031 = vmatprep.subr.mxu0 0.0
    %1032 = vmatpush1.msra.mxu0 0.0
    %1033 = vmatprep.subr.mxu0 0.0
    %1034 = vmatpush1.msra.mxu0 0.0
    %1035 = vmatprep.subr.mxu0 0.0
    %1036 = vmatpush1.msra.mxu0 0.0
    %1037 = vmatprep.subr.mxu0 0.0
    %1038 = vmatpush1.msra.mxu0 0.0
    %1039 = vmatprep.mubr.f32.mxu0 0.0
    %1040 = vmatmul.mubr.f32.gmra.mrb[0].mxu0 %v970
    %v1041 = vpop.f32.mrb[0].mxu0
    %v1042 = vadd.f32 0.0, %v1041
    %v1043 = vpop.f32.mrb[0].mxu0
    %1044 = vmatprep.mubr.f32.mxu0 0.0
    %1045 = vmatmul.mubr.f32.gmra.mrb[0].mxu0 %v973
    %v1046 = vpop.f32.mrb[0].mxu0
    %v1047 = vadd.f32 0.0, %v1046
    %v1048 = vpop.f32.mrb[0].mxu0
    %1049 = vdwg.mxu0
    %s1050 = scalar_lea.vmem %s13, 32
    %v1051 = vld [vmem:[%s1050] sm:$0xff]
    %v1052 = vld [vmem:[%s1050 + $0x8] sm:$0xff]
    %v1053 = vld [vmem:[%s1050 + $0x10] sm:$0xff]
    %v1054 = vld [vmem:[%s1050 + $0x18] sm:$0xff]
    %v1056 = vsel %vm876, %v1042, 0
    %v1059 = vsel %vm876, %v1047, 0
    %1061 = vmatprep.subr.mxu0 0.0
    %1062 = vmatpush1.msra.mxu0 %v1051
    %1063 = vmatprep.subr.mxu0 0.0
    %1064 = vmatpush1.msra.mxu0 %v1052
    %1065 = vmatprep.subr.mxu0 0.0
    %1066 = vmatpush1.msra.mxu0 %v1053
    %1067 = vmatprep.subr.mxu0 0.0
    %1068 = vmatpush1.msra.mxu0 %v1054
    %1069 = vmatprep.subr.mxu0 0.0
    %1070 = vmatpush1.msra.mxu0 0.0
    %1071 = vmatprep.subr.mxu0 0.0
    %1072 = vmatpush1.msra.mxu0 0.0
    %1073 = vmatprep.subr.mxu0 0.0
    %1074 = vmatpush1.msra.mxu0 0.0
    %1075 = vmatprep.subr.mxu0 0.0
    %1076 = vmatpush1.msra.mxu0 0.0
    %1077 = vmatprep.subr.mxu0 0.0
    %1078 = vmatpush1.msra.mxu0 0.0
    %1079 = vmatprep.subr.mxu0 0.0
    %1080 = vmatpush1.msra.mxu0 0.0
    %1081 = vmatprep.subr.mxu0 0.0
    %1082 = vmatpush1.msra.mxu0 0.0
    %1083 = vmatprep.subr.mxu0 0.0
    %1084 = vmatpush1.msra.mxu0 0.0
    %1085 = vmatprep.subr.mxu0 0.0
    %1086 = vmatpush1.msra.mxu0 0.0
    %1087 = vmatprep.subr.mxu0 0.0
    %1088 = vmatpush1.msra.mxu0 0.0
    %1089 = vmatprep.subr.mxu0 0.0
    %1090 = vmatpush1.msra.mxu0 0.0
    %1091 = vmatprep.subr.mxu0 0.0
    %1092 = vmatpush1.msra.mxu0 0.0
    %1093 = vmatprep.subr.mxu0 0.0
    %1094 = vmatpush1.msra.mxu0 0.0
    %1095 = vmatprep.subr.mxu0 0.0
    %1096 = vmatpush1.msra.mxu0 0.0
    %1097 = vmatprep.subr.mxu0 0.0
    %1098 = vmatpush1.msra.mxu0 0.0
    %1099 = vmatprep.subr.mxu0 0.0
    %1100 = vmatpush1.msra.mxu0 0.0
    %1101 = vmatprep.subr.mxu0 0.0
    %1102 = vmatpush1.msra.mxu0 0.0
    %1103 = vmatprep.subr.mxu0 0.0
    %1104 = vmatpush1.msra.mxu0 0.0
    %1105 = vmatprep.subr.mxu0 0.0
    %1106 = vmatpush1.msra.mxu0 0.0
    %1107 = vmatprep.subr.mxu0 0.0
    %1108 = vmatpush1.msra.mxu0 0.0
    %1109 = vmatprep.subr.mxu0 0.0
    %1110 = vmatpush1.msra.mxu0 0.0
    %1111 = vmatprep.subr.mxu0 0.0
    %1112 = vmatpush1.msra.mxu0 0.0
    %1113 = vmatprep.subr.mxu0 0.0
    %1114 = vmatpush1.msra.mxu0 0.0
    %1115 = vmatprep.subr.mxu0 0.0
    %1116 = vmatpush1.msra.mxu0 0.0
    %1117 = vmatprep.subr.mxu0 0.0
    %1118 = vmatpush1.msra.mxu0 0.0
    %1119 = vmatprep.subr.mxu0 0.0
    %1120 = vmatpush1.msra.mxu0 0.0
    %1121 = vmatprep.subr.mxu0 0.0
    %1122 = vmatpush1.msra.mxu0 0.0
    %1123 = vmatprep.subr.mxu0 0.0
    %1124 = vmatpush1.msra.mxu0 0.0
    %1125 = vmatprep.mubr.f32.mxu0 0.0
    %1126 = vmatmul.mubr.f32.gmra.mrb[0].mxu0 %v1056
    %v1127 = vpop.f32.mrb[0].mxu0
    %v1128 = vadd.f32 0.0, %v1127
    %v1129 = vpop.f32.mrb[0].mxu0
    %1130 = vmatprep.mubr.f32.mxu0 0.0
    %1131 = vmatmul.mubr.f32.gmra.mrb[0].mxu0 %v1059
    %v1132 = vpop.f32.mrb[0].mxu0
    %v1133 = vadd.f32 0.0, %v1132
    %v1134 = vpop.f32.mrb[0].mxu0
    %1135 = vdwg.mxu0
    %v1136 = vadd.f32 %v964, %v1128
    %v1137 = vadd.f32 %v965, %v1133
    %s1138 = scalar_lea.vmem %s11, 32
    %v1139 = vld [vmem:[%s1138] sm:$0xff]
    %v1140 = vld [vmem:[%s1138 + $0x8] sm:$0xff]
    %v1142 = vsel %vm786, %v1139, 0
    %v1145 = vsel %vm786, %v1140, 0
    %1147 = vmatprep.subr.mxu0 0.0
    %1148 = vmatpush1.msra.mxu0 %v778
    %1149 = vmatprep.subr.mxu0 0.0
    %1150 = vmatpush1.msra.mxu0 %v779
    %1151 = vmatprep.subr.mxu0 0.0
    %1152 = vmatpush1.msra.mxu0 %v780
    %1153 = vmatprep.subr.mxu0 0.0
    %1154 = vmatpush1.msra.mxu0 %v781
    %1155 = vmatprep.subr.mxu0 0.0
    %1156 = vmatpush1.msra.mxu0 %v795
    %1157 = vmatprep.subr.mxu0 0.0
    %1158 = vmatpush1.msra.mxu0 0.0
    %1159 = vmatprep.subr.mxu0 0.0
    %1160 = vmatpush1.msra.mxu0 0.0
    %1161 = vmatprep.subr.mxu0 0.0
    %1162 = vmatpush1.msra.mxu0 0.0
    %1163 = vmatprep.subr.mxu0 0.0
    %1164 = vmatpush1.msra.mxu0 0.0
    %1165 = vmatprep.subr.mxu0 0.0
    %1166 = vmatpush1.msra.mxu0 0.0
    %1167 = vmatprep.subr.mxu0 0.0
    %1168 = vmatpush1.msra.mxu0 0.0
    %1169 = vmatprep.subr.mxu0 0.0
    %1170 = vmatpush1.msra.mxu0 0.0
    %1171 = vmatprep.subr.mxu0 0.0
    %1172 = vmatpush1.msra.mxu0 0.0
    %1173 = vmatprep.subr.mxu0 0.0
    %1174 = vmatpush1.msra.mxu0 0.0
    %1175 = vmatprep.subr.mxu0 0.0
    %1176 = vmatpush1.msra.mxu0 0.0
    %1177 = vmatprep.subr.mxu0 0.0
    %1178 = vmatpush1.msra.mxu0 0.0
    %1179 = vmatprep.subr.mxu0 0.0
    %1180 = vmatpush1.msra.mxu0 0.0
    %1181 = vmatprep.subr.mxu0 0.0
    %1182 = vmatpush1.msra.mxu0 0.0
    %1183 = vmatprep.subr.mxu0 0.0
    %1184 = vmatpush1.msra.mxu0 0.0
    %1185 = vmatprep.subr.mxu0 0.0
    %1186 = vmatpush1.msra.mxu0 0.0
    %1187 = vmatprep.subr.mxu0 0.0
    %1188 = vmatpush1.msra.mxu0 0.0
    %1189 = vmatprep.subr.mxu0 0.0
    %1190 = vmatpush1.msra.mxu0 0.0
    %1191 = vmatprep.subr.mxu0 0.0
    %1192 = vmatpush1.msra.mxu0 0.0
    %1193 = vmatprep.subr.mxu0 0.0
    %1194 = vmatpush1.msra.mxu0 0.0
    %1195 = vmatprep.subr.mxu0 0.0
    %1196 = vmatpush1.msra.mxu0 0.0
    %1197 = vmatprep.subr.mxu0 0.0
    %1198 = vmatpush1.msra.mxu0 0.0
    %1199 = vmatprep.subr.mxu0 0.0
    %1200 = vmatpush1.msra.mxu0 0.0
    %1201 = vmatprep.subr.mxu0 0.0
    %1202 = vmatpush1.msra.mxu0 0.0
    %1203 = vmatprep.subr.mxu0 0.0
    %1204 = vmatpush1.msra.mxu0 0.0
    %1205 = vmatprep.subr.mxu0 0.0
    %1206 = vmatpush1.msra.mxu0 0.0
    %1207 = vmatprep.subr.mxu0 0.0
    %1208 = vmatpush1.msra.mxu0 0.0
    %1209 = vmatprep.subr.mxu0 0.0
    %1210 = vmatpush1.msra.mxu0 0.0
    %1211 = vmatprep.mubr.f32.mxu0 0.0
    %1212 = vmatmul.mubr.f32.gmra.mrb[0].mxu0 %v1142
    %v1213 = vpop.f32.mrb[0].mxu0
    %v1214 = vadd.f32 0.0, %v1213
    %v1215 = vpop.f32.mrb[0].mxu0
    %1216 = vmatprep.mubr.f32.mxu0 0.0
    %1217 = vmatmul.mubr.f32.gmra.mrb[0].mxu0 %v1145
    %v1218 = vpop.f32.mrb[0].mxu0
    %v1219 = vadd.f32 0.0, %v1218
    %v1220 = vpop.f32.mrb[0].mxu0
    %1221 = vdwg.mxu0
    %s1222 = scalar_lea.vmem %s13, 64
    %v1223 = vld [vmem:[%s1222] sm:$0xff]
    %v1224 = vld [vmem:[%s1222 + $0x8] sm:$0xff]
    %v1225 = vld [vmem:[%s1222 + $0x10] sm:$0xff]
    %v1226 = vld [vmem:[%s1222 + $0x18] sm:$0xff]
    %v1228 = vsel %vm876, %v1214, 0
    %v1231 = vsel %vm876, %v1219, 0
    %1233 = vmatprep.subr.mxu0 0.0
    %1234 = vmatpush1.msra.mxu0 %v1223
    %1235 = vmatprep.subr.mxu0 0.0
    %1236 = vmatpush1.msra.mxu0 %v1224
    %1237 = vmatprep.subr.mxu0 0.0
    %1238 = vmatpush1.msra.mxu0 %v1225
    %1239 = vmatprep.subr.mxu0 0.0
    %1240 = vmatpush1.msra.mxu0 %v1226
    %1241 = vmatprep.subr.mxu0 0.0
    %1242 = vmatpush1.msra.mxu0 0.0
    %1243 = vmatprep.subr.mxu0 0.0
    %1244 = vmatpush1.msra.mxu0 0.0
    %1245 = vmatprep.subr.mxu0 0.0
    %1246 = vmatpush1.msra.mxu0 0.0
    %1247 = vmatprep.subr.mxu0 0.0
    %1248 = vmatpush1.msra.mxu0 0.0
    %1249 = vmatprep.subr.mxu0 0.0
    %1250 = vmatpush1.msra.mxu0 0.0
    %1251 = vmatprep.subr.mxu0 0.0
    %1252 = vmatpush1.msra.mxu0 0.0
    %1253 = vmatprep.subr.mxu0 0.0
    %1254 = vmatpush1.msra.mxu0 0.0
    %1255 = vmatprep.subr.mxu0 0.0
    %1256 = vmatpush1.msra.mxu0 0.0
    %1257 = vmatprep.subr.mxu0 0.0
    %1258 = vmatpush1.msra.mxu0 0.0
    %1259 = vmatprep.subr.mxu0 0.0
    %1260 = vmatpush1.msra.mxu0 0.0
    %1261 = vmatprep.subr.mxu0 0.0
    %1262 = vmatpush1.msra.mxu0 0.0
    %1263 = vmatprep.subr.mxu0 0.0
    %1264 = vmatpush1.msra.mxu0 0.0
    %1265 = vmatprep.subr.mxu0 0.0
    %1266 = vmatpush1.msra.mxu0 0.0
    %1267 = vmatprep.subr.mxu0 0.0
    %1268 = vmatpush1.msra.mxu0 0.0
    %1269 = vmatprep.subr.mxu0 0.0
    %1270 = vmatpush1.msra.mxu0 0.0
    %1271 = vmatprep.subr.mxu0 0.0
    %1272 = vmatpush1.msra.mxu0 0.0
    %1273 = vmatprep.subr.mxu0 0.0
    %1274 = vmatpush1.msra.mxu0 0.0
    %1275 = vmatprep.subr.mxu0 0.0
    %1276 = vmatpush1.msra.mxu0 0.0
    %1277 = vmatprep.subr.mxu0 0.0
    %1278 = vmatpush1.msra.mxu0 0.0
    %1279 = vmatprep.subr.mxu0 0.0
    %1280 = vmatpush1.msra.mxu0 0.0
    %1281 = vmatprep.subr.mxu0 0.0
    %1282 = vmatpush1.msra.mxu0 0.0
    %1283 = vmatprep.subr.mxu0 0.0
    %1284 = vmatpush1.msra.mxu0 0.0
    %1285 = vmatprep.subr.mxu0 0.0
    %1286 = vmatpush1.msra.mxu0 0.0
    %1287 = vmatprep.subr.mxu0 0.0
    %1288 = vmatpush1.msra.mxu0 0.0
    %1289 = vmatprep.subr.mxu0 0.0
    %1290 = vmatpush1.msra.mxu0 0.0
    %1291 = vmatprep.subr.mxu0 0.0
    %1292 = vmatpush1.msra.mxu0 0.0
    %1293 = vmatprep.subr.mxu0 0.0
    %1294 = vmatpush1.msra.mxu0 0.0
    %1295 = vmatprep.subr.mxu0 0.0
    %1296 = vmatpush1.msra.mxu0 0.0
    %1297 = vmatprep.mubr.f32.mxu0 0.0
    %1298 = vmatmul.mubr.f32.gmra.mrb[0].mxu0 %v1228
    %v1299 = vpop.f32.mrb[0].mxu0
    %v1300 = vadd.f32 0.0, %v1299
    %v1301 = vpop.f32.mrb[0].mxu0
    %1302 = vmatprep.mubr.f32.mxu0 0.0
    %1303 = vmatmul.mubr.f32.gmra.mrb[0].mxu0 %v1231
    %v1304 = vpop.f32.mrb[0].mxu0
    %v1305 = vadd.f32 0.0, %v1304
    %v1306 = vpop.f32.mrb[0].mxu0
    %1307 = vdwg.mxu0
    %v1308 = vadd.f32 %v1136, %v1300
    %v1309 = vadd.f32 %v1137, %v1305
    %s1310 = scalar_lea.vmem %s11, 48
    %v1311 = vld [vmem:[%s1310] sm:$0xff]
    %v1312 = vld [vmem:[%s1310 + $0x8] sm:$0xff]
    %v1314 = vsel %vm786, %v1311, 0
    %v1317 = vsel %vm786, %v1312, 0
    %1319 = vmatprep.subr.mxu0 0.0
    %1320 = vmatpush1.msra.mxu0 %v778
    %1321 = vmatprep.subr.mxu0 0.0
    %1322 = vmatpush1.msra.mxu0 %v779
    %1323 = vmatprep.subr.mxu0 0.0
    %1324 = vmatpush1.msra.mxu0 %v780
    %1325 = vmatprep.subr.mxu0 0.0
    %1326 = vmatpush1.msra.mxu0 %v781
    %1327 = vmatprep.subr.mxu0 0.0
    %1328 = vmatpush1.msra.mxu0 %v795
    %1329 = vmatprep.subr.mxu0 0.0
    %1330 = vmatpush1.msra.mxu0 0.0
    %1331 = vmatprep.subr.mxu0 0.0
    %1332 = vmatpush1.msra.mxu0 0.0
    %1333 = vmatprep.subr.mxu0 0.0
    %1334 = vmatpush1.msra.mxu0 0.0
    %1335 = vmatprep.subr.mxu0 0.0
    %1336 = vmatpush1.msra.mxu0 0.0
    %1337 = vmatprep.subr.mxu0 0.0
    %1338 = vmatpush1.msra.mxu0 0.0
    %1339 = vmatprep.subr.mxu0 0.0
    %1340 = vmatpush1.msra.mxu0 0.0
    %1341 = vmatprep.subr.mxu0 0.0
    %1342 = vmatpush1.msra.mxu0 0.0
    %1343 = vmatprep.subr.mxu0 0.0
    %1344 = vmatpush1.msra.mxu0 0.0
    %1345 = vmatprep.subr.mxu0 0.0
    %1346 = vmatpush1.msra.mxu0 0.0
    %1347 = vmatprep.subr.mxu0 0.0
    %1348 = vmatpush1.msra.mxu0 0.0
    %1349 = vmatprep.subr.mxu0 0.0
    %1350 = vmatpush1.msra.mxu0 0.0
    %1351 = vmatprep.subr.mxu0 0.0
    %1352 = vmatpush1.msra.mxu0 0.0
    %1353 = vmatprep.subr.mxu0 0.0
    %1354 = vmatpush1.msra.mxu0 0.0
    %1355 = vmatprep.subr.mxu0 0.0
    %1356 = vmatpush1.msra.mxu0 0.0
    %1357 = vmatprep.subr.mxu0 0.0
    %1358 = vmatpush1.msra.mxu0 0.0
    %1359 = vmatprep.subr.mxu0 0.0
    %1360 = vmatpush1.msra.mxu0 0.0
    %1361 = vmatprep.subr.mxu0 0.0
    %1362 = vmatpush1.msra.mxu0 0.0
    %1363 = vmatprep.subr.mxu0 0.0
    %1364 = vmatpush1.msra.mxu0 0.0
    %1365 = vmatprep.subr.mxu0 0.0
    %1366 = vmatpush1.msra.mxu0 0.0
    %1367 = vmatprep.subr.mxu0 0.0
    %1368 = vmatpush1.msra.mxu0 0.0
    %1369 = vmatprep.subr.mxu0 0.0
    %1370 = vmatpush1.msra.mxu0 0.0
    %1371 = vmatprep.subr.mxu0 0.0
    %1372 = vmatpush1.msra.mxu0 0.0
    %1373 = vmatprep.subr.mxu0 0.0
    %1374 = vmatpush1.msra.mxu0 0.0
    %1375 = vmatprep.subr.mxu0 0.0
    %1376 = vmatpush1.msra.mxu0 0.0
    %1377 = vmatprep.subr.mxu0 0.0
    %1378 = vmatpush1.msra.mxu0 0.0
    %1379 = vmatprep.subr.mxu0 0.0
    %1380 = vmatpush1.msra.mxu0 0.0
    %1381 = vmatprep.subr.mxu0 0.0
    %1382 = vmatpush1.msra.mxu0 0.0
    %1383 = vmatprep.mubr.f32.mxu0 0.0
    %1384 = vmatmul.mubr.f32.gmra.mrb[0].mxu0 %v1314
    %v1385 = vpop.f32.mrb[0].mxu0
    %v1386 = vadd.f32 0.0, %v1385
    %v1387 = vpop.f32.mrb[0].mxu0
    %1388 = vmatprep.mubr.f32.mxu0 0.0
    %1389 = vmatmul.mubr.f32.gmra.mrb[0].mxu0 %v1317
    %v1390 = vpop.f32.mrb[0].mxu0
    %v1391 = vadd.f32 0.0, %v1390
    %v1392 = vpop.f32.mrb[0].mxu0
    %1393 = vdwg.mxu0
    %s1394 = scalar_lea.vmem %s13, 96
    %v1395 = vld [vmem:[%s1394] sm:$0xff]
    %v1396 = vld [vmem:[%s1394 + $0x8] sm:$0xff]
    %v1397 = vld [vmem:[%s1394 + $0x10] sm:$0xff]
    %v1398 = vld [vmem:[%s1394 + $0x18] sm:$0xff]
    %v1400 = vsel %vm876, %v1386, 0
    %v1403 = vsel %vm876, %v1391, 0
    %1405 = vmatprep.subr.mxu0 0.0
    %1406 = vmatpush1.msra.mxu0 %v1395
    %1407 = vmatprep.subr.mxu0 0.0
    %1408 = vmatpush1.msra.mxu0 %v1396
    %1409 = vmatprep.subr.mxu0 0.0
    %1410 = vmatpush1.msra.mxu0 %v1397
    %1411 = vmatprep.subr.mxu0 0.0
    %1412 = vmatpush1.msra.mxu0 %v1398
    %1413 = vmatprep.subr.mxu0 0.0
    %1414 = vmatpush1.msra.mxu0 0.0
    %1415 = vmatprep.subr.mxu0 0.0
    %1416 = vmatpush1.msra.mxu0 0.0
    %1417 = vmatprep.subr.mxu0 0.0
    %1418 = vmatpush1.msra.mxu0 0.0
    %1419 = vmatprep.subr.mxu0 0.0
    %1420 = vmatpush1.msra.mxu0 0.0
    %1421 = vmatprep.subr.mxu0 0.0
    %1422 = vmatpush1.msra.mxu0 0.0
    %1423 = vmatprep.subr.mxu0 0.0
    %1424 = vmatpush1.msra.mxu0 0.0
    %1425 = vmatprep.subr.mxu0 0.0
    %1426 = vmatpush1.msra.mxu0 0.0
    %1427 = vmatprep.subr.mxu0 0.0
    %1428 = vmatpush1.msra.mxu0 0.0
    %1429 = vmatprep.subr.mxu0 0.0
    %1430 = vmatpush1.msra.mxu0 0.0
    %1431 = vmatprep.subr.mxu0 0.0
    %1432 = vmatpush1.msra.mxu0 0.0
    %1433 = vmatprep.subr.mxu0 0.0
    %1434 = vmatpush1.msra.mxu0 0.0
    %1435 = vmatprep.subr.mxu0 0.0
    %1436 = vmatpush1.msra.mxu0 0.0
    %1437 = vmatprep.subr.mxu0 0.0
    %1438 = vmatpush1.msra.mxu0 0.0
    %1439 = vmatprep.subr.mxu0 0.0
    %1440 = vmatpush1.msra.mxu0 0.0
    %1441 = vmatprep.subr.mxu0 0.0
    %1442 = vmatpush1.msra.mxu0 0.0
    %1443 = vmatprep.subr.mxu0 0.0
    %1444 = vmatpush1.msra.mxu0 0.0
    %1445 = vmatprep.subr.mxu0 0.0
    %1446 = vmatpush1.msra.mxu0 0.0
    %1447 = vmatprep.subr.mxu0 0.0
    %1448 = vmatpush1.msra.mxu0 0.0
    %1449 = vmatprep.subr.mxu0 0.0
    %1450 = vmatpush1.msra.mxu0 0.0
    %1451 = vmatprep.subr.mxu0 0.0
    %1452 = vmatpush1.msra.mxu0 0.0
    %1453 = vmatprep.subr.mxu0 0.0
    %1454 = vmatpush1.msra.mxu0 0.0
    %1455 = vmatprep.subr.mxu0 0.0
    %1456 = vmatpush1.msra.mxu0 0.0
    %1457 = vmatprep.subr.mxu0 0.0
    %1458 = vmatpush1.msra.mxu0 0.0
    %1459 = vmatprep.subr.mxu0 0.0
    %1460 = vmatpush1.msra.mxu0 0.0
    %1461 = vmatprep.subr.mxu0 0.0
    %1462 = vmatpush1.msra.mxu0 0.0
    %1463 = vmatprep.subr.mxu0 0.0
    %1464 = vmatpush1.msra.mxu0 0.0
    %1465 = vmatprep.subr.mxu0 0.0
    %1466 = vmatpush1.msra.mxu0 0.0
    %1467 = vmatprep.subr.mxu0 0.0
    %1468 = vmatpush1.msra.mxu0 0.0
    %1469 = vmatprep.mubr.f32.mxu0 0.0
    %1470 = vmatmul.mubr.f32.gmra.mrb[0].mxu0 %v1400
    %v1471 = vpop.f32.mrb[0].mxu0
    %v1472 = vadd.f32 0.0, %v1471
    %v1473 = vpop.f32.mrb[0].mxu0
    %1474 = vmatprep.mubr.f32.mxu0 0.0
    %1475 = vmatmul.mubr.f32.gmra.mrb[0].mxu0 %v1403
    %v1476 = vpop.f32.mrb[0].mxu0
    %v1477 = vadd.f32 0.0, %v1476
    %v1478 = vpop.f32.mrb[0].mxu0
    %1479 = vdwg.mxu0
    %v1480 = vadd.f32 %v1308, %v1472
    %v1481 = vadd.f32 %v1309, %v1477
    %s1482 = scalar_lea.vmem %s11, 64
    %v1483 = vld [vmem:[%s1482] sm:$0xff]
    %v1484 = vld [vmem:[%s1482 + $0x8] sm:$0xff]
    %v1486 = vsel %vm786, %v1483, 0
    %v1489 = vsel %vm786, %v1484, 0
    %1491 = vmatprep.subr.mxu0 0.0
    %1492 = vmatpush1.msra.mxu0 %v778
    %1493 = vmatprep.subr.mxu0 0.0
    %1494 = vmatpush1.msra.mxu0 %v779
    %1495 = vmatprep.subr.mxu0 0.0
    %1496 = vmatpush1.msra.mxu0 %v780
    %1497 = vmatprep.subr.mxu0 0.0
    %1498 = vmatpush1.msra.mxu0 %v781
    %1499 = vmatprep.subr.mxu0 0.0
    %1500 = vmatpush1.msra.mxu0 %v795
    %1501 = vmatprep.subr.mxu0 0.0
    %1502 = vmatpush1.msra.mxu0 0.0
    %1503 = vmatprep.subr.mxu0 0.0
    %1504 = vmatpush1.msra.mxu0 0.0
    %1505 = vmatprep.subr.mxu0 0.0
    %1506 = vmatpush1.msra.mxu0 0.0
    %1507 = vmatprep.subr.mxu0 0.0
    %1508 = vmatpush1.msra.mxu0 0.0
    %1509 = vmatprep.subr.mxu0 0.0
    %1510 = vmatpush1.msra.mxu0 0.0
    %1511 = vmatprep.subr.mxu0 0.0
    %1512 = vmatpush1.msra.mxu0 0.0
    %1513 = vmatprep.subr.mxu0 0.0
    %1514 = vmatpush1.msra.mxu0 0.0
    %1515 = vmatprep.subr.mxu0 0.0
    %1516 = vmatpush1.msra.mxu0 0.0
    %1517 = vmatprep.subr.mxu0 0.0
    %1518 = vmatpush1.msra.mxu0 0.0
    %1519 = vmatprep.subr.mxu0 0.0
    %1520 = vmatpush1.msra.mxu0 0.0
    %1521 = vmatprep.subr.mxu0 0.0
    %1522 = vmatpush1.msra.mxu0 0.0
    %1523 = vmatprep.subr.mxu0 0.0
    %1524 = vmatpush1.msra.mxu0 0.0
    %1525 = vmatprep.subr.mxu0 0.0
    %1526 = vmatpush1.msra.mxu0 0.0
    %1527 = vmatprep.subr.mxu0 0.0
    %1528 = vmatpush1.msra.mxu0 0.0
    %1529 = vmatprep.subr.mxu0 0.0
    %1530 = vmatpush1.msra.mxu0 0.0
    %1531 = vmatprep.subr.mxu0 0.0
    %1532 = vmatpush1.msra.mxu0 0.0
    %1533 = vmatprep.subr.mxu0 0.0
    %1534 = vmatpush1.msra.mxu0 0.0
    %1535 = vmatprep.subr.mxu0 0.0
    %1536 = vmatpush1.msra.mxu0 0.0
    %1537 = vmatprep.subr.mxu0 0.0
    %1538 = vmatpush1.msra.mxu0 0.0
    %1539 = vmatprep.subr.mxu0 0.0
    %1540 = vmatpush1.msra.mxu0 0.0
    %1541 = vmatprep.subr.mxu0 0.0
    %1542 = vmatpush1.msra.mxu0 0.0
    %1543 = vmatprep.subr.mxu0 0.0
    %1544 = vmatpush1.msra.mxu0 0.0
    %1545 = vmatprep.subr.mxu0 0.0
    %1546 = vmatpush1.msra.mxu0 0.0
    %1547 = vmatprep.subr.mxu0 0.0
    %1548 = vmatpush1.msra.mxu0 0.0
    %1549 = vmatprep.subr.mxu0 0.0
    %1550 = vmatpush1.msra.mxu0 0.0
    %1551 = vmatprep.subr.mxu0 0.0
    %1552 = vmatpush1.msra.mxu0 0.0
    %1553 = vmatprep.subr.mxu0 0.0
    %1554 = vmatpush1.msra.mxu0 0.0
    %1555 = vmatprep.mubr.f32.mxu0 0.0
    %1556 = vmatmul.mubr.f32.gmra.mrb[0].mxu0 %v1486
    %v1557 = vpop.f32.mrb[0].mxu0
    %v1558 = vadd.f32 0.0, %v1557
    %v1559 = vpop.f32.mrb[0].mxu0
    %1560 = vmatprep.mubr.f32.mxu0 0.0
    %1561 = vmatmul.mubr.f32.gmra.mrb[0].mxu0 %v1489
    %v1562 = vpop.f32.mrb[0].mxu0
    %v1563 = vadd.f32 0.0, %v1562
    %v1564 = vpop.f32.mrb[0].mxu0
    %1565 = vdwg.mxu0
    %s1566 = scalar_lea.vmem %s13, 128
    %v1567 = vld [vmem:[%s1566] sm:$0xff]
    %v1568 = vld [vmem:[%s1566 + $0x8] sm:$0xff]
    %v1569 = vld [vmem:[%s1566 + $0x10] sm:$0xff]
    %v1570 = vld [vmem:[%s1566 + $0x18] sm:$0xff]
    %v1572 = vsel %vm876, %v1558, 0
    %v1575 = vsel %vm876, %v1563, 0
    %1577 = vmatprep.subr.mxu0 0.0
    %1578 = vmatpush1.msra.mxu0 %v1567
    %1579 = vmatprep.subr.mxu0 0.0
    %1580 = vmatpush1.msra.mxu0 %v1568
    %1581 = vmatprep.subr.mxu0 0.0
    %1582 = vmatpush1.msra.mxu0 %v1569
    %1583 = vmatprep.subr.mxu0 0.0
    %1584 = vmatpush1.msra.mxu0 %v1570
    %1585 = vmatprep.subr.mxu0 0.0
    %1586 = vmatpush1.msra.mxu0 0.0
    %1587 = vmatprep.subr.mxu0 0.0
    %1588 = vmatpush1.msra.mxu0 0.0
    %1589 = vmatprep.subr.mxu0 0.0
    %1590 = vmatpush1.msra.mxu0 0.0
    %1591 = vmatprep.subr.mxu0 0.0
    %1592 = vmatpush1.msra.mxu0 0.0
    %1593 = vmatprep.subr.mxu0 0.0
    %1594 = vmatpush1.msra.mxu0 0.0
    %1595 = vmatprep.subr.mxu0 0.0
    %1596 = vmatpush1.msra.mxu0 0.0
    %1597 = vmatprep.subr.mxu0 0.0
    %1598 = vmatpush1.msra.mxu0 0.0
    %1599 = vmatprep.subr.mxu0 0.0
    %1600 = vmatpush1.msra.mxu0 0.0
    %1601 = vmatprep.subr.mxu0 0.0
    %1602 = vmatpush1.msra.mxu0 0.0
    %1603 = vmatprep.subr.mxu0 0.0
    %1604 = vmatpush1.msra.mxu0 0.0
    %1605 = vmatprep.subr.mxu0 0.0
    %1606 = vmatpush1.msra.mxu0 0.0
    %1607 = vmatprep.subr.mxu0 0.0
    %1608 = vmatpush1.msra.mxu0 0.0
    %1609 = vmatprep.subr.mxu0 0.0
    %1610 = vmatpush1.msra.mxu0 0.0
    %1611 = vmatprep.subr.mxu0 0.0
    %1612 = vmatpush1.msra.mxu0 0.0
    %1613 = vmatprep.subr.mxu0 0.0
    %1614 = vmatpush1.msra.mxu0 0.0
    %1615 = vmatprep.subr.mxu0 0.0
    %1616 = vmatpush1.msra.mxu0 0.0
    %1617 = vmatprep.subr.mxu0 0.0
    %1618 = vmatpush1.msra.mxu0 0.0
    %1619 = vmatprep.subr.mxu0 0.0
    %1620 = vmatpush1.msra.mxu0 0.0
    %1621 = vmatprep.subr.mxu0 0.0
    %1622 = vmatpush1.msra.mxu0 0.0
    %1623 = vmatprep.subr.mxu0 0.0
    %1624 = vmatpush1.msra.mxu0 0.0
    %1625 = vmatprep.subr.mxu0 0.0
    %1626 = vmatpush1.msra.mxu0 0.0
    %1627 = vmatprep.subr.mxu0 0.0
    %1628 = vmatpush1.msra.mxu0 0.0
    %1629 = vmatprep.subr.mxu0 0.0
    %1630 = vmatpush1.msra.mxu0 0.0
    %1631 = vmatprep.subr.mxu0 0.0
    %1632 = vmatpush1.msra.mxu0 0.0
    %1633 = vmatprep.subr.mxu0 0.0
    %1634 = vmatpush1.msra.mxu0 0.0
    %1635 = vmatprep.subr.mxu0 0.0
    %1636 = vmatpush1.msra.mxu0 0.0
    %1637 = vmatprep.subr.mxu0 0.0
    %1638 = vmatpush1.msra.mxu0 0.0
    %1639 = vmatprep.subr.mxu0 0.0
    %1640 = vmatpush1.msra.mxu0 0.0
    %1641 = vmatprep.mubr.f32.mxu0 0.0
    %1642 = vmatmul.mubr.f32.gmra.mrb[0].mxu0 %v1572
    %v1643 = vpop.f32.mrb[0].mxu0
    %v1644 = vadd.f32 0.0, %v1643
    %v1645 = vpop.f32.mrb[0].mxu0
    %1646 = vmatprep.mubr.f32.mxu0 0.0
    %1647 = vmatmul.mubr.f32.gmra.mrb[0].mxu0 %v1575
    %v1648 = vpop.f32.mrb[0].mxu0
    %v1649 = vadd.f32 0.0, %v1648
    %v1650 = vpop.f32.mrb[0].mxu0
    %1651 = vdwg.mxu0
    %v1652 = vadd.f32 %v1480, %v1644
    %v1653 = vadd.f32 %v1481, %v1649
    %v1654 = vmax.f32 %v1652, 0.0
    %v1655 = vmax.f32 %v1653, 0.0
    %v1656 = vld [vmem:[%s17] sm:$0xff]
    %vm1657 = vcmask 130048
    %v1659 = vsel %vm1657, %v1656, 0
    %1661 = vmatprep.subr.mxu0 0.0
    %1662 = vmatpush1.msra.mxu0 %v1654
    %1663 = vmatprep.subr.mxu0 0.0
    %1664 = vmatpush1.msra.mxu0 %v1655
    %1665 = vmatprep.subr.mxu0 0.0
    %1666 = vmatpush1.msra.mxu0 0.0
    %1667 = vmatprep.subr.mxu0 0.0
    %1668 = vmatpush1.msra.mxu0 0.0
    %1669 = vmatprep.subr.mxu0 0.0
    %1670 = vmatpush1.msra.mxu0 0.0
    %1671 = vmatprep.subr.mxu0 0.0
    %1672 = vmatpush1.msra.mxu0 0.0
    %1673 = vmatprep.subr.mxu0 0.0
    %1674 = vmatpush1.msra.mxu0 0.0
    %1675 = vmatprep.subr.mxu0 0.0
    %1676 = vmatpush1.msra.mxu0 0.0
    %1677 = vmatprep.subr.mxu0 0.0
    %1678 = vmatpush1.msra.mxu0 0.0
    %1679 = vmatprep.subr.mxu0 0.0
    %1680 = vmatpush1.msra.mxu0 0.0
    %1681 = vmatprep.subr.mxu0 0.0
    %1682 = vmatpush1.msra.mxu0 0.0
    %1683 = vmatprep.subr.mxu0 0.0
    %1684 = vmatpush1.msra.mxu0 0.0
    %1685 = vmatprep.subr.mxu0 0.0
    %1686 = vmatpush1.msra.mxu0 0.0
    %1687 = vmatprep.subr.mxu0 0.0
    %1688 = vmatpush1.msra.mxu0 0.0
    %1689 = vmatprep.subr.mxu0 0.0
    %1690 = vmatpush1.msra.mxu0 0.0
    %1691 = vmatprep.subr.mxu0 0.0
    %1692 = vmatpush1.msra.mxu0 0.0
    %1693 = vmatprep.subr.mxu0 0.0
    %1694 = vmatpush1.msra.mxu0 0.0
    %1695 = vmatprep.subr.mxu0 0.0
    %1696 = vmatpush1.msra.mxu0 0.0
    %1697 = vmatprep.subr.mxu0 0.0
    %1698 = vmatpush1.msra.mxu0 0.0
    %1699 = vmatprep.subr.mxu0 0.0
    %1700 = vmatpush1.msra.mxu0 0.0
    %1701 = vmatprep.subr.mxu0 0.0
    %1702 = vmatpush1.msra.mxu0 0.0
    %1703 = vmatprep.subr.mxu0 0.0
    %1704 = vmatpush1.msra.mxu0 0.0
    %1705 = vmatprep.subr.mxu0 0.0
    %1706 = vmatpush1.msra.mxu0 0.0
    %1707 = vmatprep.subr.mxu0 0.0
    %1708 = vmatpush1.msra.mxu0 0.0
    %1709 = vmatprep.subr.mxu0 0.0
    %1710 = vmatpush1.msra.mxu0 0.0
    %1711 = vmatprep.subr.mxu0 0.0
    %1712 = vmatpush1.msra.mxu0 0.0
    %1713 = vmatprep.subr.mxu0 0.0
    %1714 = vmatpush1.msra.mxu0 0.0
    %1715 = vmatprep.subr.mxu0 0.0
    %1716 = vmatpush1.msra.mxu0 0.0
    %1717 = vmatprep.subr.mxu0 0.0
    %1718 = vmatpush1.msra.mxu0 0.0
    %1719 = vmatprep.subr.mxu0 0.0
    %1720 = vmatpush1.msra.mxu0 0.0
    %1721 = vmatprep.subr.mxu0 0.0
    %1722 = vmatpush1.msra.mxu0 0.0
    %1723 = vmatprep.subr.mxu0 0.0
    %1724 = vmatpush1.msra.mxu0 0.0
    %1725 = vmatprep.mubr.f32.mxu0 0.0
    %1726 = vmatmul.mubr.f32.gmra.mrb[0].mxu0 %v1659
    %v1727 = vpop.f32.mrb[0].mxu0
    %v1728 = vadd.f32 0.0, %v1727
    %v1729 = vpop.f32.mrb[0].mxu0
    %1730 = vdwg.mxu0
    %v1731 = vld [vmem:[%s19] sm:$0xff]
    %v1733 = vsel %vm1657, %v1731, 0
    %1735 = vmatprep.subr.mxu0 0.0
    %1736 = vmatpush1.msra.mxu0 %v1654
    %1737 = vmatprep.subr.mxu0 0.0
    %1738 = vmatpush1.msra.mxu0 %v1655
    %1739 = vmatprep.subr.mxu0 0.0
    %1740 = vmatpush1.msra.mxu0 0.0
    %1741 = vmatprep.subr.mxu0 0.0
    %1742 = vmatpush1.msra.mxu0 0.0
    %1743 = vmatprep.subr.mxu0 0.0
    %1744 = vmatpush1.msra.mxu0 0.0
    %1745 = vmatprep.subr.mxu0 0.0
    %1746 = vmatpush1.msra.mxu0 0.0
    %1747 = vmatprep.subr.mxu0 0.0
    %1748 = vmatpush1.msra.mxu0 0.0
    %1749 = vmatprep.subr.mxu0 0.0
    %1750 = vmatpush1.msra.mxu0 0.0
    %1751 = vmatprep.subr.mxu0 0.0
    %1752 = vmatpush1.msra.mxu0 0.0
    %1753 = vmatprep.subr.mxu0 0.0
    %1754 = vmatpush1.msra.mxu0 0.0
    %1755 = vmatprep.subr.mxu0 0.0
    %1756 = vmatpush1.msra.mxu0 0.0
    %1757 = vmatprep.subr.mxu0 0.0
    %1758 = vmatpush1.msra.mxu0 0.0
    %1759 = vmatprep.subr.mxu0 0.0
    %1760 = vmatpush1.msra.mxu0 0.0
    %1761 = vmatprep.subr.mxu0 0.0
    %1762 = vmatpush1.msra.mxu0 0.0
    %1763 = vmatprep.subr.mxu0 0.0
    %1764 = vmatpush1.msra.mxu0 0.0
    %1765 = vmatprep.subr.mxu0 0.0
    %1766 = vmatpush1.msra.mxu0 0.0
    %1767 = vmatprep.subr.mxu0 0.0
    %1768 = vmatpush1.msra.mxu0 0.0
    %1769 = vmatprep.subr.mxu0 0.0
    %1770 = vmatpush1.msra.mxu0 0.0
    %1771 = vmatprep.subr.mxu0 0.0
    %1772 = vmatpush1.msra.mxu0 0.0
    %1773 = vmatprep.subr.mxu0 0.0
    %1774 = vmatpush1.msra.mxu0 0.0
    %1775 = vmatprep.subr.mxu0 0.0
    %1776 = vmatpush1.msra.mxu0 0.0
    %1777 = vmatprep.subr.mxu0 0.0
    %1778 = vmatpush1.msra.mxu0 0.0
    %1779 = vmatprep.subr.mxu0 0.0
    %1780 = vmatpush1.msra.mxu0 0.0
    %1781 = vmatprep.subr.mxu0 0.0
    %1782 = vmatpush1.msra.mxu0 0.0
    %1783 = vmatprep.subr.mxu0 0.0
    %1784 = vmatpush1.msra.mxu0 0.0
    %1785 = vmatprep.subr.mxu0 0.0
    %1786 = vmatpush1.msra.mxu0 0.0
    %1787 = vmatprep.subr.mxu0 0.0
    %1788 = vmatpush1.msra.mxu0 0.0
    %1789 = vmatprep.subr.mxu0 0.0
    %1790 = vmatpush1.msra.mxu0 0.0
    %1791 = vmatprep.subr.mxu0 0.0
    %1792 = vmatpush1.msra.mxu0 0.0
    %1793 = vmatprep.subr.mxu0 0.0
    %1794 = vmatpush1.msra.mxu0 0.0
    %1795 = vmatprep.subr.mxu0 0.0
    %1796 = vmatpush1.msra.mxu0 0.0
    %1797 = vmatprep.subr.mxu0 0.0
    %1798 = vmatpush1.msra.mxu0 0.0
    %1799 = vmatprep.mubr.f32.mxu0 0.0
    %1800 = vmatmul.mubr.f32.gmra.mrb[0].mxu0 %v1733
    %v1801 = vpop.f32.mrb[0].mxu0
    %v1802 = vadd.f32 0.0, %v1801
    %v1803 = vpop.f32.mrb[0].mxu0
    %1804 = vdwg.mxu0
    %v1805 = vadd.f32 %v1728, %v1802
    %v1806 = vmul.f32 %v1805, 0.5
    %v1807 = vsub.f32 %v1728, %v1806
    %v1808 = vmul.f32 %v1807, %v1807
    %v1809 = vsub.f32 %v1802, %v1806
    %v1810 = vmul.f32 %v1809, %v1809
    %v1811 = vadd.f32 %v1808, %v1810
    %v1812 = vmul.f32 %v1811, 0.5
    %v1813 = vadd.f32 %v1812, 1e-05
    %v1814 = vrsqrt.pop %v1813
    %v1815 = vmul.f32 %v1807, %v1814
    %v1816 = vmul.f32 %v1809, %v1814
    %v1817 = vmax.f32 %v1815, %v1816
    %v1818 = vld [vmem:[%s21] sm:$0xff]
    %v1819 = vadd.f32 %v1817, %v1818
    %v1820 = vld [vmem:[%s23] sm:$0xff]
    %v1821 = vld [vmem:[%s23 + $0x8] sm:$0xff]
    %v1822 = vld [vmem:[%s23 + $0x10] sm:$0xff]
    %v1823 = vld [vmem:[%s23 + $0x18] sm:$0xff]
    %v1824 = vld [vmem:[%s23 + $0x20] sm:$0xff]
    %v1825 = vld [vmem:[%s23 + $0x28] sm:$0xff]
    %v1826 = vld [vmem:[%s23 + $0x30] sm:$0xff]
    %v1827 = vld [vmem:[%s23 + $0x38] sm:$0xff]
    %v1828 = vld [vmem:[%s25] sm:$0xff]
    %v1829 = vld [vmem:[%s27] sm:$0xff]
    %v1830 = vld [vmem:[%s27 + $0x8] sm:$0xff]
    %v1831 = vld [vmem:[%s27 + $0x10] sm:$0xff]
    %v1832 = vld [vmem:[%s27 + $0x18] sm:$0xff]
    %v1833 = vld [vmem:[%s29] sm:$0x1]
    %v1834 = vld [vmem:[%s31] sm:$0xff]
    %v1835 = vld [vmem:[%s31 + $0x8] sm:$0xff]
    %v1836 = vld [vmem:[%s31 + $0x10] sm:$0xff]
    %v1837 = vld [vmem:[%s31 + $0x18] sm:$0xff]
    %v1838 = vld [vmem:[%s33] sm:$0x1]
    %v1839 = vld [vmem:[%s35] sm:$0xff]
    %v1840 = vld [vmem:[%s35 + $0x8] sm:$0xff]
    %v1841 = vld [vmem:[%s35 + $0x10] sm:$0xff]
    %v1842 = vld [vmem:[%s35 + $0x18] sm:$0xff]
    %v1843 = vld [vmem:[%s37] sm:$0x1]
    %v1844 = vld [vmem:[%s39] sm:$0xff]
    %v1845 = vld [vmem:[%s39 + $0x8] sm:$0xff]
    %v1846 = vld [vmem:[%s39 + $0x10] sm:$0xff]
    %v1847 = vld [vmem:[%s39 + $0x18] sm:$0xff]
    %v1848 = vld [vmem:[%s41] sm:$0x1]
    %v1849 = vld [vmem:[%s43] sm:$0x1]
    %v1850 = vld [vmem:[%s45] sm:$0x1]
    %v1851 = vld [vmem:[%s47] sm:$0xff]
    %v1852 = vld [vmem:[%s47 + $0x8] sm:$0xff]
    %v1853 = vld [vmem:[%s47 + $0x10] sm:$0xff]
    %v1854 = vld [vmem:[%s47 + $0x18] sm:$0xff]
    %v1855 = vld [vmem:[%s49] sm:$0x1]
    %v1856 = vld [vmem:[%s51] sm:$0xff]
    %v1857 = vld [vmem:[%s51 + $0x8] sm:$0xff]
    %v1858 = vld [vmem:[%s51 + $0x10] sm:$0xff]
    %v1859 = vld [vmem:[%s51 + $0x18] sm:$0xff]
    %v1860 = vld [vmem:[%s51 + $0x20] sm:$0xff]
    %v1861 = vld [vmem:[%s51 + $0x28] sm:$0xff]
    %v1862 = vld [vmem:[%s51 + $0x30] sm:$0xff]
    %v1863 = vld [vmem:[%s51 + $0x38] sm:$0xff]
    %v1864 = vld [vmem:[%s53] sm:$0x1]
    %v1865 = vld [vmem:[%s55] sm:$0x1]
    %v1866 = vld [vmem:[%s57] sm:$0x1]
    %v1868 = vlaneseq
    %v1869 = vshrl.u32 %v1868, 7
    %v1870 = vsub.s32 0, %v1869
    %v1871 = vrot.slane %v1833, %v1870
    %v1874 = vsel %vm876, %v1819, 0
    %1876 = vmatprep.subr.mxu0 0.0
    %1877 = vmatpush1.msra.mxu0 %v1829
    %1878 = vmatprep.subr.mxu0 0.0
    %1879 = vmatpush1.msra.mxu0 %v1830
    %1880 = vmatprep.subr.mxu0 0.0
    %1881 = vmatpush1.msra.mxu0 %v1831
    %1882 = vmatprep.subr.mxu0 0.0
    %1883 = vmatpush1.msra.mxu0 %v1832
    %1884 = vmatprep.subr.mxu0 0.0
    %1885 = vmatpush1.msra.mxu0 0.0
    %1886 = vmatprep.subr.mxu0 0.0
    %1887 = vmatpush1.msra.mxu0 0.0
    %1888 = vmatprep.subr.mxu0 0.0
    %1889 = vmatpush1.msra.mxu0 0.0
    %1890 = vmatprep.subr.mxu0 0.0
    %1891 = vmatpush1.msra.mxu0 0.0
    %1892 = vmatprep.subr.mxu0 0.0
    %1893 = vmatpush1.msra.mxu0 0.0
    %1894 = vmatprep.subr.mxu0 0.0
    %1895 = vmatpush1.msra.mxu0 0.0
    %1896 = vmatprep.subr.mxu0 0.0
    %1897 = vmatpush1.msra.mxu0 0.0
    %1898 = vmatprep.subr.mxu0 0.0
    %1899 = vmatpush1.msra.mxu0 0.0
    %1900 = vmatprep.subr.mxu0 0.0
    %1901 = vmatpush1.msra.mxu0 0.0
    %1902 = vmatprep.subr.mxu0 0.0
    %1903 = vmatpush1.msra.mxu0 0.0
    %1904 = vmatprep.subr.mxu0 0.0
    %1905 = vmatpush1.msra.mxu0 0.0
    %1906 = vmatprep.subr.mxu0 0.0
    %1907 = vmatpush1.msra.mxu0 0.0
    %1908 = vmatprep.subr.mxu0 0.0
    %1909 = vmatpush1.msra.mxu0 0.0
    %1910 = vmatprep.subr.mxu0 0.0
    %1911 = vmatpush1.msra.mxu0 0.0
    %1912 = vmatprep.subr.mxu0 0.0
    %1913 = vmatpush1.msra.mxu0 0.0
    %1914 = vmatprep.subr.mxu0 0.0
    %1915 = vmatpush1.msra.mxu0 0.0
    %1916 = vmatprep.subr.mxu0 0.0
    %1917 = vmatpush1.msra.mxu0 0.0
    %1918 = vmatprep.subr.mxu0 0.0
    %1919 = vmatpush1.msra.mxu0 0.0
    %1920 = vmatprep.subr.mxu0 0.0
    %1921 = vmatpush1.msra.mxu0 0.0
    %1922 = vmatprep.subr.mxu0 0.0
    %1923 = vmatpush1.msra.mxu0 0.0
    %1924 = vmatprep.subr.mxu0 0.0
    %1925 = vmatpush1.msra.mxu0 0.0
    %1926 = vmatprep.subr.mxu0 0.0
    %1927 = vmatpush1.msra.mxu0 0.0
    %1928 = vmatprep.subr.mxu0 0.0
    %1929 = vmatpush1.msra.mxu0 0.0
    %1930 = vmatprep.subr.mxu0 0.0
    %1931 = vmatpush1.msra.mxu0 0.0
    %1932 = vmatprep.subr.mxu0 0.0
    %1933 = vmatpush1.msra.mxu0 0.0
    %1934 = vmatprep.subr.mxu0 0.0
    %1935 = vmatpush1.msra.mxu0 0.0
    %1936 = vmatprep.subr.mxu0 0.0
    %1937 = vmatpush1.msra.mxu0 0.0
    %1938 = vmatprep.subr.mxu0 0.0
    %1939 = vmatpush1.msra.mxu0 0.0
    %1940 = vmatprep.mubr.f32.mxu0 0.0
    %1941 = vmatmul.mubr.f32.gmra.mrb[0].mxu0 %v1874
    %v1942 = vpop.f32.mrb[0].mxu0
    %v1943 = vadd.f32 %v1871, %v1942
    %v1944 = vpop.f32.mrb[0].mxu0
    %1945 = vdwg.mxu0
    %v1947 = vlaneseq
    %v1948 = vshrl.u32 %v1947, 7
    %v1949 = vsub.s32 0, %v1948
    %v1950 = vrot.slane %v1838, %v1949
    %1952 = vmatprep.subr.mxu0 0.0
    %1953 = vmatpush1.msra.mxu0 %v1834
    %1954 = vmatprep.subr.mxu0 0.0
    %1955 = vmatpush1.msra.mxu0 %v1835
    %1956 = vmatprep.subr.mxu0 0.0
    %1957 = vmatpush1.msra.mxu0 %v1836
    %1958 = vmatprep.subr.mxu0 0.0
    %1959 = vmatpush1.msra.mxu0 %v1837
    %1960 = vmatprep.subr.mxu0 0.0
    %1961 = vmatpush1.msra.mxu0 0.0
    %1962 = vmatprep.subr.mxu0 0.0
    %1963 = vmatpush1.msra.mxu0 0.0
    %1964 = vmatprep.subr.mxu0 0.0
    %1965 = vmatpush1.msra.mxu0 0.0
    %1966 = vmatprep.subr.mxu0 0.0
    %1967 = vmatpush1.msra.mxu0 0.0
    %1968 = vmatprep.subr.mxu0 0.0
    %1969 = vmatpush1.msra.mxu0 0.0
    %1970 = vmatprep.subr.mxu0 0.0
    %1971 = vmatpush1.msra.mxu0 0.0
    %1972 = vmatprep.subr.mxu0 0.0
    %1973 = vmatpush1.msra.mxu0 0.0
    %1974 = vmatprep.subr.mxu0 0.0
    %1975 = vmatpush1.msra.mxu0 0.0
    %1976 = vmatprep.subr.mxu0 0.0
    %1977 = vmatpush1.msra.mxu0 0.0
    %1978 = vmatprep.subr.mxu0 0.0
    %1979 = vmatpush1.msra.mxu0 0.0
    %1980 = vmatprep.subr.mxu0 0.0
    %1981 = vmatpush1.msra.mxu0 0.0
    %1982 = vmatprep.subr.mxu0 0.0
    %1983 = vmatpush1.msra.mxu0 0.0
    %1984 = vmatprep.subr.mxu0 0.0
    %1985 = vmatpush1.msra.mxu0 0.0
    %1986 = vmatprep.subr.mxu0 0.0
    %1987 = vmatpush1.msra.mxu0 0.0
    %1988 = vmatprep.subr.mxu0 0.0
    %1989 = vmatpush1.msra.mxu0 0.0
    %1990 = vmatprep.subr.mxu0 0.0
    %1991 = vmatpush1.msra.mxu0 0.0
    %1992 = vmatprep.subr.mxu0 0.0
    %1993 = vmatpush1.msra.mxu0 0.0
    %1994 = vmatprep.subr.mxu0 0.0
    %1995 = vmatpush1.msra.mxu0 0.0
    %1996 = vmatprep.subr.mxu0 0.0
    %1997 = vmatpush1.msra.mxu0 0.0
    %1998 = vmatprep.subr.mxu0 0.0
    %1999 = vmatpush1.msra.mxu0 0.0
    %2000 = vmatprep.subr.mxu0 0.0
    %2001 = vmatpush1.msra.mxu0 0.0
    %2002 = vmatprep.subr.mxu0 0.0
    %2003 = vmatpush1.msra.mxu0 0.0
    %2004 = vmatprep.subr.mxu0 0.0
    %2005 = vmatpush1.msra.mxu0 0.0
    %2006 = vmatprep.subr.mxu0 0.0
    %2007 = vmatpush1.msra.mxu0 0.0
    %2008 = vmatprep.subr.mxu0 0.0
    %2009 = vmatpush1.msra.mxu0 0.0
    %2010 = vmatprep.subr.mxu0 0.0
    %2011 = vmatpush1.msra.mxu0 0.0
    %2012 = vmatprep.subr.mxu0 0.0
    %2013 = vmatpush1.msra.mxu0 0.0
    %2014 = vmatprep.subr.mxu0 0.0
    %2015 = vmatpush1.msra.mxu0 0.0
    %2016 = vmatprep.mubr.f32.mxu0 0.0
    %2017 = vmatmul.mubr.f32.gmra.mrb[0].mxu0 %v1874
    %v2018 = vpop.f32.mrb[0].mxu0
    %v2019 = vadd.f32 %v1950, %v2018
    %v2020 = vpop.f32.mrb[0].mxu0
    %2021 = vdwg.mxu0
    %v2023 = vlaneseq
    %v2024 = vshrl.u32 %v2023, 7
    %v2025 = vsub.s32 0, %v2024
    %v2026 = vrot.slane %v1843, %v2025
    %2028 = vmatprep.subr.mxu0 0.0
    %2029 = vmatpush1.msra.mxu0 %v1839
    %2030 = vmatprep.subr.mxu0 0.0
    %2031 = vmatpush1.msra.mxu0 %v1840
    %2032 = vmatprep.subr.mxu0 0.0
    %2033 = vmatpush1.msra.mxu0 %v1841
    %2034 = vmatprep.subr.mxu0 0.0
    %2035 = vmatpush1.msra.mxu0 %v1842
    %2036 = vmatprep.subr.mxu0 0.0
    %2037 = vmatpush1.msra.mxu0 0.0
    %2038 = vmatprep.subr.mxu0 0.0
    %2039 = vmatpush1.msra.mxu0 0.0
    %2040 = vmatprep.subr.mxu0 0.0
    %2041 = vmatpush1.msra.mxu0 0.0
    %2042 = vmatprep.subr.mxu0 0.0
    %2043 = vmatpush1.msra.mxu0 0.0
    %2044 = vmatprep.subr.mxu0 0.0
    %2045 = vmatpush1.msra.mxu0 0.0
    %2046 = vmatprep.subr.mxu0 0.0
    %2047 = vmatpush1.msra.mxu0 0.0
    %2048 = vmatprep.subr.mxu0 0.0
    %2049 = vmatpush1.msra.mxu0 0.0
    %2050 = vmatprep.subr.mxu0 0.0
    %2051 = vmatpush1.msra.mxu0 0.0
    %2052 = vmatprep.subr.mxu0 0.0
    %2053 = vmatpush1.msra.mxu0 0.0
    %2054 = vmatprep.subr.mxu0 0.0
    %2055 = vmatpush1.msra.mxu0 0.0
    %2056 = vmatprep.subr.mxu0 0.0
    %2057 = vmatpush1.msra.mxu0 0.0
    %2058 = vmatprep.subr.mxu0 0.0
    %2059 = vmatpush1.msra.mxu0 0.0
    %2060 = vmatprep.subr.mxu0 0.0
    %2061 = vmatpush1.msra.mxu0 0.0
    %2062 = vmatprep.subr.mxu0 0.0
    %2063 = vmatpush1.msra.mxu0 0.0
    %2064 = vmatprep.subr.mxu0 0.0
    %2065 = vmatpush1.msra.mxu0 0.0
    %2066 = vmatprep.subr.mxu0 0.0
    %2067 = vmatpush1.msra.mxu0 0.0
    %2068 = vmatprep.subr.mxu0 0.0
    %2069 = vmatpush1.msra.mxu0 0.0
    %2070 = vmatprep.subr.mxu0 0.0
    %2071 = vmatpush1.msra.mxu0 0.0
    %2072 = vmatprep.subr.mxu0 0.0
    %2073 = vmatpush1.msra.mxu0 0.0
    %2074 = vmatprep.subr.mxu0 0.0
    %2075 = vmatpush1.msra.mxu0 0.0
    %2076 = vmatprep.subr.mxu0 0.0
    %2077 = vmatpush1.msra.mxu0 0.0
    %2078 = vmatprep.subr.mxu0 0.0
    %2079 = vmatpush1.msra.mxu0 0.0
    %2080 = vmatprep.subr.mxu0 0.0
    %2081 = vmatpush1.msra.mxu0 0.0
    %2082 = vmatprep.subr.mxu0 0.0
    %2083 = vmatpush1.msra.mxu0 0.0
    %2084 = vmatprep.subr.mxu0 0.0
    %2085 = vmatpush1.msra.mxu0 0.0
    %2086 = vmatprep.subr.mxu0 0.0
    %2087 = vmatpush1.msra.mxu0 0.0
    %2088 = vmatprep.subr.mxu0 0.0
    %2089 = vmatpush1.msra.mxu0 0.0
    %2090 = vmatprep.subr.mxu0 0.0
    %2091 = vmatpush1.msra.mxu0 0.0
    %2092 = vmatprep.mubr.f32.mxu0 0.0
    %2093 = vmatmul.mubr.f32.gmra.mrb[0].mxu0 %v1874
    %v2094 = vpop.f32.mrb[0].mxu0
    %v2095 = vadd.f32 %v2026, %v2094
    %v2096 = vpop.f32.mrb[0].mxu0
    %2097 = vdwg.mxu0
    %v2098 = vmul.f32 %v1943, %v1820
    %v2099 = vmul.f32 %v1943, %v1821
    %v2100 = vmul.f32 %v1943, %v1822
    %v2101 = vmul.f32 %v1943, %v1823
    %v2102 = vmul.f32 %v1943, %v1824
    %v2103 = vmul.f32 %v1943, %v1825
    %v2104 = vmul.f32 %v1943, %v1826
    %v2105 = vmul.f32 %v1943, %v1827
    %v2107 = vsel %vm876, %v2098, 0
    %v2110 = vsel %vm876, %v2099, 0
    %v2113 = vsel %vm876, %v2100, 0
    %v2116 = vsel %vm876, %v2101, 0
    %v2119 = vsel %vm876, %v2102, 0
    %v2122 = vsel %vm876, %v2103, 0
    %v2125 = vsel %vm876, %v2104, 0
    %v2128 = vsel %vm876, %v2105, 0
    %v2131 = vsel %vm876, %v2019, 0
    %2133 = vmatprep.subr.mxu0 0.0
    %2134 = vmatpush1.xpose.msra.mxu0 %v2131
    %2135 = vmatprep.subr.mxu0 0.0
    %2136 = vmatpush1.xpose.msra.mxu0 0.0
    %2137 = vmatprep.subr.mxu0 0.0
    %2138 = vmatpush1.xpose.msra.mxu0 0.0
    %2139 = vmatprep.subr.mxu0 0.0
    %2140 = vmatpush1.xpose.msra.mxu0 0.0
    %2141 = vmatprep.subr.mxu0 0.0
    %2142 = vmatpush1.xpose.msra.mxu0 0.0
    %2143 = vmatprep.subr.mxu0 0.0
    %2144 = vmatpush1.xpose.msra.mxu0 0.0
    %2145 = vmatprep.subr.mxu0 0.0
    %2146 = vmatpush1.xpose.msra.mxu0 0.0
    %2147 = vmatprep.subr.mxu0 0.0
    %2148 = vmatpush1.xpose.msra.mxu0 0.0
    %2149 = vmatprep.subr.mxu0 0.0
    %2150 = vmatpush1.xpose.msra.mxu0 0.0
    %2151 = vmatprep.subr.mxu0 0.0
    %2152 = vmatpush1.xpose.msra.mxu0 0.0
    %2153 = vmatprep.subr.mxu0 0.0
    %2154 = vmatpush1.xpose.msra.mxu0 0.0
    %2155 = vmatprep.subr.mxu0 0.0
    %2156 = vmatpush1.xpose.msra.mxu0 0.0
    %2157 = vmatprep.subr.mxu0 0.0
    %2158 = vmatpush1.xpose.msra.mxu0 0.0
    %2159 = vmatprep.subr.mxu0 0.0
    %2160 = vmatpush1.xpose.msra.mxu0 0.0
    %2161 = vmatprep.subr.mxu0 0.0
    %2162 = vmatpush1.xpose.msra.mxu0 0.0
    %2163 = vmatprep.subr.mxu0 0.0
    %2164 = vmatpush1.xpose.msra.mxu0 0.0
    %2165 = vmatprep.subr.mxu0 0.0
    %2166 = vmatpush1.xpose.msra.mxu0 0.0
    %2167 = vmatprep.subr.mxu0 0.0
    %2168 = vmatpush1.xpose.msra.mxu0 0.0
    %2169 = vmatprep.subr.mxu0 0.0
    %2170 = vmatpush1.xpose.msra.mxu0 0.0
    %2171 = vmatprep.subr.mxu0 0.0
    %2172 = vmatpush1.xpose.msra.mxu0 0.0
    %2173 = vmatprep.subr.mxu0 0.0
    %2174 = vmatpush1.xpose.msra.mxu0 0.0
    %2175 = vmatprep.subr.mxu0 0.0
    %2176 = vmatpush1.xpose.msra.mxu0 0.0
    %2177 = vmatprep.subr.mxu0 0.0
    %2178 = vmatpush1.xpose.msra.mxu0 0.0
    %2179 = vmatprep.subr.mxu0 0.0
    %2180 = vmatpush1.xpose.msra.mxu0 0.0
    %2181 = vmatprep.subr.mxu0 0.0
    %2182 = vmatpush1.xpose.msra.mxu0 0.0
    %2183 = vmatprep.subr.mxu0 0.0
    %2184 = vmatpush1.xpose.msra.mxu0 0.0
    %2185 = vmatprep.subr.mxu0 0.0
    %2186 = vmatpush1.xpose.msra.mxu0 0.0
    %2187 = vmatprep.subr.mxu0 0.0
    %2188 = vmatpush1.xpose.msra.mxu0 0.0
    %2189 = vmatprep.subr.mxu0 0.0
    %2190 = vmatpush1.xpose.msra.mxu0 0.0
    %2191 = vmatprep.subr.mxu0 0.0
    %2192 = vmatpush1.xpose.msra.mxu0 0.0
    %2193 = vmatprep.subr.mxu0 0.0
    %2194 = vmatpush1.xpose.msra.mxu0 0.0
    %2195 = vmatprep.subr.mxu0 0.0
    %2196 = vmatpush1.xpose.msra.mxu0 0.0
    %2197 = vmatprep.mubr.f32.mxu0 0.0
    %2198 = vmatmul.mubr.f32.gmra.mrb[0].mxu0 %v2107
    %v2199 = vpop.f32.mrb[0].mxu0
    %v2200 = vadd.f32 0.0, %v2199
    %v2201 = vpop.f32.mrb[0].mxu0
    %2202 = vmatprep.mubr.f32.mxu0 0.0
    %2203 = vmatmul.mubr.f32.gmra.mrb[0].mxu0 %v2110
    %v2204 = vpop.f32.mrb[0].mxu0
    %v2205 = vadd.f32 0.0, %v2204
    %v2206 = vpop.f32.mrb[0].mxu0
    %2207 = vmatprep.mubr.f32.mxu0 0.0
    %2208 = vmatmul.mubr.f32.gmra.mrb[0].mxu0 %v2113
    %v2209 = vpop.f32.mrb[0].mxu0
    %v2210 = vadd.f32 0.0, %v2209
    %v2211 = vpop.f32.mrb[0].mxu0
    %2212 = vmatprep.mubr.f32.mxu0 0.0
    %2213 = vmatmul.mubr.f32.gmra.mrb[0].mxu0 %v2116
    %v2214 = vpop.f32.mrb[0].mxu0
    %v2215 = vadd.f32 0.0, %v2214
    %v2216 = vpop.f32.mrb[0].mxu0
    %2217 = vmatprep.mubr.f32.mxu0 0.0
    %2218 = vmatmul.mubr.f32.gmra.mrb[0].mxu0 %v2119
    %v2219 = vpop.f32.mrb[0].mxu0
    %v2220 = vadd.f32 0.0, %v2219
    %v2221 = vpop.f32.mrb[0].mxu0
    %2222 = vmatprep.mubr.f32.mxu0 0.0
    %2223 = vmatmul.mubr.f32.gmra.mrb[0].mxu0 %v2122
    %v2224 = vpop.f32.mrb[0].mxu0
    %v2225 = vadd.f32 0.0, %v2224
    %v2226 = vpop.f32.mrb[0].mxu0
    %2227 = vmatprep.mubr.f32.mxu0 0.0
    %2228 = vmatmul.mubr.f32.gmra.mrb[0].mxu0 %v2125
    %v2229 = vpop.f32.mrb[0].mxu0
    %v2230 = vadd.f32 0.0, %v2229
    %v2231 = vpop.f32.mrb[0].mxu0
    %2232 = vmatprep.mubr.f32.mxu0 0.0
    %2233 = vmatmul.mubr.f32.gmra.mrb[0].mxu0 %v2128
    %v2234 = vpop.f32.mrb[0].mxu0
    %v2235 = vadd.f32 0.0, %v2234
    %v2236 = vpop.f32.mrb[0].mxu0
    %2237 = vdwg.mxu0
    %v2238 = vmul.f32 %v2200, 0.5
    %v2239 = vmul.f32 %v2205, 0.5
    %v2240 = vmul.f32 %v2210, 0.5
    %v2241 = vmul.f32 %v2215, 0.5
    %v2242 = vmul.f32 %v2220, 0.5
    %v2243 = vmul.f32 %v2225, 0.5
    %v2244 = vmul.f32 %v2230, 0.5
    %v2245 = vmul.f32 %v2235, 0.5
    %vm2246 = vcmask 64512
    %v2247 = vsel %vm2246, %v2238, -inf
    %2248 = vmax.xlane.f32.xlu0 %v2247
    %v2249 = vpop.xlane.xlu0 %2248
    %v2250 = vsel %vm2246, %v2239, -inf
    %2251 = vmax.xlane.f32.xlu0 %v2250
    %v2252 = vpop.xlane.xlu0 %2251
    %v2253 = vsel %vm2246, %v2240, -inf
    %2254 = vmax.xlane.f32.xlu0 %v2253
    %v2255 = vpop.xlane.xlu0 %2254
    %v2256 = vsel %vm2246, %v2241, -inf
    %2257 = vmax.xlane.f32.xlu0 %v2256
    %v2258 = vpop.xlane.xlu0 %2257
    %v2259 = vsel %vm2246, %v2242, -inf
    %2260 = vmax.xlane.f32.xlu0 %v2259
    %v2261 = vpop.xlane.xlu0 %2260
    %v2262 = vsel %vm2246, %v2243, -inf
    %2263 = vmax.xlane.f32.xlu0 %v2262
    %v2264 = vpop.xlane.xlu0 %2263
    %v2265 = vsel %vm2246, %v2244, -inf
    %2266 = vmax.xlane.f32.xlu0 %v2265
    %v2267 = vpop.xlane.xlu0 %2266
    %v2268 = vsel %vm2246, %v2245, -inf
    %2269 = vmax.xlane.f32.xlu0 %v2268
    %v2270 = vpop.xlane.xlu0 %2269
    %v2271 = vsub.f32 %v2238, %v2249
    %v2272 = vsub.f32 %v2239, %v2252
    %v2273 = vsub.f32 %v2240, %v2255
    %v2274 = vsub.f32 %v2241, %v2258
    %v2275 = vsub.f32 %v2242, %v2261
    %v2276 = vsub.f32 %v2243, %v2264
    %v2277 = vsub.f32 %v2244, %v2267
    %v2278 = vsub.f32 %v2245, %v2270
    %v2279 = vmul.f32 %v2271, 1.442695
    %v2280 = vpow.pop %v2279
    %v2281 = vmul.f32 %v2272, 1.442695
    %v2282 = vpow.pop %v2281
    %v2283 = vmul.f32 %v2273, 1.442695
    %v2284 = vpow.pop %v2283
    %v2285 = vmul.f32 %v2274, 1.442695
    %v2286 = vpow.pop %v2285
    %v2287 = vmul.f32 %v2275, 1.442695
    %v2288 = vpow.pop %v2287
    %v2289 = vmul.f32 %v2276, 1.442695
    %v2290 = vpow.pop %v2289
    %v2291 = vmul.f32 %v2277, 1.442695
    %v2292 = vpow.pop %v2291
    %v2293 = vmul.f32 %v2278, 1.442695
    %v2294 = vpow.pop %v2293
    %v2295 = vsel %vm2246, %v2280, 0.0
    %2296 = vadd.xlane.f32.xlu0 %v2295
    %v2297 = vpop.xlane.xlu0 %2296
    %v2298 = vsel %vm2246, %v2282, 0.0
    %2299 = vadd.xlane.f32.xlu0 %v2298
    %v2300 = vpop.xlane.xlu0 %2299
    %v2301 = vsel %vm2246, %v2284, 0.0
    %2302 = vadd.xlane.f32.xlu0 %v2301
    %v2303 = vpop.xlane.xlu0 %2302
    %v2304 = vsel %vm2246, %v2286, 0.0
    %2305 = vadd.xlane.f32.xlu0 %v2304
    %v2306 = vpop.xlane.xlu0 %2305
    %v2307 = vsel %vm2246, %v2288, 0.0
    %2308 = vadd.xlane.f32.xlu0 %v2307
    %v2309 = vpop.xlane.xlu0 %2308
    %v2310 = vsel %vm2246, %v2290, 0.0
    %2311 = vadd.xlane.f32.xlu0 %v2310
    %v2312 = vpop.xlane.xlu0 %2311
    %v2313 = vsel %vm2246, %v2292, 0.0
    %2314 = vadd.xlane.f32.xlu0 %v2313
    %v2315 = vpop.xlane.xlu0 %2314
    %v2316 = vsel %vm2246, %v2294, 0.0
    %2317 = vadd.xlane.f32.xlu0 %v2316
    %v2318 = vpop.xlane.xlu0 %2317
    %v2319 = vrcp.pop %v2297
    %v2320 = vmul.f32 %v2280, %v2319
    %v2321 = vrcp.pop %v2300
    %v2322 = vmul.f32 %v2282, %v2321
    %v2323 = vrcp.pop %v2303
    %v2324 = vmul.f32 %v2284, %v2323
    %v2325 = vrcp.pop %v2306
    %v2326 = vmul.f32 %v2286, %v2325
    %v2327 = vrcp.pop %v2309
    %v2328 = vmul.f32 %v2288, %v2327
    %v2329 = vrcp.pop %v2312
    %v2330 = vmul.f32 %v2290, %v2329
    %v2331 = vrcp.pop %v2315
    %v2332 = vmul.f32 %v2292, %v2331
    %v2333 = vrcp.pop %v2318
    %v2334 = vmul.f32 %v2294, %v2333
    %v2336 = vsel %vm2246, %v2320, 0
    %v2339 = vsel %vm2246, %v2322, 0
    %v2342 = vsel %vm2246, %v2324, 0
    %v2345 = vsel %vm2246, %v2326, 0
    %v2348 = vsel %vm2246, %v2328, 0
    %v2351 = vsel %vm2246, %v2330, 0
    %v2354 = vsel %vm2246, %v2332, 0
    %v2357 = vsel %vm2246, %v2334, 0
    %2359 = vmatprep.subr.mxu0 0.0
    %2360 = vmatpush1.msra.mxu0 %v2095
    %2361 = vmatprep.subr.mxu0 0.0
    %2362 = vmatpush1.msra.mxu0 0.0
    %2363 = vmatprep.subr.mxu0 0.0
    %2364 = vmatpush1.msra.mxu0 0.0
    %2365 = vmatprep.subr.mxu0 0.0
    %2366 = vmatpush1.msra.mxu0 0.0
    %2367 = vmatprep.subr.mxu0 0.0
    %2368 = vmatpush1.msra.mxu0 0.0
    %2369 = vmatprep.subr.mxu0 0.0
    %2370 = vmatpush1.msra.mxu0 0.0
    %2371 = vmatprep.subr.mxu0 0.0
    %2372 = vmatpush1.msra.mxu0 0.0
    %2373 = vmatprep.subr.mxu0 0.0
    %2374 = vmatpush1.msra.mxu0 0.0
    %2375 = vmatprep.subr.mxu0 0.0
    %2376 = vmatpush1.msra.mxu0 0.0
    %2377 = vmatprep.subr.mxu0 0.0
    %2378 = vmatpush1.msra.mxu0 0.0
    %2379 = vmatprep.subr.mxu0 0.0
    %2380 = vmatpush1.msra.mxu0 0.0
    %2381 = vmatprep.subr.mxu0 0.0
    %2382 = vmatpush1.msra.mxu0 0.0
    %2383 = vmatprep.subr.mxu0 0.0
    %2384 = vmatpush1.msra.mxu0 0.0
    %2385 = vmatprep.subr.mxu0 0.0
    %2386 = vmatpush1.msra.mxu0 0.0
    %2387 = vmatprep.subr.mxu0 0.0
    %2388 = vmatpush1.msra.mxu0 0.0
    %2389 = vmatprep.subr.mxu0 0.0
    %2390 = vmatpush1.msra.mxu0 0.0
    %2391 = vmatprep.subr.mxu0 0.0
    %2392 = vmatpush1.msra.mxu0 0.0
    %2393 = vmatprep.subr.mxu0 0.0
    %2394 = vmatpush1.msra.mxu0 0.0
    %2395 = vmatprep.subr.mxu0 0.0
    %2396 = vmatpush1.msra.mxu0 0.0
    %2397 = vmatprep.subr.mxu0 0.0
    %2398 = vmatpush1.msra.mxu0 0.0
    %2399 = vmatprep.subr.mxu0 0.0
    %2400 = vmatpush1.msra.mxu0 0.0
    %2401 = vmatprep.subr.mxu0 0.0
    %2402 = vmatpush1.msra.mxu0 0.0
    %2403 = vmatprep.subr.mxu0 0.0
    %2404 = vmatpush1.msra.mxu0 0.0
    %2405 = vmatprep.subr.mxu0 0.0
    %2406 = vmatpush1.msra.mxu0 0.0
    %2407 = vmatprep.subr.mxu0 0.0
    %2408 = vmatpush1.msra.mxu0 0.0
    %2409 = vmatprep.subr.mxu0 0.0
    %2410 = vmatpush1.msra.mxu0 0.0
    %2411 = vmatprep.subr.mxu0 0.0
    %2412 = vmatpush1.msra.mxu0 0.0
    %2413 = vmatprep.subr.mxu0 0.0
    %2414 = vmatpush1.msra.mxu0 0.0
    %2415 = vmatprep.subr.mxu0 0.0
    %2416 = vmatpush1.msra.mxu0 0.0
    %2417 = vmatprep.subr.mxu0 0.0
    %2418 = vmatpush1.msra.mxu0 0.0
    %2419 = vmatprep.subr.mxu0 0.0
    %2420 = vmatpush1.msra.mxu0 0.0
    %2421 = vmatprep.subr.mxu0 0.0
    %2422 = vmatpush1.msra.mxu0 0.0
    %2423 = vmatprep.mubr.f32.mxu0 0.0
    %2424 = vmatmul.mubr.f32.gmra.mrb[0].mxu0 %v2336
    %v2425 = vpop.f32.mrb[0].mxu0
    %v2426 = vadd.f32 0.0, %v2425
    %v2427 = vpop.f32.mrb[0].mxu0
    %2428 = vmatprep.mubr.f32.mxu0 0.0
    %2429 = vmatmul.mubr.f32.gmra.mrb[0].mxu0 %v2339
    %v2430 = vpop.f32.mrb[0].mxu0
    %v2431 = vadd.f32 0.0, %v2430
    %v2432 = vpop.f32.mrb[0].mxu0
    %2433 = vmatprep.mubr.f32.mxu0 0.0
    %2434 = vmatmul.mubr.f32.gmra.mrb[0].mxu0 %v2342
    %v2435 = vpop.f32.mrb[0].mxu0
    %v2436 = vadd.f32 0.0, %v2435
    %v2437 = vpop.f32.mrb[0].mxu0
    %2438 = vmatprep.mubr.f32.mxu0 0.0
    %2439 = vmatmul.mubr.f32.gmra.mrb[0].mxu0 %v2345
    %v2440 = vpop.f32.mrb[0].mxu0
    %v2441 = vadd.f32 0.0, %v2440
    %v2442 = vpop.f32.mrb[0].mxu0
    %2443 = vmatprep.mubr.f32.mxu0 0.0
    %2444 = vmatmul.mubr.f32.gmra.mrb[0].mxu0 %v2348
    %v2445 = vpop.f32.mrb[0].mxu0
    %v2446 = vadd.f32 0.0, %v2445
    %v2447 = vpop.f32.mrb[0].mxu0
    %2448 = vmatprep.mubr.f32.mxu0 0.0
    %2449 = vmatmul.mubr.f32.gmra.mrb[0].mxu0 %v2351
    %v2450 = vpop.f32.mrb[0].mxu0
    %v2451 = vadd.f32 0.0, %v2450
    %v2452 = vpop.f32.mrb[0].mxu0
    %2453 = vmatprep.mubr.f32.mxu0 0.0
    %2454 = vmatmul.mubr.f32.gmra.mrb[0].mxu0 %v2354
    %v2455 = vpop.f32.mrb[0].mxu0
    %v2456 = vadd.f32 0.0, %v2455
    %v2457 = vpop.f32.mrb[0].mxu0
    %2458 = vmatprep.mubr.f32.mxu0 0.0
    %2459 = vmatmul.mubr.f32.gmra.mrb[0].mxu0 %v2357
    %v2460 = vpop.f32.mrb[0].mxu0
    %v2461 = vadd.f32 0.0, %v2460
    %v2462 = vpop.f32.mrb[0].mxu0
    %2463 = vdwg.mxu0
    %v2464 = vmul.f32 %v2426, %v1820
    %v2465 = vmul.f32 %v2431, %v1821
    %v2466 = vmul.f32 %v2436, %v1822
    %v2467 = vmul.f32 %v2441, %v1823
    %v2468 = vmul.f32 %v2446, %v1824
    %v2469 = vmul.f32 %v2451, %v1825
    %v2470 = vmul.f32 %v2456, %v1826
    %v2471 = vmul.f32 %v2461, %v1827
    %vm2472 = vcmask 523264
    %v2474 = vsel %vm2472, %v1828, 0
    %2476 = vmatprep.subr.mxu0 0.0
    %2477 = vmatpush1.msra.mxu0 %v2464
    %2478 = vmatprep.subr.mxu0 0.0
    %2479 = vmatpush1.msra.mxu0 %v2465
    %2480 = vmatprep.subr.mxu0 0.0
    %2481 = vmatpush1.msra.mxu0 %v2466
    %2482 = vmatprep.subr.mxu0 0.0
    %2483 = vmatpush1.msra.mxu0 %v2467
    %2484 = vmatprep.subr.mxu0 0.0
    %2485 = vmatpush1.msra.mxu0 %v2468
    %2486 = vmatprep.subr.mxu0 0.0
    %2487 = vmatpush1.msra.mxu0 %v2469
    %2488 = vmatprep.subr.mxu0 0.0
    %2489 = vmatpush1.msra.mxu0 %v2470
    %2490 = vmatprep.subr.mxu0 0.0
    %2491 = vmatpush1.msra.mxu0 %v2471
    %2492 = vmatprep.subr.mxu0 0.0
    %2493 = vmatpush1.msra.mxu0 0.0
    %2494 = vmatprep.subr.mxu0 0.0
    %2495 = vmatpush1.msra.mxu0 0.0
    %2496 = vmatprep.subr.mxu0 0.0
    %2497 = vmatpush1.msra.mxu0 0.0
    %2498 = vmatprep.subr.mxu0 0.0
    %2499 = vmatpush1.msra.mxu0 0.0
    %2500 = vmatprep.subr.mxu0 0.0
    %2501 = vmatpush1.msra.mxu0 0.0
    %2502 = vmatprep.subr.mxu0 0.0
    %2503 = vmatpush1.msra.mxu0 0.0
    %2504 = vmatprep.subr.mxu0 0.0
    %2505 = vmatpush1.msra.mxu0 0.0
    %2506 = vmatprep.subr.mxu0 0.0
    %2507 = vmatpush1.msra.mxu0 0.0
    %2508 = vmatprep.subr.mxu0 0.0
    %2509 = vmatpush1.msra.mxu0 0.0
    %2510 = vmatprep.subr.mxu0 0.0
    %2511 = vmatpush1.msra.mxu0 0.0
    %2512 = vmatprep.subr.mxu0 0.0
    %2513 = vmatpush1.msra.mxu0 0.0
    %2514 = vmatprep.subr.mxu0 0.0
    %2515 = vmatpush1.msra.mxu0 0.0
    %2516 = vmatprep.subr.mxu0 0.0
    %2517 = vmatpush1.msra.mxu0 0.0
    %2518 = vmatprep.subr.mxu0 0.0
    %2519 = vmatpush1.msra.mxu0 0.0
    %2520 = vmatprep.subr.mxu0 0.0
    %2521 = vmatpush1.msra.mxu0 0.0
    %2522 = vmatprep.subr.mxu0 0.0
    %2523 = vmatpush1.msra.mxu0 0.0
    %2524 = vmatprep.subr.mxu0 0.0
    %2525 = vmatpush1.msra.mxu0 0.0
    %2526 = vmatprep.subr.mxu0 0.0
    %2527 = vmatpush1.msra.mxu0 0.0
    %2528 = vmatprep.subr.mxu0 0.0
    %2529 = vmatpush1.msra.mxu0 0.0
    %2530 = vmatprep.subr.mxu0 0.0
    %2531 = vmatpush1.msra.mxu0 0.0
    %2532 = vmatprep.subr.mxu0 0.0
    %2533 = vmatpush1.msra.mxu0 0.0
    %2534 = vmatprep.subr.mxu0 0.0
    %2535 = vmatpush1.msra.mxu0 0.0
    %2536 = vmatprep.subr.mxu0 0.0
    %2537 = vmatpush1.msra.mxu0 0.0
    %2538 = vmatprep.subr.mxu0 0.0
    %2539 = vmatpush1.msra.mxu0 0.0
    %2540 = vmatprep.mubr.f32.mxu0 0.0
    %2541 = vmatmul.mubr.f32.gmra.mrb[0].mxu0 %v2474
    %v2542 = vpop.f32.mrb[0].mxu0
    %v2543 = vadd.f32 0.0, %v2542
    %v2544 = vpop.f32.mrb[0].mxu0
    %2545 = vdwg.mxu0
    %v2547 = vlaneseq
    %v2548 = vshrl.u32 %v2547, 7
    %v2549 = vsub.s32 0, %v2548
    %v2550 = vrot.slane %v1848, %v2549
    %v2553 = vsel %vm876, %v2543, 0
    %2555 = vmatprep.subr.mxu0 0.0
    %2556 = vmatpush1.msra.mxu0 %v1844
    %2557 = vmatprep.subr.mxu0 0.0
    %2558 = vmatpush1.msra.mxu0 %v1845
    %2559 = vmatprep.subr.mxu0 0.0
    %2560 = vmatpush1.msra.mxu0 %v1846
    %2561 = vmatprep.subr.mxu0 0.0
    %2562 = vmatpush1.msra.mxu0 %v1847
    %2563 = vmatprep.subr.mxu0 0.0
    %2564 = vmatpush1.msra.mxu0 0.0
    %2565 = vmatprep.subr.mxu0 0.0
    %2566 = vmatpush1.msra.mxu0 0.0
    %2567 = vmatprep.subr.mxu0 0.0
    %2568 = vmatpush1.msra.mxu0 0.0
    %2569 = vmatprep.subr.mxu0 0.0
    %2570 = vmatpush1.msra.mxu0 0.0
    %2571 = vmatprep.subr.mxu0 0.0
    %2572 = vmatpush1.msra.mxu0 0.0
    %2573 = vmatprep.subr.mxu0 0.0
    %2574 = vmatpush1.msra.mxu0 0.0
    %2575 = vmatprep.subr.mxu0 0.0
    %2576 = vmatpush1.msra.mxu0 0.0
    %2577 = vmatprep.subr.mxu0 0.0
    %2578 = vmatpush1.msra.mxu0 0.0
    %2579 = vmatprep.subr.mxu0 0.0
    %2580 = vmatpush1.msra.mxu0 0.0
    %2581 = vmatprep.subr.mxu0 0.0
    %2582 = vmatpush1.msra.mxu0 0.0
    %2583 = vmatprep.subr.mxu0 0.0
    %2584 = vmatpush1.msra.mxu0 0.0
    %2585 = vmatprep.subr.mxu0 0.0
    %2586 = vmatpush1.msra.mxu0 0.0
    %2587 = vmatprep.subr.mxu0 0.0
    %2588 = vmatpush1.msra.mxu0 0.0
    %2589 = vmatprep.subr.mxu0 0.0
    %2590 = vmatpush1.msra.mxu0 0.0
    %2591 = vmatprep.subr.mxu0 0.0
    %2592 = vmatpush1.msra.mxu0 0.0
    %2593 = vmatprep.subr.mxu0 0.0
    %2594 = vmatpush1.msra.mxu0 0.0
    %2595 = vmatprep.subr.mxu0 0.0
    %2596 = vmatpush1.msra.mxu0 0.0
    %2597 = vmatprep.subr.mxu0 0.0
    %2598 = vmatpush1.msra.mxu0 0.0
    %2599 = vmatprep.subr.mxu0 0.0
    %2600 = vmatpush1.msra.mxu0 0.0
    %2601 = vmatprep.subr.mxu0 0.0
    %2602 = vmatpush1.msra.mxu0 0.0
    %2603 = vmatprep.subr.mxu0 0.0
    %2604 = vmatpush1.msra.mxu0 0.0
    %2605 = vmatprep.subr.mxu0 0.0
    %2606 = vmatpush1.msra.mxu0 0.0
    %2607 = vmatprep.subr.mxu0 0.0
    %2608 = vmatpush1.msra.mxu0 0.0
    %2609 = vmatprep.subr.mxu0 0.0
    %2610 = vmatpush1.msra.mxu0 0.0
    %2611 = vmatprep.subr.mxu0 0.0
    %2612 = vmatpush1.msra.mxu0 0.0
    %2613 = vmatprep.subr.mxu0 0.0
    %2614 = vmatpush1.msra.mxu0 0.0
    %2615 = vmatprep.subr.mxu0 0.0
    %2616 = vmatpush1.msra.mxu0 0.0
    %2617 = vmatprep.subr.mxu0 0.0
    %2618 = vmatpush1.msra.mxu0 0.0
    %2619 = vmatprep.mubr.f32.mxu0 0.0
    %2620 = vmatmul.mubr.f32.gmra.mrb[0].mxu0 %v2553
    %v2621 = vpop.f32.mrb[0].mxu0
    %v2622 = vadd.f32 %v2550, %v2621
    %v2623 = vpop.f32.mrb[0].mxu0
    %2624 = vdwg.mxu0
    %v2625 = vadd.f32 %v1819, %v2622
    %v2626 = vsel %vm876, %v2625, 0.0
    %2627 = vadd.xlane.f32.xlu0 %v2626
    %v2628 = vpop.xlane.xlu0 %2627
    %v2629 = vrcp.pop 32.0
    %v2630 = vmul.f32 %v2628, %v2629
    %v2631 = vsub.f32 %v2625, %v2630
    %v2632 = vmul.f32 %v2631, %v2631
    %v2633 = vsel %vm876, %v2632, 0.0
    %2634 = vadd.xlane.f32.xlu0 %v2633
    %v2635 = vpop.xlane.xlu0 %2634
    %v2636 = vmul.f32 %v2635, %v2629
    %v2637 = vadd.f32 %v2636, 1e-05
    %v2638 = vrsqrt.pop %v2637
    %v2639 = vmul.f32 %v2631, %v2638
    %v2641 = vlaneseq
    %v2642 = vshrl.u32 %v2641, 7
    %v2643 = vsub.s32 0, %v2642
    %v2644 = vrot.slane %v1849, %v2643
    %v2646 = vmul.f32 %v2639, %v2644
    %v2648 = vlaneseq
    %v2649 = vshrl.u32 %v2648, 7
    %v2650 = vsub.s32 0, %v2649
    %v2651 = vrot.slane %v1850, %v2650
    %v2653 = vadd.f32 %v2646, %v2651
    %v2655 = vlaneseq
    %v2656 = vshrl.u32 %v2655, 7
    %v2657 = vsub.s32 0, %v2656
    %v2658 = vrot.slane %v1855, %v2657
    %v2661 = vsel %vm876, %v2653, 0
    %2663 = vmatprep.subr.mxu0 0.0
    %2664 = vmatpush1.msra.mxu0 %v1851
    %2665 = vmatprep.subr.mxu0 0.0
    %2666 = vmatpush1.msra.mxu0 %v1852
    %2667 = vmatprep.subr.mxu0 0.0
    %2668 = vmatpush1.msra.mxu0 %v1853
    %2669 = vmatprep.subr.mxu0 0.0
    %2670 = vmatpush1.msra.mxu0 %v1854
    %2671 = vmatprep.subr.mxu0 0.0
    %2672 = vmatpush1.msra.mxu0 0.0
    %2673 = vmatprep.subr.mxu0 0.0
    %2674 = vmatpush1.msra.mxu0 0.0
    %2675 = vmatprep.subr.mxu0 0.0
    %2676 = vmatpush1.msra.mxu0 0.0
    %2677 = vmatprep.subr.mxu0 0.0
    %2678 = vmatpush1.msra.mxu0 0.0
    %2679 = vmatprep.subr.mxu0 0.0
    %2680 = vmatpush1.msra.mxu0 0.0
    %2681 = vmatprep.subr.mxu0 0.0
    %2682 = vmatpush1.msra.mxu0 0.0
    %2683 = vmatprep.subr.mxu0 0.0
    %2684 = vmatpush1.msra.mxu0 0.0
    %2685 = vmatprep.subr.mxu0 0.0
    %2686 = vmatpush1.msra.mxu0 0.0
    %2687 = vmatprep.subr.mxu0 0.0
    %2688 = vmatpush1.msra.mxu0 0.0
    %2689 = vmatprep.subr.mxu0 0.0
    %2690 = vmatpush1.msra.mxu0 0.0
    %2691 = vmatprep.subr.mxu0 0.0
    %2692 = vmatpush1.msra.mxu0 0.0
    %2693 = vmatprep.subr.mxu0 0.0
    %2694 = vmatpush1.msra.mxu0 0.0
    %2695 = vmatprep.subr.mxu0 0.0
    %2696 = vmatpush1.msra.mxu0 0.0
    %2697 = vmatprep.subr.mxu0 0.0
    %2698 = vmatpush1.msra.mxu0 0.0
    %2699 = vmatprep.subr.mxu0 0.0
    %2700 = vmatpush1.msra.mxu0 0.0
    %2701 = vmatprep.subr.mxu0 0.0
    %2702 = vmatpush1.msra.mxu0 0.0
    %2703 = vmatprep.subr.mxu0 0.0
    %2704 = vmatpush1.msra.mxu0 0.0
    %2705 = vmatprep.subr.mxu0 0.0
    %2706 = vmatpush1.msra.mxu0 0.0
    %2707 = vmatprep.subr.mxu0 0.0
    %2708 = vmatpush1.msra.mxu0 0.0
    %2709 = vmatprep.subr.mxu0 0.0
    %2710 = vmatpush1.msra.mxu0 0.0
    %2711 = vmatprep.subr.mxu0 0.0
    %2712 = vmatpush1.msra.mxu0 0.0
    %2713 = vmatprep.subr.mxu0 0.0
    %2714 = vmatpush1.msra.mxu0 0.0
    %2715 = vmatprep.subr.mxu0 0.0
    %2716 = vmatpush1.msra.mxu0 0.0
    %2717 = vmatprep.subr.mxu0 0.0
    %2718 = vmatpush1.msra.mxu0 0.0
    %2719 = vmatprep.subr.mxu0 0.0
    %2720 = vmatpush1.msra.mxu0 0.0
    %2721 = vmatprep.subr.mxu0 0.0
    %2722 = vmatpush1.msra.mxu0 0.0
    %2723 = vmatprep.subr.mxu0 0.0
    %2724 = vmatpush1.msra.mxu0 0.0
    %2725 = vmatprep.subr.mxu0 0.0
    %2726 = vmatpush1.msra.mxu0 0.0
    %2727 = vmatprep.mubr.f32.mxu0 0.0
    %2728 = vmatmul.mubr.f32.gmra.mrb[0].mxu0 %v2661
    %v2729 = vpop.f32.mrb[0].mxu0
    %v2730 = vadd.f32 %v2658, %v2729
    %v2731 = vpop.f32.mrb[0].mxu0
    %2732 = vdwg.mxu0
    %v2733 = vmax.f32 %v2730, 0.0
    %v2735 = vlaneseq
    %v2736 = vshrl.u32 %v2735, 7
    %v2737 = vsub.s32 0, %v2736
    %v2738 = vrot.slane %v1864, %v2737
    %v2741 = vsel %vm2472, %v2733, 0
    %2743 = vmatprep.subr.mxu0 0.0
    %2744 = vmatpush1.msra.mxu0 %v1856
    %2745 = vmatprep.subr.mxu0 0.0
    %2746 = vmatpush1.msra.mxu0 %v1857
    %2747 = vmatprep.subr.mxu0 0.0
    %2748 = vmatpush1.msra.mxu0 %v1858
    %2749 = vmatprep.subr.mxu0 0.0
    %2750 = vmatpush1.msra.mxu0 %v1859
    %2751 = vmatprep.subr.mxu0 0.0
    %2752 = vmatpush1.msra.mxu0 %v1860
    %2753 = vmatprep.subr.mxu0 0.0
    %2754 = vmatpush1.msra.mxu0 %v1861
    %2755 = vmatprep.subr.mxu0 0.0
    %2756 = vmatpush1.msra.mxu0 %v1862
    %2757 = vmatprep.subr.mxu0 0.0
    %2758 = vmatpush1.msra.mxu0 %v1863
    %2759 = vmatprep.subr.mxu0 0.0
    %2760 = vmatpush1.msra.mxu0 0.0
    %2761 = vmatprep.subr.mxu0 0.0
    %2762 = vmatpush1.msra.mxu0 0.0
    %2763 = vmatprep.subr.mxu0 0.0
    %2764 = vmatpush1.msra.mxu0 0.0
    %2765 = vmatprep.subr.mxu0 0.0
    %2766 = vmatpush1.msra.mxu0 0.0
    %2767 = vmatprep.subr.mxu0 0.0
    %2768 = vmatpush1.msra.mxu0 0.0
    %2769 = vmatprep.subr.mxu0 0.0
    %2770 = vmatpush1.msra.mxu0 0.0
    %2771 = vmatprep.subr.mxu0 0.0
    %2772 = vmatpush1.msra.mxu0 0.0
    %2773 = vmatprep.subr.mxu0 0.0
    %2774 = vmatpush1.msra.mxu0 0.0
    %2775 = vmatprep.subr.mxu0 0.0
    %2776 = vmatpush1.msra.mxu0 0.0
    %2777 = vmatprep.subr.mxu0 0.0
    %2778 = vmatpush1.msra.mxu0 0.0
    %2779 = vmatprep.subr.mxu0 0.0
    %2780 = vmatpush1.msra.mxu0 0.0
    %2781 = vmatprep.subr.mxu0 0.0
    %2782 = vmatpush1.msra.mxu0 0.0
    %2783 = vmatprep.subr.mxu0 0.0
    %2784 = vmatpush1.msra.mxu0 0.0
    %2785 = vmatprep.subr.mxu0 0.0
    %2786 = vmatpush1.msra.mxu0 0.0
    %2787 = vmatprep.subr.mxu0 0.0
    %2788 = vmatpush1.msra.mxu0 0.0
    %2789 = vmatprep.subr.mxu0 0.0
    %2790 = vmatpush1.msra.mxu0 0.0
    %2791 = vmatprep.subr.mxu0 0.0
    %2792 = vmatpush1.msra.mxu0 0.0
    %2793 = vmatprep.subr.mxu0 0.0
    %2794 = vmatpush1.msra.mxu0 0.0
    %2795 = vmatprep.subr.mxu0 0.0
    %2796 = vmatpush1.msra.mxu0 0.0
    %2797 = vmatprep.subr.mxu0 0.0
    %2798 = vmatpush1.msra.mxu0 0.0
    %2799 = vmatprep.subr.mxu0 0.0
    %2800 = vmatpush1.msra.mxu0 0.0
    %2801 = vmatprep.subr.mxu0 0.0
    %2802 = vmatpush1.msra.mxu0 0.0
    %2803 = vmatprep.subr.mxu0 0.0
    %2804 = vmatpush1.msra.mxu0 0.0
    %2805 = vmatprep.subr.mxu0 0.0
    %2806 = vmatpush1.msra.mxu0 0.0
    %2807 = vmatprep.mubr.f32.mxu0 0.0
    %2808 = vmatmul.mubr.f32.gmra.mrb[0].mxu0 %v2741
    %v2809 = vpop.f32.mrb[0].mxu0
    %v2810 = vadd.f32 %v2738, %v2809
    %v2811 = vpop.f32.mrb[0].mxu0
    %2812 = vdwg.mxu0
    %v2813 = vadd.f32 %v2653, %v2810
    %v2814 = vsel %vm876, %v2813, 0.0
    %2815 = vadd.xlane.f32.xlu0 %v2814
    %v2816 = vpop.xlane.xlu0 %2815
    %v2817 = vmul.f32 %v2816, %v2629
    %v2818 = vsub.f32 %v2813, %v2817
    %v2819 = vmul.f32 %v2818, %v2818
    %v2820 = vsel %vm876, %v2819, 0.0
    %2821 = vadd.xlane.f32.xlu0 %v2820
    %v2822 = vpop.xlane.xlu0 %2821
    %v2823 = vmul.f32 %v2822, %v2629
    %v2824 = vadd.f32 %v2823, 1e-05
    %v2825 = vrsqrt.pop %v2824
    %v2826 = vmul.f32 %v2818, %v2825
    %v2828 = vlaneseq
    %v2829 = vshrl.u32 %v2828, 7
    %v2830 = vsub.s32 0, %v2829
    %v2831 = vrot.slane %v1865, %v2830
    %v2833 = vmul.f32 %v2826, %v2831
    %v2835 = vlaneseq
    %v2836 = vshrl.u32 %v2835, 7
    %v2837 = vsub.s32 0, %v2836
    %v2838 = vrot.slane %v1866, %v2837
    %v2840 = vadd.f32 %v2833, %v2838
    %v2841 = vld [vmem:[%s59] sm:$0xff]
    %v2842 = vld [vmem:[%s59 + $0x8] sm:$0xff]
    %v2843 = vld [vmem:[%s59 + $0x10] sm:$0xff]
    %v2844 = vld [vmem:[%s59 + $0x18] sm:$0xff]
    %v2845 = vld [vmem:[%s61] sm:$0x1]
    %v2846 = vld [vmem:[%s63] sm:$0xff]
    %v2847 = vld [vmem:[%s63 + $0x8] sm:$0xff]
    %v2848 = vld [vmem:[%s63 + $0x10] sm:$0xff]
    %v2849 = vld [vmem:[%s63 + $0x18] sm:$0xff]
    %v2850 = vld [vmem:[%s65] sm:$0x1]
    %v2851 = vld [vmem:[%s67] sm:$0xff]
    %v2852 = vld [vmem:[%s67 + $0x8] sm:$0xff]
    %v2853 = vld [vmem:[%s67 + $0x10] sm:$0xff]
    %v2854 = vld [vmem:[%s67 + $0x18] sm:$0xff]
    %v2855 = vld [vmem:[%s69] sm:$0x1]
    %v2856 = vld [vmem:[%s71] sm:$0xff]
    %v2857 = vld [vmem:[%s71 + $0x8] sm:$0xff]
    %v2858 = vld [vmem:[%s71 + $0x10] sm:$0xff]
    %v2859 = vld [vmem:[%s71 + $0x18] sm:$0xff]
    %v2860 = vld [vmem:[%s73] sm:$0x1]
    %v2861 = vld [vmem:[%s75] sm:$0x1]
    %v2862 = vld [vmem:[%s77] sm:$0x1]
    %v2863 = vld [vmem:[%s79] sm:$0xff]
    %v2864 = vld [vmem:[%s79 + $0x8] sm:$0xff]
    %v2865 = vld [vmem:[%s79 + $0x10] sm:$0xff]
    %v2866 = vld [vmem:[%s79 + $0x18] sm:$0xff]
    %v2867 = vld [vmem:[%s81] sm:$0x1]
    %v2868 = vld [vmem:[%s83] sm:$0xff]
    %v2869 = vld [vmem:[%s83 + $0x8] sm:$0xff]
    %v2870 = vld [vmem:[%s83 + $0x10] sm:$0xff]
    %v2871 = vld [vmem:[%s83 + $0x18] sm:$0xff]
    %v2872 = vld [vmem:[%s83 + $0x20] sm:$0xff]
    %v2873 = vld [vmem:[%s83 + $0x28] sm:$0xff]
    %v2874 = vld [vmem:[%s83 + $0x30] sm:$0xff]
    %v2875 = vld [vmem:[%s83 + $0x38] sm:$0xff]
    %v2876 = vld [vmem:[%s85] sm:$0x1]
    %v2877 = vld [vmem:[%s87] sm:$0x1]
    %v2878 = vld [vmem:[%s89] sm:$0x1]
    %v2880 = vlaneseq
    %v2881 = vshrl.u32 %v2880, 7
    %v2882 = vsub.s32 0, %v2881
    %v2883 = vrot.slane %v2845, %v2882
    %v2886 = vsel %vm876, %v2840, 0
    %2888 = vmatprep.subr.mxu0 0.0
    %2889 = vmatpush1.msra.mxu0 %v2841
    %2890 = vmatprep.subr.mxu0 0.0
    %2891 = vmatpush1.msra.mxu0 %v2842
    %2892 = vmatprep.subr.mxu0 0.0
    %2893 = vmatpush1.msra.mxu0 %v2843
    %2894 = vmatprep.subr.mxu0 0.0
    %2895 = vmatpush1.msra.mxu0 %v2844
    %2896 = vmatprep.subr.mxu0 0.0
    %2897 = vmatpush1.msra.mxu0 0.0
    %2898 = vmatprep.subr.mxu0 0.0
    %2899 = vmatpush1.msra.mxu0 0.0
    %2900 = vmatprep.subr.mxu0 0.0
    %2901 = vmatpush1.msra.mxu0 0.0
    %2902 = vmatprep.subr.mxu0 0.0
    %2903 = vmatpush1.msra.mxu0 0.0
    %2904 = vmatprep.subr.mxu0 0.0
    %2905 = vmatpush1.msra.mxu0 0.0
    %2906 = vmatprep.subr.mxu0 0.0
    %2907 = vmatpush1.msra.mxu0 0.0
    %2908 = vmatprep.subr.mxu0 0.0
    %2909 = vmatpush1.msra.mxu0 0.0
    %2910 = vmatprep.subr.mxu0 0.0
    %2911 = vmatpush1.msra.mxu0 0.0
    %2912 = vmatprep.subr.mxu0 0.0
    %2913 = vmatpush1.msra.mxu0 0.0
    %2914 = vmatprep.subr.mxu0 0.0
    %2915 = vmatpush1.msra.mxu0 0.0
    %2916 = vmatprep.subr.mxu0 0.0
    %2917 = vmatpush1.msra.mxu0 0.0
    %2918 = vmatprep.subr.mxu0 0.0
    %2919 = vmatpush1.msra.mxu0 0.0
    %2920 = vmatprep.subr.mxu0 0.0
    %2921 = vmatpush1.msra.mxu0 0.0
    %2922 = vmatprep.subr.mxu0 0.0
    %2923 = vmatpush1.msra.mxu0 0.0
    %2924 = vmatprep.subr.mxu0 0.0
    %2925 = vmatpush1.msra.mxu0 0.0
    %2926 = vmatprep.subr.mxu0 0.0
    %2927 = vmatpush1.msra.mxu0 0.0
    %2928 = vmatprep.subr.mxu0 0.0
    %2929 = vmatpush1.msra.mxu0 0.0
    %2930 = vmatprep.subr.mxu0 0.0
    %2931 = vmatpush1.msra.mxu0 0.0
    %2932 = vmatprep.subr.mxu0 0.0
    %2933 = vmatpush1.msra.mxu0 0.0
    %2934 = vmatprep.subr.mxu0 0.0
    %2935 = vmatpush1.msra.mxu0 0.0
    %2936 = vmatprep.subr.mxu0 0.0
    %2937 = vmatpush1.msra.mxu0 0.0
    %2938 = vmatprep.subr.mxu0 0.0
    %2939 = vmatpush1.msra.mxu0 0.0
    %2940 = vmatprep.subr.mxu0 0.0
    %2941 = vmatpush1.msra.mxu0 0.0
    %2942 = vmatprep.subr.mxu0 0.0
    %2943 = vmatpush1.msra.mxu0 0.0
    %2944 = vmatprep.subr.mxu0 0.0
    %2945 = vmatpush1.msra.mxu0 0.0
    %2946 = vmatprep.subr.mxu0 0.0
    %2947 = vmatpush1.msra.mxu0 0.0
    %2948 = vmatprep.subr.mxu0 0.0
    %2949 = vmatpush1.msra.mxu0 0.0
    %2950 = vmatprep.subr.mxu0 0.0
    %2951 = vmatpush1.msra.mxu0 0.0
    %2952 = vmatprep.mubr.f32.mxu0 0.0
    %2953 = vmatmul.mubr.f32.gmra.mrb[0].mxu0 %v2886
    %v2954 = vpop.f32.mrb[0].mxu0
    %v2955 = vadd.f32 %v2883, %v2954
    %v2956 = vpop.f32.mrb[0].mxu0
    %2957 = vdwg.mxu0
    %v2959 = vlaneseq
    %v2960 = vshrl.u32 %v2959, 7
    %v2961 = vsub.s32 0, %v2960
    %v2962 = vrot.slane %v2850, %v2961
    %2964 = vmatprep.subr.mxu0 0.0
    %2965 = vmatpush1.msra.mxu0 %v2846
    %2966 = vmatprep.subr.mxu0 0.0
    %2967 = vmatpush1.msra.mxu0 %v2847
    %2968 = vmatprep.subr.mxu0 0.0
    %2969 = vmatpush1.msra.mxu0 %v2848
    %2970 = vmatprep.subr.mxu0 0.0
    %2971 = vmatpush1.msra.mxu0 %v2849
    %2972 = vmatprep.subr.mxu0 0.0
    %2973 = vmatpush1.msra.mxu0 0.0
    %2974 = vmatprep.subr.mxu0 0.0
    %2975 = vmatpush1.msra.mxu0 0.0
    %2976 = vmatprep.subr.mxu0 0.0
    %2977 = vmatpush1.msra.mxu0 0.0
    %2978 = vmatprep.subr.mxu0 0.0
    %2979 = vmatpush1.msra.mxu0 0.0
    %2980 = vmatprep.subr.mxu0 0.0
    %2981 = vmatpush1.msra.mxu0 0.0
    %2982 = vmatprep.subr.mxu0 0.0
    %2983 = vmatpush1.msra.mxu0 0.0
    %2984 = vmatprep.subr.mxu0 0.0
    %2985 = vmatpush1.msra.mxu0 0.0
    %2986 = vmatprep.subr.mxu0 0.0
    %2987 = vmatpush1.msra.mxu0 0.0
    %2988 = vmatprep.subr.mxu0 0.0
    %2989 = vmatpush1.msra.mxu0 0.0
    %2990 = vmatprep.subr.mxu0 0.0
    %2991 = vmatpush1.msra.mxu0 0.0
    %2992 = vmatprep.subr.mxu0 0.0
    %2993 = vmatpush1.msra.mxu0 0.0
    %2994 = vmatprep.subr.mxu0 0.0
    %2995 = vmatpush1.msra.mxu0 0.0
    %2996 = vmatprep.subr.mxu0 0.0
    %2997 = vmatpush1.msra.mxu0 0.0
    %2998 = vmatprep.subr.mxu0 0.0
    %2999 = vmatpush1.msra.mxu0 0.0
    %3000 = vmatprep.subr.mxu0 0.0
    %3001 = vmatpush1.msra.mxu0 0.0
    %3002 = vmatprep.subr.mxu0 0.0
    %3003 = vmatpush1.msra.mxu0 0.0
    %3004 = vmatprep.subr.mxu0 0.0
    %3005 = vmatpush1.msra.mxu0 0.0
    %3006 = vmatprep.subr.mxu0 0.0
    %3007 = vmatpush1.msra.mxu0 0.0
    %3008 = vmatprep.subr.mxu0 0.0
    %3009 = vmatpush1.msra.mxu0 0.0
    %3010 = vmatprep.subr.mxu0 0.0
    %3011 = vmatpush1.msra.mxu0 0.0
    %3012 = vmatprep.subr.mxu0 0.0
    %3013 = vmatpush1.msra.mxu0 0.0
    %3014 = vmatprep.subr.mxu0 0.0
    %3015 = vmatpush1.msra.mxu0 0.0
    %3016 = vmatprep.subr.mxu0 0.0
    %3017 = vmatpush1.msra.mxu0 0.0
    %3018 = vmatprep.subr.mxu0 0.0
    %3019 = vmatpush1.msra.mxu0 0.0
    %3020 = vmatprep.subr.mxu0 0.0
    %3021 = vmatpush1.msra.mxu0 0.0
    %3022 = vmatprep.subr.mxu0 0.0
    %3023 = vmatpush1.msra.mxu0 0.0
    %3024 = vmatprep.subr.mxu0 0.0
    %3025 = vmatpush1.msra.mxu0 0.0
    %3026 = vmatprep.subr.mxu0 0.0
    %3027 = vmatpush1.msra.mxu0 0.0
    %3028 = vmatprep.mubr.f32.mxu0 0.0
    %3029 = vmatmul.mubr.f32.gmra.mrb[0].mxu0 %v2886
    %v3030 = vpop.f32.mrb[0].mxu0
    %v3031 = vadd.f32 %v2962, %v3030
    %v3032 = vpop.f32.mrb[0].mxu0
    %3033 = vdwg.mxu0
    %v3035 = vlaneseq
    %v3036 = vshrl.u32 %v3035, 7
    %v3037 = vsub.s32 0, %v3036
    %v3038 = vrot.slane %v2855, %v3037
    %3040 = vmatprep.subr.mxu0 0.0
    %3041 = vmatpush1.msra.mxu0 %v2851
    %3042 = vmatprep.subr.mxu0 0.0
    %3043 = vmatpush1.msra.mxu0 %v2852
    %3044 = vmatprep.subr.mxu0 0.0
    %3045 = vmatpush1.msra.mxu0 %v2853
    %3046 = vmatprep.subr.mxu0 0.0
    %3047 = vmatpush1.msra.mxu0 %v2854
    %3048 = vmatprep.subr.mxu0 0.0
    %3049 = vmatpush1.msra.mxu0 0.0
    %3050 = vmatprep.subr.mxu0 0.0
    %3051 = vmatpush1.msra.mxu0 0.0
    %3052 = vmatprep.subr.mxu0 0.0
    %3053 = vmatpush1.msra.mxu0 0.0
    %3054 = vmatprep.subr.mxu0 0.0
    %3055 = vmatpush1.msra.mxu0 0.0
    %3056 = vmatprep.subr.mxu0 0.0
    %3057 = vmatpush1.msra.mxu0 0.0
    %3058 = vmatprep.subr.mxu0 0.0
    %3059 = vmatpush1.msra.mxu0 0.0
    %3060 = vmatprep.subr.mxu0 0.0
    %3061 = vmatpush1.msra.mxu0 0.0
    %3062 = vmatprep.subr.mxu0 0.0
    %3063 = vmatpush1.msra.mxu0 0.0
    %3064 = vmatprep.subr.mxu0 0.0
    %3065 = vmatpush1.msra.mxu0 0.0
    %3066 = vmatprep.subr.mxu0 0.0
    %3067 = vmatpush1.msra.mxu0 0.0
    %3068 = vmatprep.subr.mxu0 0.0
    %3069 = vmatpush1.msra.mxu0 0.0
    %3070 = vmatprep.subr.mxu0 0.0
    %3071 = vmatpush1.msra.mxu0 0.0
    %3072 = vmatprep.subr.mxu0 0.0
    %3073 = vmatpush1.msra.mxu0 0.0
    %3074 = vmatprep.subr.mxu0 0.0
    %3075 = vmatpush1.msra.mxu0 0.0
    %3076 = vmatprep.subr.mxu0 0.0
    %3077 = vmatpush1.msra.mxu0 0.0
    %3078 = vmatprep.subr.mxu0 0.0
    %3079 = vmatpush1.msra.mxu0 0.0
    %3080 = vmatprep.subr.mxu0 0.0
    %3081 = vmatpush1.msra.mxu0 0.0
    %3082 = vmatprep.subr.mxu0 0.0
    %3083 = vmatpush1.msra.mxu0 0.0
    %3084 = vmatprep.subr.mxu0 0.0
    %3085 = vmatpush1.msra.mxu0 0.0
    %3086 = vmatprep.subr.mxu0 0.0
    %3087 = vmatpush1.msra.mxu0 0.0
    %3088 = vmatprep.subr.mxu0 0.0
    %3089 = vmatpush1.msra.mxu0 0.0
    %3090 = vmatprep.subr.mxu0 0.0
    %3091 = vmatpush1.msra.mxu0 0.0
    %3092 = vmatprep.subr.mxu0 0.0
    %3093 = vmatpush1.msra.mxu0 0.0
    %3094 = vmatprep.subr.mxu0 0.0
    %3095 = vmatpush1.msra.mxu0 0.0
    %3096 = vmatprep.subr.mxu0 0.0
    %3097 = vmatpush1.msra.mxu0 0.0
    %3098 = vmatprep.subr.mxu0 0.0
    %3099 = vmatpush1.msra.mxu0 0.0
    %3100 = vmatprep.subr.mxu0 0.0
    %3101 = vmatpush1.msra.mxu0 0.0
    %3102 = vmatprep.subr.mxu0 0.0
    %3103 = vmatpush1.msra.mxu0 0.0
    %3104 = vmatprep.mubr.f32.mxu0 0.0
    %3105 = vmatmul.mubr.f32.gmra.mrb[0].mxu0 %v2886
    %v3106 = vpop.f32.mrb[0].mxu0
    %v3107 = vadd.f32 %v3038, %v3106
    %v3108 = vpop.f32.mrb[0].mxu0
    %3109 = vdwg.mxu0
    %v3110 = vmul.f32 %v2955, %v1820
    %v3111 = vmul.f32 %v2955, %v1821
    %v3112 = vmul.f32 %v2955, %v1822
    %v3113 = vmul.f32 %v2955, %v1823
    %v3114 = vmul.f32 %v2955, %v1824
    %v3115 = vmul.f32 %v2955, %v1825
    %v3116 = vmul.f32 %v2955, %v1826
    %v3117 = vmul.f32 %v2955, %v1827
    %v3119 = vsel %vm876, %v3110, 0
    %v3122 = vsel %vm876, %v3111, 0
    %v3125 = vsel %vm876, %v3112, 0
    %v3128 = vsel %vm876, %v3113, 0
    %v3131 = vsel %vm876, %v3114, 0
    %v3134 = vsel %vm876, %v3115, 0
    %v3137 = vsel %vm876, %v3116, 0
    %v3140 = vsel %vm876, %v3117, 0
    %v3143 = vsel %vm876, %v3031, 0
    %3145 = vmatprep.subr.mxu0 0.0
    %3146 = vmatpush1.xpose.msra.mxu0 %v3143
    %3147 = vmatprep.subr.mxu0 0.0
    %3148 = vmatpush1.xpose.msra.mxu0 0.0
    %3149 = vmatprep.subr.mxu0 0.0
    %3150 = vmatpush1.xpose.msra.mxu0 0.0
    %3151 = vmatprep.subr.mxu0 0.0
    %3152 = vmatpush1.xpose.msra.mxu0 0.0
    %3153 = vmatprep.subr.mxu0 0.0
    %3154 = vmatpush1.xpose.msra.mxu0 0.0
    %3155 = vmatprep.subr.mxu0 0.0
    %3156 = vmatpush1.xpose.msra.mxu0 0.0
    %3157 = vmatprep.subr.mxu0 0.0
    %3158 = vmatpush1.xpose.msra.mxu0 0.0
    %3159 = vmatprep.subr.mxu0 0.0
    %3160 = vmatpush1.xpose.msra.mxu0 0.0
    %3161 = vmatprep.subr.mxu0 0.0
    %3162 = vmatpush1.xpose.msra.mxu0 0.0
    %3163 = vmatprep.subr.mxu0 0.0
    %3164 = vmatpush1.xpose.msra.mxu0 0.0
    %3165 = vmatprep.subr.mxu0 0.0
    %3166 = vmatpush1.xpose.msra.mxu0 0.0
    %3167 = vmatprep.subr.mxu0 0.0
    %3168 = vmatpush1.xpose.msra.mxu0 0.0
    %3169 = vmatprep.subr.mxu0 0.0
    %3170 = vmatpush1.xpose.msra.mxu0 0.0
    %3171 = vmatprep.subr.mxu0 0.0
    %3172 = vmatpush1.xpose.msra.mxu0 0.0
    %3173 = vmatprep.subr.mxu0 0.0
    %3174 = vmatpush1.xpose.msra.mxu0 0.0
    %3175 = vmatprep.subr.mxu0 0.0
    %3176 = vmatpush1.xpose.msra.mxu0 0.0
    %3177 = vmatprep.subr.mxu0 0.0
    %3178 = vmatpush1.xpose.msra.mxu0 0.0
    %3179 = vmatprep.subr.mxu0 0.0
    %3180 = vmatpush1.xpose.msra.mxu0 0.0
    %3181 = vmatprep.subr.mxu0 0.0
    %3182 = vmatpush1.xpose.msra.mxu0 0.0
    %3183 = vmatprep.subr.mxu0 0.0
    %3184 = vmatpush1.xpose.msra.mxu0 0.0
    %3185 = vmatprep.subr.mxu0 0.0
    %3186 = vmatpush1.xpose.msra.mxu0 0.0
    %3187 = vmatprep.subr.mxu0 0.0
    %3188 = vmatpush1.xpose.msra.mxu0 0.0
    %3189 = vmatprep.subr.mxu0 0.0
    %3190 = vmatpush1.xpose.msra.mxu0 0.0
    %3191 = vmatprep.subr.mxu0 0.0
    %3192 = vmatpush1.xpose.msra.mxu0 0.0
    %3193 = vmatprep.subr.mxu0 0.0
    %3194 = vmatpush1.xpose.msra.mxu0 0.0
    %3195 = vmatprep.subr.mxu0 0.0
    %3196 = vmatpush1.xpose.msra.mxu0 0.0
    %3197 = vmatprep.subr.mxu0 0.0
    %3198 = vmatpush1.xpose.msra.mxu0 0.0
    %3199 = vmatprep.subr.mxu0 0.0
    %3200 = vmatpush1.xpose.msra.mxu0 0.0
    %3201 = vmatprep.subr.mxu0 0.0
    %3202 = vmatpush1.xpose.msra.mxu0 0.0
    %3203 = vmatprep.subr.mxu0 0.0
    %3204 = vmatpush1.xpose.msra.mxu0 0.0
    %3205 = vmatprep.subr.mxu0 0.0
    %3206 = vmatpush1.xpose.msra.mxu0 0.0
    %3207 = vmatprep.subr.mxu0 0.0
    %3208 = vmatpush1.xpose.msra.mxu0 0.0
    %3209 = vmatprep.mubr.f32.mxu0 0.0
    %3210 = vmatmul.mubr.f32.gmra.mrb[0].mxu0 %v3119
    %v3211 = vpop.f32.mrb[0].mxu0
    %v3212 = vadd.f32 0.0, %v3211
    %v3213 = vpop.f32.mrb[0].mxu0
    %3214 = vmatprep.mubr.f32.mxu0 0.0
    %3215 = vmatmul.mubr.f32.gmra.mrb[0].mxu0 %v3122
    %v3216 = vpop.f32.mrb[0].mxu0
    %v3217 = vadd.f32 0.0, %v3216
    %v3218 = vpop.f32.mrb[0].mxu0
    %3219 = vmatprep.mubr.f32.mxu0 0.0
    %3220 = vmatmul.mubr.f32.gmra.mrb[0].mxu0 %v3125
    %v3221 = vpop.f32.mrb[0].mxu0
    %v3222 = vadd.f32 0.0, %v3221
    %v3223 = vpop.f32.mrb[0].mxu0
    %3224 = vmatprep.mubr.f32.mxu0 0.0
    %3225 = vmatmul.mubr.f32.gmra.mrb[0].mxu0 %v3128
    %v3226 = vpop.f32.mrb[0].mxu0
    %v3227 = vadd.f32 0.0, %v3226
    %v3228 = vpop.f32.mrb[0].mxu0
    %3229 = vmatprep.mubr.f32.mxu0 0.0
    %3230 = vmatmul.mubr.f32.gmra.mrb[0].mxu0 %v3131
    %v3231 = vpop.f32.mrb[0].mxu0
    %v3232 = vadd.f32 0.0, %v3231
    %v3233 = vpop.f32.mrb[0].mxu0
    %3234 = vmatprep.mubr.f32.mxu0 0.0
    %3235 = vmatmul.mubr.f32.gmra.mrb[0].mxu0 %v3134
    %v3236 = vpop.f32.mrb[0].mxu0
    %v3237 = vadd.f32 0.0, %v3236
    %v3238 = vpop.f32.mrb[0].mxu0
    %3239 = vmatprep.mubr.f32.mxu0 0.0
    %3240 = vmatmul.mubr.f32.gmra.mrb[0].mxu0 %v3137
    %v3241 = vpop.f32.mrb[0].mxu0
    %v3242 = vadd.f32 0.0, %v3241
    %v3243 = vpop.f32.mrb[0].mxu0
    %3244 = vmatprep.mubr.f32.mxu0 0.0
    %3245 = vmatmul.mubr.f32.gmra.mrb[0].mxu0 %v3140
    %v3246 = vpop.f32.mrb[0].mxu0
    %v3247 = vadd.f32 0.0, %v3246
    %v3248 = vpop.f32.mrb[0].mxu0
    %3249 = vdwg.mxu0
    %v3250 = vmul.f32 %v3212, 0.5
    %v3251 = vmul.f32 %v3217, 0.5
    %v3252 = vmul.f32 %v3222, 0.5
    %v3253 = vmul.f32 %v3227, 0.5
    %v3254 = vmul.f32 %v3232, 0.5
    %v3255 = vmul.f32 %v3237, 0.5
    %v3256 = vmul.f32 %v3242, 0.5
    %v3257 = vmul.f32 %v3247, 0.5
    %v3258 = vsel %vm2246, %v3250, -inf
    %3259 = vmax.xlane.f32.xlu0 %v3258
    %v3260 = vpop.xlane.xlu0 %3259
    %v3261 = vsel %vm2246, %v3251, -inf
    %3262 = vmax.xlane.f32.xlu0 %v3261
    %v3263 = vpop.xlane.xlu0 %3262
    %v3264 = vsel %vm2246, %v3252, -inf
    %3265 = vmax.xlane.f32.xlu0 %v3264
    %v3266 = vpop.xlane.xlu0 %3265
    %v3267 = vsel %vm2246, %v3253, -inf
    %3268 = vmax.xlane.f32.xlu0 %v3267
    %v3269 = vpop.xlane.xlu0 %3268
    %v3270 = vsel %vm2246, %v3254, -inf
    %3271 = vmax.xlane.f32.xlu0 %v3270
    %v3272 = vpop.xlane.xlu0 %3271
    %v3273 = vsel %vm2246, %v3255, -inf
    %3274 = vmax.xlane.f32.xlu0 %v3273
    %v3275 = vpop.xlane.xlu0 %3274
    %v3276 = vsel %vm2246, %v3256, -inf
    %3277 = vmax.xlane.f32.xlu0 %v3276
    %v3278 = vpop.xlane.xlu0 %3277
    %v3279 = vsel %vm2246, %v3257, -inf
    %3280 = vmax.xlane.f32.xlu0 %v3279
    %v3281 = vpop.xlane.xlu0 %3280
    %v3282 = vsub.f32 %v3250, %v3260
    %v3283 = vsub.f32 %v3251, %v3263
    %v3284 = vsub.f32 %v3252, %v3266
    %v3285 = vsub.f32 %v3253, %v3269
    %v3286 = vsub.f32 %v3254, %v3272
    %v3287 = vsub.f32 %v3255, %v3275
    %v3288 = vsub.f32 %v3256, %v3278
    %v3289 = vsub.f32 %v3257, %v3281
    %v3290 = vmul.f32 %v3282, 1.442695
    %v3291 = vpow.pop %v3290
    %v3292 = vmul.f32 %v3283, 1.442695
    %v3293 = vpow.pop %v3292
    %v3294 = vmul.f32 %v3284, 1.442695
    %v3295 = vpow.pop %v3294
    %v3296 = vmul.f32 %v3285, 1.442695
    %v3297 = vpow.pop %v3296
    %v3298 = vmul.f32 %v3286, 1.442695
    %v3299 = vpow.pop %v3298
    %v3300 = vmul.f32 %v3287, 1.442695
    %v3301 = vpow.pop %v3300
    %v3302 = vmul.f32 %v3288, 1.442695
    %v3303 = vpow.pop %v3302
    %v3304 = vmul.f32 %v3289, 1.442695
    %v3305 = vpow.pop %v3304
    %v3306 = vsel %vm2246, %v3291, 0.0
    %3307 = vadd.xlane.f32.xlu0 %v3306
    %v3308 = vpop.xlane.xlu0 %3307
    %v3309 = vsel %vm2246, %v3293, 0.0
    %3310 = vadd.xlane.f32.xlu0 %v3309
    %v3311 = vpop.xlane.xlu0 %3310
    %v3312 = vsel %vm2246, %v3295, 0.0
    %3313 = vadd.xlane.f32.xlu0 %v3312
    %v3314 = vpop.xlane.xlu0 %3313
    %v3315 = vsel %vm2246, %v3297, 0.0
    %3316 = vadd.xlane.f32.xlu0 %v3315
    %v3317 = vpop.xlane.xlu0 %3316
    %v3318 = vsel %vm2246, %v3299, 0.0
    %3319 = vadd.xlane.f32.xlu0 %v3318
    %v3320 = vpop.xlane.xlu0 %3319
    %v3321 = vsel %vm2246, %v3301, 0.0
    %3322 = vadd.xlane.f32.xlu0 %v3321
    %v3323 = vpop.xlane.xlu0 %3322
    %v3324 = vsel %vm2246, %v3303, 0.0
    %3325 = vadd.xlane.f32.xlu0 %v3324
    %v3326 = vpop.xlane.xlu0 %3325
    %v3327 = vsel %vm2246, %v3305, 0.0
    %3328 = vadd.xlane.f32.xlu0 %v3327
    %v3329 = vpop.xlane.xlu0 %3328
    %v3330 = vrcp.pop %v3308
    %v3331 = vmul.f32 %v3291, %v3330
    %v3332 = vrcp.pop %v3311
    %v3333 = vmul.f32 %v3293, %v3332
    %v3334 = vrcp.pop %v3314
    %v3335 = vmul.f32 %v3295, %v3334
    %v3336 = vrcp.pop %v3317
    %v3337 = vmul.f32 %v3297, %v3336
    %v3338 = vrcp.pop %v3320
    %v3339 = vmul.f32 %v3299, %v3338
    %v3340 = vrcp.pop %v3323
    %v3341 = vmul.f32 %v3301, %v3340
    %v3342 = vrcp.pop %v3326
    %v3343 = vmul.f32 %v3303, %v3342
    %v3344 = vrcp.pop %v3329
    %v3345 = vmul.f32 %v3305, %v3344
    %v3347 = vsel %vm2246, %v3331, 0
    %v3350 = vsel %vm2246, %v3333, 0
    %v3353 = vsel %vm2246, %v3335, 0
    %v3356 = vsel %vm2246, %v3337, 0
    %v3359 = vsel %vm2246, %v3339, 0
    %v3362 = vsel %vm2246, %v3341, 0
    %v3365 = vsel %vm2246, %v3343, 0
    %v3368 = vsel %vm2246, %v3345, 0
    %3370 = vmatprep.subr.mxu0 0.0
    %3371 = vmatpush1.msra.mxu0 %v3107
    %3372 = vmatprep.subr.mxu0 0.0
    %3373 = vmatpush1.msra.mxu0 0.0
    %3374 = vmatprep.subr.mxu0 0.0
    %3375 = vmatpush1.msra.mxu0 0.0
    %3376 = vmatprep.subr.mxu0 0.0
    %3377 = vmatpush1.msra.mxu0 0.0
    %3378 = vmatprep.subr.mxu0 0.0
    %3379 = vmatpush1.msra.mxu0 0.0
    %3380 = vmatprep.subr.mxu0 0.0
    %3381 = vmatpush1.msra.mxu0 0.0
    %3382 = vmatprep.subr.mxu0 0.0
    %3383 = vmatpush1.msra.mxu0 0.0
    %3384 = vmatprep.subr.mxu0 0.0
    %3385 = vmatpush1.msra.mxu0 0.0
    %3386 = vmatprep.subr.mxu0 0.0
    %3387 = vmatpush1.msra.mxu0 0.0
    %3388 = vmatprep.subr.mxu0 0.0
    %3389 = vmatpush1.msra.mxu0 0.0
    %3390 = vmatprep.subr.mxu0 0.0
    %3391 = vmatpush1.msra.mxu0 0.0
    %3392 = vmatprep.subr.mxu0 0.0
    %3393 = vmatpush1.msra.mxu0 0.0
    %3394 = vmatprep.subr.mxu0 0.0
    %3395 = vmatpush1.msra.mxu0 0.0
    %3396 = vmatprep.subr.mxu0 0.0
    %3397 = vmatpush1.msra.mxu0 0.0
    %3398 = vmatprep.subr.mxu0 0.0
    %3399 = vmatpush1.msra.mxu0 0.0
    %3400 = vmatprep.subr.mxu0 0.0
    %3401 = vmatpush1.msra.mxu0 0.0
    %3402 = vmatprep.subr.mxu0 0.0
    %3403 = vmatpush1.msra.mxu0 0.0
    %3404 = vmatprep.subr.mxu0 0.0
    %3405 = vmatpush1.msra.mxu0 0.0
    %3406 = vmatprep.subr.mxu0 0.0
    %3407 = vmatpush1.msra.mxu0 0.0
    %3408 = vmatprep.subr.mxu0 0.0
    %3409 = vmatpush1.msra.mxu0 0.0
    %3410 = vmatprep.subr.mxu0 0.0
    %3411 = vmatpush1.msra.mxu0 0.0
    %3412 = vmatprep.subr.mxu0 0.0
    %3413 = vmatpush1.msra.mxu0 0.0
    %3414 = vmatprep.subr.mxu0 0.0
    %3415 = vmatpush1.msra.mxu0 0.0
    %3416 = vmatprep.subr.mxu0 0.0
    %3417 = vmatpush1.msra.mxu0 0.0
    %3418 = vmatprep.subr.mxu0 0.0
    %3419 = vmatpush1.msra.mxu0 0.0
    %3420 = vmatprep.subr.mxu0 0.0
    %3421 = vmatpush1.msra.mxu0 0.0
    %3422 = vmatprep.subr.mxu0 0.0
    %3423 = vmatpush1.msra.mxu0 0.0
    %3424 = vmatprep.subr.mxu0 0.0
    %3425 = vmatpush1.msra.mxu0 0.0
    %3426 = vmatprep.subr.mxu0 0.0
    %3427 = vmatpush1.msra.mxu0 0.0
    %3428 = vmatprep.subr.mxu0 0.0
    %3429 = vmatpush1.msra.mxu0 0.0
    %3430 = vmatprep.subr.mxu0 0.0
    %3431 = vmatpush1.msra.mxu0 0.0
    %3432 = vmatprep.subr.mxu0 0.0
    %3433 = vmatpush1.msra.mxu0 0.0
    %3434 = vmatprep.mubr.f32.mxu0 0.0
    %3435 = vmatmul.mubr.f32.gmra.mrb[0].mxu0 %v3347
    %v3436 = vpop.f32.mrb[0].mxu0
    %v3437 = vadd.f32 0.0, %v3436
    %v3438 = vpop.f32.mrb[0].mxu0
    %3439 = vmatprep.mubr.f32.mxu0 0.0
    %3440 = vmatmul.mubr.f32.gmra.mrb[0].mxu0 %v3350
    %v3441 = vpop.f32.mrb[0].mxu0
    %v3442 = vadd.f32 0.0, %v3441
    %v3443 = vpop.f32.mrb[0].mxu0
    %3444 = vmatprep.mubr.f32.mxu0 0.0
    %3445 = vmatmul.mubr.f32.gmra.mrb[0].mxu0 %v3353
    %v3446 = vpop.f32.mrb[0].mxu0
    %v3447 = vadd.f32 0.0, %v3446
    %v3448 = vpop.f32.mrb[0].mxu0
    %3449 = vmatprep.mubr.f32.mxu0 0.0
    %3450 = vmatmul.mubr.f32.gmra.mrb[0].mxu0 %v3356
    %v3451 = vpop.f32.mrb[0].mxu0
    %v3452 = vadd.f32 0.0, %v3451
    %v3453 = vpop.f32.mrb[0].mxu0
    %3454 = vmatprep.mubr.f32.mxu0 0.0
    %3455 = vmatmul.mubr.f32.gmra.mrb[0].mxu0 %v3359
    %v3456 = vpop.f32.mrb[0].mxu0
    %v3457 = vadd.f32 0.0, %v3456
    %v3458 = vpop.f32.mrb[0].mxu0
    %3459 = vmatprep.mubr.f32.mxu0 0.0
    %3460 = vmatmul.mubr.f32.gmra.mrb[0].mxu0 %v3362
    %v3461 = vpop.f32.mrb[0].mxu0
    %v3462 = vadd.f32 0.0, %v3461
    %v3463 = vpop.f32.mrb[0].mxu0
    %3464 = vmatprep.mubr.f32.mxu0 0.0
    %3465 = vmatmul.mubr.f32.gmra.mrb[0].mxu0 %v3365
    %v3466 = vpop.f32.mrb[0].mxu0
    %v3467 = vadd.f32 0.0, %v3466
    %v3468 = vpop.f32.mrb[0].mxu0
    %3469 = vmatprep.mubr.f32.mxu0 0.0
    %3470 = vmatmul.mubr.f32.gmra.mrb[0].mxu0 %v3368
    %v3471 = vpop.f32.mrb[0].mxu0
    %v3472 = vadd.f32 0.0, %v3471
    %v3473 = vpop.f32.mrb[0].mxu0
    %3474 = vdwg.mxu0
    %v3475 = vmul.f32 %v3437, %v1820
    %v3476 = vmul.f32 %v3442, %v1821
    %v3477 = vmul.f32 %v3447, %v1822
    %v3478 = vmul.f32 %v3452, %v1823
    %v3479 = vmul.f32 %v3457, %v1824
    %v3480 = vmul.f32 %v3462, %v1825
    %v3481 = vmul.f32 %v3467, %v1826
    %v3482 = vmul.f32 %v3472, %v1827
    %3483 = vmatprep.subr.mxu0 0.0
    %3484 = vmatpush1.msra.mxu0 %v3475
    %3485 = vmatprep.subr.mxu0 0.0
    %3486 = vmatpush1.msra.mxu0 %v3476
    %3487 = vmatprep.subr.mxu0 0.0
    %3488 = vmatpush1.msra.mxu0 %v3477
    %3489 = vmatprep.subr.mxu0 0.0
    %3490 = vmatpush1.msra.mxu0 %v3478
    %3491 = vmatprep.subr.mxu0 0.0
    %3492 = vmatpush1.msra.mxu0 %v3479
    %3493 = vmatprep.subr.mxu0 0.0
    %3494 = vmatpush1.msra.mxu0 %v3480
    %3495 = vmatprep.subr.mxu0 0.0
    %3496 = vmatpush1.msra.mxu0 %v3481
    %3497 = vmatprep.subr.mxu0 0.0
    %3498 = vmatpush1.msra.mxu0 %v3482
    %3499 = vmatprep.subr.mxu0 0.0
    %3500 = vmatpush1.msra.mxu0 0.0
    %3501 = vmatprep.subr.mxu0 0.0
    %3502 = vmatpush1.msra.mxu0 0.0
    %3503 = vmatprep.subr.mxu0 0.0
    %3504 = vmatpush1.msra.mxu0 0.0
    %3505 = vmatprep.subr.mxu0 0.0
    %3506 = vmatpush1.msra.mxu0 0.0
    %3507 = vmatprep.subr.mxu0 0.0
    %3508 = vmatpush1.msra.mxu0 0.0
    %3509 = vmatprep.subr.mxu0 0.0
    %3510 = vmatpush1.msra.mxu0 0.0
    %3511 = vmatprep.subr.mxu0 0.0
    %3512 = vmatpush1.msra.mxu0 0.0
    %3513 = vmatprep.subr.mxu0 0.0
    %3514 = vmatpush1.msra.mxu0 0.0
    %3515 = vmatprep.subr.mxu0 0.0
    %3516 = vmatpush1.msra.mxu0 0.0
    %3517 = vmatprep.subr.mxu0 0.0
    %3518 = vmatpush1.msra.mxu0 0.0
    %3519 = vmatprep.subr.mxu0 0.0
    %3520 = vmatpush1.msra.mxu0 0.0
    %3521 = vmatprep.subr.mxu0 0.0
    %3522 = vmatpush1.msra.mxu0 0.0
    %3523 = vmatprep.subr.mxu0 0.0
    %3524 = vmatpush1.msra.mxu0 0.0
    %3525 = vmatprep.subr.mxu0 0.0
    %3526 = vmatpush1.msra.mxu0 0.0
    %3527 = vmatprep.subr.mxu0 0.0
    %3528 = vmatpush1.msra.mxu0 0.0
    %3529 = vmatprep.subr.mxu0 0.0
    %3530 = vmatpush1.msra.mxu0 0.0
    %3531 = vmatprep.subr.mxu0 0.0
    %3532 = vmatpush1.msra.mxu0 0.0
    %3533 = vmatprep.subr.mxu0 0.0
    %3534 = vmatpush1.msra.mxu0 0.0
    %3535 = vmatprep.subr.mxu0 0.0
    %3536 = vmatpush1.msra.mxu0 0.0
    %3537 = vmatprep.subr.mxu0 0.0
    %3538 = vmatpush1.msra.mxu0 0.0
    %3539 = vmatprep.subr.mxu0 0.0
    %3540 = vmatpush1.msra.mxu0 0.0
    %3541 = vmatprep.subr.mxu0 0.0
    %3542 = vmatpush1.msra.mxu0 0.0
    %3543 = vmatprep.subr.mxu0 0.0
    %3544 = vmatpush1.msra.mxu0 0.0
    %3545 = vmatprep.subr.mxu0 0.0
    %3546 = vmatpush1.msra.mxu0 0.0
    %3547 = vmatprep.mubr.f32.mxu0 0.0
    %3548 = vmatmul.mubr.f32.gmra.mrb[0].mxu0 %v2474
    %v3549 = vpop.f32.mrb[0].mxu0
    %v3550 = vadd.f32 0.0, %v3549
    %v3551 = vpop.f32.mrb[0].mxu0
    %3552 = vdwg.mxu0
    %v3554 = vlaneseq
    %v3555 = vshrl.u32 %v3554, 7
    %v3556 = vsub.s32 0, %v3555
    %v3557 = vrot.slane %v2860, %v3556
    %v3560 = vsel %vm876, %v3550, 0
    %3562 = vmatprep.subr.mxu0 0.0
    %3563 = vmatpush1.msra.mxu0 %v2856
    %3564 = vmatprep.subr.mxu0 0.0
    %3565 = vmatpush1.msra.mxu0 %v2857
    %3566 = vmatprep.subr.mxu0 0.0
    %3567 = vmatpush1.msra.mxu0 %v2858
    %3568 = vmatprep.subr.mxu0 0.0
    %3569 = vmatpush1.msra.mxu0 %v2859
    %3570 = vmatprep.subr.mxu0 0.0
    %3571 = vmatpush1.msra.mxu0 0.0
    %3572 = vmatprep.subr.mxu0 0.0
    %3573 = vmatpush1.msra.mxu0 0.0
    %3574 = vmatprep.subr.mxu0 0.0
    %3575 = vmatpush1.msra.mxu0 0.0
    %3576 = vmatprep.subr.mxu0 0.0
    %3577 = vmatpush1.msra.mxu0 0.0
    %3578 = vmatprep.subr.mxu0 0.0
    %3579 = vmatpush1.msra.mxu0 0.0
    %3580 = vmatprep.subr.mxu0 0.0
    %3581 = vmatpush1.msra.mxu0 0.0
    %3582 = vmatprep.subr.mxu0 0.0
    %3583 = vmatpush1.msra.mxu0 0.0
    %3584 = vmatprep.subr.mxu0 0.0
    %3585 = vmatpush1.msra.mxu0 0.0
    %3586 = vmatprep.subr.mxu0 0.0
    %3587 = vmatpush1.msra.mxu0 0.0
    %3588 = vmatprep.subr.mxu0 0.0
    %3589 = vmatpush1.msra.mxu0 0.0
    %3590 = vmatprep.subr.mxu0 0.0
    %3591 = vmatpush1.msra.mxu0 0.0
    %3592 = vmatprep.subr.mxu0 0.0
    %3593 = vmatpush1.msra.mxu0 0.0
    %3594 = vmatprep.subr.mxu0 0.0
    %3595 = vmatpush1.msra.mxu0 0.0
    %3596 = vmatprep.subr.mxu0 0.0
    %3597 = vmatpush1.msra.mxu0 0.0
    %3598 = vmatprep.subr.mxu0 0.0
    %3599 = vmatpush1.msra.mxu0 0.0
    %3600 = vmatprep.subr.mxu0 0.0
    %3601 = vmatpush1.msra.mxu0 0.0
    %3602 = vmatprep.subr.mxu0 0.0
    %3603 = vmatpush1.msra.mxu0 0.0
    %3604 = vmatprep.subr.mxu0 0.0
    %3605 = vmatpush1.msra.mxu0 0.0
    %3606 = vmatprep.subr.mxu0 0.0
    %3607 = vmatpush1.msra.mxu0 0.0
    %3608 = vmatprep.subr.mxu0 0.0
    %3609 = vmatpush1.msra.mxu0 0.0
    %3610 = vmatprep.subr.mxu0 0.0
    %3611 = vmatpush1.msra.mxu0 0.0
    %3612 = vmatprep.subr.mxu0 0.0
    %3613 = vmatpush1.msra.mxu0 0.0
    %3614 = vmatprep.subr.mxu0 0.0
    %3615 = vmatpush1.msra.mxu0 0.0
    %3616 = vmatprep.subr.mxu0 0.0
    %3617 = vmatpush1.msra.mxu0 0.0
    %3618 = vmatprep.subr.mxu0 0.0
    %3619 = vmatpush1.msra.mxu0 0.0
    %3620 = vmatprep.subr.mxu0 0.0
    %3621 = vmatpush1.msra.mxu0 0.0
    %3622 = vmatprep.subr.mxu0 0.0
    %3623 = vmatpush1.msra.mxu0 0.0
    %3624 = vmatprep.subr.mxu0 0.0
    %3625 = vmatpush1.msra.mxu0 0.0
    %3626 = vmatprep.mubr.f32.mxu0 0.0
    %3627 = vmatmul.mubr.f32.gmra.mrb[0].mxu0 %v3560
    %v3628 = vpop.f32.mrb[0].mxu0
    %v3629 = vadd.f32 %v3557, %v3628
    %v3630 = vpop.f32.mrb[0].mxu0
    %3631 = vdwg.mxu0
    %v3632 = vadd.f32 %v2840, %v3629
    %v3633 = vsel %vm876, %v3632, 0.0
    %3634 = vadd.xlane.f32.xlu0 %v3633
    %v3635 = vpop.xlane.xlu0 %3634
    %v3636 = vmul.f32 %v3635, %v2629
    %v3637 = vsub.f32 %v3632, %v3636
    %v3638 = vmul.f32 %v3637, %v3637
    %v3639 = vsel %vm876, %v3638, 0.0
    %3640 = vadd.xlane.f32.xlu0 %v3639
    %v3641 = vpop.xlane.xlu0 %3640
    %v3642 = vmul.f32 %v3641, %v2629
    %v3643 = vadd.f32 %v3642, 1e-05
    %v3644 = vrsqrt.pop %v3643
    %v3645 = vmul.f32 %v3637, %v3644
    %v3647 = vlaneseq
    %v3648 = vshrl.u32 %v3647, 7
    %v3649 = vsub.s32 0, %v3648
    %v3650 = vrot.slane %v2861, %v3649
    %v3652 = vmul.f32 %v3645, %v3650
    %v3654 = vlaneseq
    %v3655 = vshrl.u32 %v3654, 7
    %v3656 = vsub.s32 0, %v3655
    %v3657 = vrot.slane %v2862, %v3656
    %v3659 = vadd.f32 %v3652, %v3657
    %v3661 = vlaneseq
    %v3662 = vshrl.u32 %v3661, 7
    %v3663 = vsub.s32 0, %v3662
    %v3664 = vrot.slane %v2867, %v3663
    %v3667 = vsel %vm876, %v3659, 0
    %3669 = vmatprep.subr.mxu0 0.0
    %3670 = vmatpush1.msra.mxu0 %v2863
    %3671 = vmatprep.subr.mxu0 0.0
    %3672 = vmatpush1.msra.mxu0 %v2864
    %3673 = vmatprep.subr.mxu0 0.0
    %3674 = vmatpush1.msra.mxu0 %v2865
    %3675 = vmatprep.subr.mxu0 0.0
    %3676 = vmatpush1.msra.mxu0 %v2866
    %3677 = vmatprep.subr.mxu0 0.0
    %3678 = vmatpush1.msra.mxu0 0.0
    %3679 = vmatprep.subr.mxu0 0.0
    %3680 = vmatpush1.msra.mxu0 0.0
    %3681 = vmatprep.subr.mxu0 0.0
    %3682 = vmatpush1.msra.mxu0 0.0
    %3683 = vmatprep.subr.mxu0 0.0
    %3684 = vmatpush1.msra.mxu0 0.0
    %3685 = vmatprep.subr.mxu0 0.0
    %3686 = vmatpush1.msra.mxu0 0.0
    %3687 = vmatprep.subr.mxu0 0.0
    %3688 = vmatpush1.msra.mxu0 0.0
    %3689 = vmatprep.subr.mxu0 0.0
    %3690 = vmatpush1.msra.mxu0 0.0
    %3691 = vmatprep.subr.mxu0 0.0
    %3692 = vmatpush1.msra.mxu0 0.0
    %3693 = vmatprep.subr.mxu0 0.0
    %3694 = vmatpush1.msra.mxu0 0.0
    %3695 = vmatprep.subr.mxu0 0.0
    %3696 = vmatpush1.msra.mxu0 0.0
    %3697 = vmatprep.subr.mxu0 0.0
    %3698 = vmatpush1.msra.mxu0 0.0
    %3699 = vmatprep.subr.mxu0 0.0
    %3700 = vmatpush1.msra.mxu0 0.0
    %3701 = vmatprep.subr.mxu0 0.0
    %3702 = vmatpush1.msra.mxu0 0.0
    %3703 = vmatprep.subr.mxu0 0.0
    %3704 = vmatpush1.msra.mxu0 0.0
    %3705 = vmatprep.subr.mxu0 0.0
    %3706 = vmatpush1.msra.mxu0 0.0
    %3707 = vmatprep.subr.mxu0 0.0
    %3708 = vmatpush1.msra.mxu0 0.0
    %3709 = vmatprep.subr.mxu0 0.0
    %3710 = vmatpush1.msra.mxu0 0.0
    %3711 = vmatprep.subr.mxu0 0.0
    %3712 = vmatpush1.msra.mxu0 0.0
    %3713 = vmatprep.subr.mxu0 0.0
    %3714 = vmatpush1.msra.mxu0 0.0
    %3715 = vmatprep.subr.mxu0 0.0
    %3716 = vmatpush1.msra.mxu0 0.0
    %3717 = vmatprep.subr.mxu0 0.0
    %3718 = vmatpush1.msra.mxu0 0.0
    %3719 = vmatprep.subr.mxu0 0.0
    %3720 = vmatpush1.msra.mxu0 0.0
    %3721 = vmatprep.subr.mxu0 0.0
    %3722 = vmatpush1.msra.mxu0 0.0
    %3723 = vmatprep.subr.mxu0 0.0
    %3724 = vmatpush1.msra.mxu0 0.0
    %3725 = vmatprep.subr.mxu0 0.0
    %3726 = vmatpush1.msra.mxu0 0.0
    %3727 = vmatprep.subr.mxu0 0.0
    %3728 = vmatpush1.msra.mxu0 0.0
    %3729 = vmatprep.subr.mxu0 0.0
    %3730 = vmatpush1.msra.mxu0 0.0
    %3731 = vmatprep.subr.mxu0 0.0
    %3732 = vmatpush1.msra.mxu0 0.0
    %3733 = vmatprep.mubr.f32.mxu0 0.0
    %3734 = vmatmul.mubr.f32.gmra.mrb[0].mxu0 %v3667
    %v3735 = vpop.f32.mrb[0].mxu0
    %v3736 = vadd.f32 %v3664, %v3735
    %v3737 = vpop.f32.mrb[0].mxu0
    %3738 = vdwg.mxu0
    %v3739 = vmax.f32 %v3736, 0.0
    %v3741 = vlaneseq
    %v3742 = vshrl.u32 %v3741, 7
    %v3743 = vsub.s32 0, %v3742
    %v3744 = vrot.slane %v2876, %v3743
    %v3747 = vsel %vm2472, %v3739, 0
    %3749 = vmatprep.subr.mxu0 0.0
    %3750 = vmatpush1.msra.mxu0 %v2868
    %3751 = vmatprep.subr.mxu0 0.0
    %3752 = vmatpush1.msra.mxu0 %v2869
    %3753 = vmatprep.subr.mxu0 0.0
    %3754 = vmatpush1.msra.mxu0 %v2870
    %3755 = vmatprep.subr.mxu0 0.0
    %3756 = vmatpush1.msra.mxu0 %v2871
    %3757 = vmatprep.subr.mxu0 0.0
    %3758 = vmatpush1.msra.mxu0 %v2872
    %3759 = vmatprep.subr.mxu0 0.0
    %3760 = vmatpush1.msra.mxu0 %v2873
    %3761 = vmatprep.subr.mxu0 0.0
    %3762 = vmatpush1.msra.mxu0 %v2874
    %3763 = vmatprep.subr.mxu0 0.0
    %3764 = vmatpush1.msra.mxu0 %v2875
    %3765 = vmatprep.subr.mxu0 0.0
    %3766 = vmatpush1.msra.mxu0 0.0
    %3767 = vmatprep.subr.mxu0 0.0
    %3768 = vmatpush1.msra.mxu0 0.0
    %3769 = vmatprep.subr.mxu0 0.0
    %3770 = vmatpush1.msra.mxu0 0.0
    %3771 = vmatprep.subr.mxu0 0.0
    %3772 = vmatpush1.msra.mxu0 0.0
    %3773 = vmatprep.subr.mxu0 0.0
    %3774 = vmatpush1.msra.mxu0 0.0
    %3775 = vmatprep.subr.mxu0 0.0
    %3776 = vmatpush1.msra.mxu0 0.0
    %3777 = vmatprep.subr.mxu0 0.0
    %3778 = vmatpush1.msra.mxu0 0.0
    %3779 = vmatprep.subr.mxu0 0.0
    %3780 = vmatpush1.msra.mxu0 0.0
    %3781 = vmatprep.subr.mxu0 0.0
    %3782 = vmatpush1.msra.mxu0 0.0
    %3783 = vmatprep.subr.mxu0 0.0
    %3784 = vmatpush1.msra.mxu0 0.0
    %3785 = vmatprep.subr.mxu0 0.0
    %3786 = vmatpush1.msra.mxu0 0.0
    %3787 = vmatprep.subr.mxu0 0.0
    %3788 = vmatpush1.msra.mxu0 0.0
    %3789 = vmatprep.subr.mxu0 0.0
    %3790 = vmatpush1.msra.mxu0 0.0
    %3791 = vmatprep.subr.mxu0 0.0
    %3792 = vmatpush1.msra.mxu0 0.0
    %3793 = vmatprep.subr.mxu0 0.0
    %3794 = vmatpush1.msra.mxu0 0.0
    %3795 = vmatprep.subr.mxu0 0.0
    %3796 = vmatpush1.msra.mxu0 0.0
    %3797 = vmatprep.subr.mxu0 0.0
    %3798 = vmatpush1.msra.mxu0 0.0
    %3799 = vmatprep.subr.mxu0 0.0
    %3800 = vmatpush1.msra.mxu0 0.0
    %3801 = vmatprep.subr.mxu0 0.0
    %3802 = vmatpush1.msra.mxu0 0.0
    %3803 = vmatprep.subr.mxu0 0.0
    %3804 = vmatpush1.msra.mxu0 0.0
    %3805 = vmatprep.subr.mxu0 0.0
    %3806 = vmatpush1.msra.mxu0 0.0
    %3807 = vmatprep.subr.mxu0 0.0
    %3808 = vmatpush1.msra.mxu0 0.0
    %3809 = vmatprep.subr.mxu0 0.0
    %3810 = vmatpush1.msra.mxu0 0.0
    %3811 = vmatprep.subr.mxu0 0.0
    %3812 = vmatpush1.msra.mxu0 0.0
    %3813 = vmatprep.mubr.f32.mxu0 0.0
    %3814 = vmatmul.mubr.f32.gmra.mrb[0].mxu0 %v3747
    %v3815 = vpop.f32.mrb[0].mxu0
    %v3816 = vadd.f32 %v3744, %v3815
    %v3817 = vpop.f32.mrb[0].mxu0
    %3818 = vdwg.mxu0
    %v3819 = vadd.f32 %v3659, %v3816
    %v3820 = vsel %vm876, %v3819, 0.0
    %3821 = vadd.xlane.f32.xlu0 %v3820
    %v3822 = vpop.xlane.xlu0 %3821
    %v3823 = vmul.f32 %v3822, %v2629
    %v3824 = vsub.f32 %v3819, %v3823
    %v3825 = vmul.f32 %v3824, %v3824
    %v3826 = vsel %vm876, %v3825, 0.0
    %3827 = vadd.xlane.f32.xlu0 %v3826
    %v3828 = vpop.xlane.xlu0 %3827
    %v3829 = vmul.f32 %v3828, %v2629
    %v3830 = vadd.f32 %v3829, 1e-05
    %v3831 = vrsqrt.pop %v3830
    %v3832 = vmul.f32 %v3824, %v3831
    %v3834 = vlaneseq
    %v3835 = vshrl.u32 %v3834, 7
    %v3836 = vsub.s32 0, %v3835
    %v3837 = vrot.slane %v2877, %v3836
    %v3839 = vmul.f32 %v3832, %v3837
    %v3841 = vlaneseq
    %v3842 = vshrl.u32 %v3841, 7
    %v3843 = vsub.s32 0, %v3842
    %v3844 = vrot.slane %v2878, %v3843
    %v3846 = vadd.f32 %v3839, %v3844
    %3847 = vst.msk [vmem:[#allocation2] sm:$0xff] %vm876, %v3846
    // Predicated region
    $region182: #{sk_tcl_forward.1} parent=1 // pred_check
      _
    $region183: #{sk_tcl_forward.1} parent=1 // pred_check_branch
      %3849 = sbr.rel (0) target = $region185
    $region184: #{sk_tcl_forward.1} parent=1 // pred_region
      %s3851 = ssub.s32 128, 128
      %3852 = vsyncadd [#allocation3], %s3851
      %s3854 = sshll.u32 [#allocation2], 4
      %s3855 = int_to_ptr.vmem [resolvable:$true] %s3854
      %3857 = dma.vmem_to_hbm [thread:$0]  %s3855, 128, %s91, [#allocation3]
    $region185: #{sk_tcl_forward.1} parent=1 // pred_fallthru
      _
    // Predicated region
    $region186: #{sk_tcl_forward.1} parent=1 // pred_check
      _
    $region187: #{sk_tcl_forward.1} parent=1 // pred_check_branch
      %3859 = sbr.rel (0) target = $region189
    $region188: #{sk_tcl_forward.1} parent=1 // pred_region
      %3860 = dma.done [#allocation3], 128
    $region189: #{sk_tcl_forward.1} parent=1 // pred_fallthru
      _
    %3861 = vsyncpa [#allocation3], 1

</llo_original>
